<compile_context>
chip_gen: v6e
topology: v6e:2x2x1
jax: 0.10.0
libtpu: 0.0.40
codegen_flags: <defaults>
</compile_context>

<pallas_src>
import numpy as np
import jax
import jax.numpy as jnp
from jax import lax
from jax.experimental import pallas as pl
from jax.experimental.pallas import tpu as pltpu

LEAKY_SLOPE = 0.2
BN_EPS = 1e-5
KSIZE = 3


# ----------------------------- Pallas kernel ------------------------------ #

def _make_fused_kernel(plan):
    """Build the single fused kernel from a static per-layer plan."""

    def _leaky(y):
        return jnp.where(y > 0, y, LEAKY_SLOPE * y)

    def _batch_norm(y):
        mean = jnp.mean(y, axis=0, keepdims=True)
        var = jnp.mean(jnp.square(y - mean), axis=0, keepdims=True)   # biased
        return (y - mean) * lax.rsqrt(var + BN_EPS)                   # gamma=1, beta=0

    def kernel(*refs):
        out_ref = refs[-1]
        it = iter(refs[:-1])

        # -- initial conv: patch matmul + bias + LeakyReLU (no BN) --
        x1 = next(it)[...]
        w1 = next(it)[...]
        b1 = next(it)[...]
        a = jnp.dot(x1, w1, preferred_element_type=jnp.float32) + b1
        a = _leaky(a)

        # -- DownConvBlocks: tap-accumulated conv + BatchNorm + LeakyReLU --
        for lp in plan:
            s_ref = None if lp["identity_sel"] else next(it)
            w_ref = next(it)
            a_lo = a.astype(jnp.bfloat16)
            acc = jnp.zeros((lp["m_out"], lp["cout"]), jnp.float32)
            for t in range(lp["ntaps"]):
                if s_ref is None:
                    xt = a_lo
                else:
                    xt = jnp.dot(s_ref[t], a_lo,
                                 preferred_element_type=jnp.float32).astype(jnp.bfloat16)
                acc = acc + jnp.dot(xt, w_ref[t], preferred_element_type=jnp.float32)
            # conv bias is exactly cancelled by train-mode BatchNorm -> skipped
            a = _leaky(_batch_norm(acc))

        # -- final conv (1x1 spatial -> centre tap only): matmul + bias --
        wf = next(it)[...]
        bf = next(it)[...]
        y = jnp.dot(a.astype(jnp.bfloat16), wf,
                    preferred_element_type=jnp.float32) + bf
        out_ref[...] = y.astype(out_ref.dtype)                 # lane-dense (N, 128)

    return kernel


# ------------------------------ build helpers ----------------------------- #

def _conv_out(size, k, stride, pad):
    return (size + 2 * pad - k) // stride + 1


def _tap_selection(n, hin, win, k, stride, pad):
    """Per-tap 0/1 row-selection matrices implementing the shifted / strided /
    zero-padded gather of a 3x3 conv.  All-zero (pure padding) taps dropped."""
    oh, ow = _conv_out(hin, k, stride, pad), _conv_out(win, k, stride, pad)
    m_out, m_in = n * oh * ow, n * hin * win
    taps, mats = [], []
    for kh in range(k):
        for kw in range(k):
            s = np.zeros((m_out, m_in), np.float32)
            for b in range(n):
                for i in range(oh):
                    for j in range(ow):
                        h = i * stride + kh - pad
                        w = j * stride + kw - pad
                        if 0 <= h < hin and 0 <= w < win:
                            s[b * oh * ow + i * ow + j,
                              b * hin * win + h * win + w] = 1.0
            if s.any():
                taps.append(kh * k + kw)
                mats.append(s)
    return taps, np.stack(mats, axis=0), (oh, ow)


def build_discriminator(params, x_shape):
    """params: list of (w, b) in PyTorch Conv2d layout (Cout, Cin, KH, KW).
    x_shape: NCHW input shape.  Returns a jitted forward(x_nchw) -> NCHW."""
    n, cin0, h0, w0 = (int(d) for d in x_shape)
    k = KSIZE

    # ---- layer 1 (Conv s=2 p=1 + LeakyReLU) ----
    w1, b1 = params[0]
    c1 = int(w1.shape[0])
    oh1, ow1 = _conv_out(h0, k, 2, 1), _conv_out(w0, k, 2, 1)
    m1 = n * oh1 * ow1
    w1_mat = jnp.asarray(
        np.transpose(np.asarray(w1), (2, 3, 1, 0)).reshape(k * k * cin0, c1),
        jnp.float32)
    b1_row = jnp.asarray(np.asarray(b1).reshape(1, c1), jnp.float32)

    const_inputs = [w1_mat, b1_row]
    plan = []
    cur_h, cur_w = oh1, ow1

    # ---- DownConvBlocks (Conv s=2 p=1 + BatchNorm + LeakyReLU) ----
    for wl, _bl in params[1:-1]:            # conv bias cancelled by train-mode BN
        cout, cin = int(wl.shape[0]), int(wl.shape[1])
        taps, s_mats, (noh, now_) = _tap_selection(n, cur_h, cur_w, k, 2, 1)
        m_in, m_out = n * cur_h * cur_w, n * noh * now_
        w_taps = np.transpose(np.asarray(wl), (2, 3, 1, 0)).reshape(k * k, cin, cout)[taps]
        identity_sel = (len(taps) == 1 and m_in == m_out and
                        np.array_equal(s_mats[0], np.eye(m_out, dtype=np.float32)))
        if not identity_sel:
            const_inputs.append(jnp.asarray(s_mats, jnp.bfloat16))
        const_inputs.append(jnp.asarray(w_taps, jnp.bfloat16))
        plan.append({"ntaps": len(taps), "identity_sel": identity_sel,
                     "m_out": m_out, "cout": cout})
        cur_h, cur_w = noh, now_

    # ---- final conv (s=1 p=1) on 1x1 spatial: centre tap only ----
    assert cur_h == 1 and cur_w == 1, "final-layer lowering assumes 1x1 spatial input"
    wf, bf = params[-1]
    coutf, cinf = int(wf.shape[0]), int(wf.shape[1])
    c_pad = 128                                     # lane-dense output store
    wf_mat = np.zeros((cinf, c_pad), np.float32)
    wf_mat[:, :coutf] = np.asarray(wf)[:, :, 1, 1].T
    bf_row = np.zeros((1, c_pad), np.float32)
    bf_row[0, :coutf] = np.asarray(bf)
    const_inputs.append(jnp.asarray(wf_mat, jnp.bfloat16))
    const_inputs.append(jnp.asarray(bf_row, jnp.float32))

    consts = tuple(const_inputs)
    n_inputs = 1 + len(consts)

    fused = pl.pallas_call(
        _make_fused_kernel(tuple(plan)),
        out_shape=jax.ShapeDtypeStruct((n, c_pad), jnp.float32),
        in_specs=[pl.BlockSpec(memory_space=pltpu.MemorySpace.VMEM)] * n_inputs,
        out_specs=pl.BlockSpec(memory_space=pltpu.MemorySpace.VMEM),
        compiler_params=pltpu.CompilerParams(vmem_limit_bytes=32 * 1024 * 1024),
    )

    def _layer1_patches(x_nchw):
        """3x3/stride-2 patch extraction of the tiny network input -> (M1, 9*Cin)."""
        x = jnp.transpose(x_nchw, (0, 2, 3, 1)).astype(jnp.float32)   # NHWC
        xp = jnp.pad(x, ((0, 0), (1, 1), (1, 1), (0, 0)))
        cols = []
        for kh in range(k):
            for kw in range(k):
                cols.append(xp[:, kh:kh + 2 * (oh1 - 1) + 1:2,
                               kw:kw + 2 * (ow1 - 1) + 1:2, :])
        patches = jnp.stack(cols, axis=3)                  # (N, OH, OW, 9, Cin)
        return patches.reshape(m1, k * k * cin0)

    @jax.jit
    def _forward(consts_, x_nchw):
        x1 = _layer1_patches(x_nchw)
        out = fused(x1, *consts_)                          # (N, 128) lane-dense
        return out[:, :coutf].reshape(n, 1, 1, coutf).transpose(0, 3, 1, 2)

    return lambda x_nchw: _forward(consts, x_nchw)


# ------------------------------ parameters --------------------------------- #

def init_params(key, in_channels=1, features=(32, 64, 128, 256, 512)):
    """Deterministic synthetic parameters matching the module's conv shapes
    (PyTorch Conv2d layout: (Cout, Cin, KH, KW))."""
    chans = [(in_channels, features[0])]                       # initial conv
    for f in features[:-1]:                                    # DownConvBlocks
        chans.append((f, 2 * f))
    chans.append((features[-1], in_channels))                  # final conv
    params = []
    for cin, cout in chans:
        key, k1, k2 = jax.random.split(key, 3)
        fan_in = cin * 9
        w = jax.random.normal(k1, (cout, cin, 3, 3), jnp.float32) / jnp.sqrt(fan_in)
        b = 0.01 * jax.random.normal(k2, (cout,), jnp.float32)
        params.append((w, b))
    return params


if __name__ == "__main__":
    key = jax.random.PRNGKey(0)
    kp, kx = jax.random.split(key)
    params = init_params(kp, in_channels=1, features=(32, 64, 128, 256, 512))
    # small NCHW input consistent with the module (in_channels=1)
    x = jax.random.normal(kx, (2, 1, 16, 16), jnp.float32)

    forward = build_discriminator(params, x.shape)
    out = jax.block_until_ready(forward(x))
    assert out.shape == (2, 1, 1, 1), out.shape
    print("KERNEL_OK")
</pallas_src>

<mosaic_0001>
module attributes {stable_mosaic.version = 11 : i64} {
  func.func @kernel(%arg0: memref<128x9xf32, #tpu.memory_space<vmem>>, %arg1: memref<9x32xf32, #tpu.memory_space<vmem>>, %arg2: memref<1x32xf32, #tpu.memory_space<vmem>>, %arg3: memref<9x32x128xbf16, #tpu.memory_space<vmem>>, %arg4: memref<9x32x64xbf16, #tpu.memory_space<vmem>>, %arg5: memref<9x8x32xbf16, #tpu.memory_space<vmem>>, %arg6: memref<9x64x128xbf16, #tpu.memory_space<vmem>>, %arg7: memref<4x2x8xbf16, #tpu.memory_space<vmem>>, %arg8: memref<4x128x256xbf16, #tpu.memory_space<vmem>>, %arg9: memref<1x256x512xbf16, #tpu.memory_space<vmem>>, %arg10: memref<512x128xbf16, #tpu.memory_space<vmem>>, %arg11: memref<1x128xf32, #tpu.memory_space<vmem>>, %arg12: memref<2x128xf32, #tpu.memory_space<vmem>>) attributes {dimension_semantics = [], scalar_prefetch = 0 : i64, scratch_operands = 0 : i64, tpu.core_type = #tpu.core_type<tc>} {
    %c0 = arith.constant 0 : index
    %c0_0 = arith.constant 0 : index
    %0 = vector.load %arg0[%c0, %c0_0] : memref<128x9xf32, #tpu.memory_space<vmem>>, vector<128x9xf32>
    %c0_1 = arith.constant 0 : index
    %c0_2 = arith.constant 0 : index
    %1 = vector.load %arg1[%c0_1, %c0_2] : memref<9x32xf32, #tpu.memory_space<vmem>>, vector<9x32xf32>
    %c0_3 = arith.constant 0 : index
    %c0_4 = arith.constant 0 : index
    %2 = vector.load %arg2[%c0_3, %c0_4] : memref<1x32xf32, #tpu.memory_space<vmem>>, vector<1x32xf32>
    %cst = arith.constant dense<0.000000e+00> : vector<128x32xf32>
    %3 = tpu.matmul %0, %1, %cst {dimension_numbers = #tpu.dot_dimension_numbers<[1], [0], [0], [1], [0, 0, 1, 1], [], []>} : vector<128x9xf32>, vector<9x32xf32>, vector<128x32xf32> -> vector<128x32xf32>
    %4 = vector.broadcast %2 : vector<1x32xf32> to vector<128x32xf32>
    %5 = arith.addf %3, %4 : vector<128x32xf32>
    %cst_5 = arith.constant 0.000000e+00 : f32
    %6 = vector.broadcast %cst_5 : f32 to vector<128x32xf32>
    %7 = arith.cmpf ogt, %5, %6 : vector<128x32xf32>
    %cst_6 = arith.constant 2.000000e-01 : f32
    %8 = vector.broadcast %cst_6 : f32 to vector<128x32xf32>
    %9 = arith.mulf %8, %5 : vector<128x32xf32>
    %10 = arith.select %7, %5, %9 : vector<128x32xi1>, vector<128x32xf32>
    %11 = arith.truncf %10 : vector<128x32xf32> to vector<128x32xbf16>
    %cst_7 = arith.constant 0.000000e+00 : f32
    %12 = vector.broadcast %cst_7 : f32 to vector<32x64xf32>
    %c0_8 = arith.constant 0 : index
    %c0_9 = arith.constant 0 : index
    %c0_10 = arith.constant 0 : index
    %13 = vector.load %arg3[%c0_8, %c0_9, %c0_10] : memref<9x32x128xbf16, #tpu.memory_space<vmem>>, vector<1x32x128xbf16>
    %14 = vector.shape_cast %13 : vector<1x32x128xbf16> to vector<32x128xbf16>
    %cst_11 = arith.constant dense<0.000000e+00> : vector<32x32xf32>
    %15 = tpu.matmul %14, %11, %cst_11 {dimension_numbers = #tpu.dot_dimension_numbers<[1], [0], [0], [1], [0, 0, 1, 1], [], []>} : vector<32x128xbf16>, vector<128x32xbf16>, vector<32x32xf32> -> vector<32x32xf32>
    %16 = arith.truncf %15 : vector<32x32xf32> to vector<32x32xbf16>
    %c0_12 = arith.constant 0 : index
    %c0_13 = arith.constant 0 : index
    %c0_14 = arith.constant 0 : index
    %17 = vector.load %arg4[%c0_12, %c0_13, %c0_14] : memref<9x32x64xbf16, #tpu.memory_space<vmem>>, vector<1x32x64xbf16>
    %18 = vector.shape_cast %17 : vector<1x32x64xbf16> to vector<32x64xbf16>
    %cst_15 = arith.constant dense<0.000000e+00> : vector<32x64xf32>
    %19 = tpu.matmul %16, %18, %cst_15 {dimension_numbers = #tpu.dot_dimension_numbers<[1], [0], [0], [1], [0, 0, 1, 1], [], []>} : vector<32x32xbf16>, vector<32x64xbf16>, vector<32x64xf32> -> vector<32x64xf32>
    %20 = arith.addf %12, %19 : vector<32x64xf32>
    %c1 = arith.constant 1 : index
    %c0_16 = arith.constant 0 : index
    %c0_17 = arith.constant 0 : index
    %21 = vector.load %arg3[%c1, %c0_16, %c0_17] : memref<9x32x128xbf16, #tpu.memory_space<vmem>>, vector<1x32x128xbf16>
    %22 = vector.shape_cast %21 : vector<1x32x128xbf16> to vector<32x128xbf16>
    %cst_18 = arith.constant dense<0.000000e+00> : vector<32x32xf32>
    %23 = tpu.matmul %22, %11, %cst_18 {dimension_numbers = #tpu.dot_dimension_numbers<[1], [0], [0], [1], [0, 0, 1, 1], [], []>} : vector<32x128xbf16>, vector<128x32xbf16>, vector<32x32xf32> -> vector<32x32xf32>
    %24 = arith.truncf %23 : vector<32x32xf32> to vector<32x32xbf16>
    %c1_19 = arith.constant 1 : index
    %c0_20 = arith.constant 0 : index
    %c0_21 = arith.constant 0 : index
    %25 = vector.load %arg4[%c1_19, %c0_20, %c0_21] : memref<9x32x64xbf16, #tpu.memory_space<vmem>>, vector<1x32x64xbf16>
    %26 = vector.shape_cast %25 : vector<1x32x64xbf16> to vector<32x64xbf16>
    %cst_22 = arith.constant dense<0.000000e+00> : vector<32x64xf32>
    %27 = tpu.matmul %24, %26, %cst_22 {dimension_numbers = #tpu.dot_dimension_numbers<[1], [0], [0], [1], [0, 0, 1, 1], [], []>} : vector<32x32xbf16>, vector<32x64xbf16>, vector<32x64xf32> -> vector<32x64xf32>
    %28 = arith.addf %20, %27 : vector<32x64xf32>
    %c2 = arith.constant 2 : index
    %c0_23 = arith.constant 0 : index
    %c0_24 = arith.constant 0 : index
    %29 = vector.load %arg3[%c2, %c0_23, %c0_24] : memref<9x32x128xbf16, #tpu.memory_space<vmem>>, vector<1x32x128xbf16>
    %30 = vector.shape_cast %29 : vector<1x32x128xbf16> to vector<32x128xbf16>
    %cst_25 = arith.constant dense<0.000000e+00> : vector<32x32xf32>
    %31 = tpu.matmul %30, %11, %cst_25 {dimension_numbers = #tpu.dot_dimension_numbers<[1], [0], [0], [1], [0, 0, 1, 1], [], []>} : vector<32x128xbf16>, vector<128x32xbf16>, vector<32x32xf32> -> vector<32x32xf32>
    %32 = arith.truncf %31 : vector<32x32xf32> to vector<32x32xbf16>
    %c2_26 = arith.constant 2 : index
    %c0_27 = arith.constant 0 : index
    %c0_28 = arith.constant 0 : index
    %33 = vector.load %arg4[%c2_26, %c0_27, %c0_28] : memref<9x32x64xbf16, #tpu.memory_space<vmem>>, vector<1x32x64xbf16>
    %34 = vector.shape_cast %33 : vector<1x32x64xbf16> to vector<32x64xbf16>
    %cst_29 = arith.constant dense<0.000000e+00> : vector<32x64xf32>
    %35 = tpu.matmul %32, %34, %cst_29 {dimension_numbers = #tpu.dot_dimension_numbers<[1], [0], [0], [1], [0, 0, 1, 1], [], []>} : vector<32x32xbf16>, vector<32x64xbf16>, vector<32x64xf32> -> vector<32x64xf32>
    %36 = arith.addf %28, %35 : vector<32x64xf32>
    %c3 = arith.constant 3 : index
    %c0_30 = arith.constant 0 : index
    %c0_31 = arith.constant 0 : index
    %37 = vector.load %arg3[%c3, %c0_30, %c0_31] : memref<9x32x128xbf16, #tpu.memory_space<vmem>>, vector<1x32x128xbf16>
    %38 = vector.shape_cast %37 : vector<1x32x128xbf16> to vector<32x128xbf16>
    %cst_32 = arith.constant dense<0.000000e+00> : vector<32x32xf32>
    %39 = tpu.matmul %38, %11, %cst_32 {dimension_numbers = #tpu.dot_dimension_numbers<[1], [0], [0], [1], [0, 0, 1, 1], [], []>} : vector<32x128xbf16>, vector<128x32xbf16>, vector<32x32xf32> -> vector<32x32xf32>
    %40 = arith.truncf %39 : vector<32x32xf32> to vector<32x32xbf16>
    %c3_33 = arith.constant 3 : index
    %c0_34 = arith.constant 0 : index
    %c0_35 = arith.constant 0 : index
    %41 = vector.load %arg4[%c3_33, %c0_34, %c0_35] : memref<9x32x64xbf16, #tpu.memory_space<vmem>>, vector<1x32x64xbf16>
    %42 = vector.shape_cast %41 : vector<1x32x64xbf16> to vector<32x64xbf16>
    %cst_36 = arith.constant dense<0.000000e+00> : vector<32x64xf32>
    %43 = tpu.matmul %40, %42, %cst_36 {dimension_numbers = #tpu.dot_dimension_numbers<[1], [0], [0], [1], [0, 0, 1, 1], [], []>} : vector<32x32xbf16>, vector<32x64xbf16>, vector<32x64xf32> -> vector<32x64xf32>
    %44 = arith.addf %36, %43 : vector<32x64xf32>
    %c4 = arith.constant 4 : index
    %c0_37 = arith.constant 0 : index
    %c0_38 = arith.constant 0 : index
    %45 = vector.load %arg3[%c4, %c0_37, %c0_38] : memref<9x32x128xbf16, #tpu.memory_space<vmem>>, vector<1x32x128xbf16>
    %46 = vector.shape_cast %45 : vector<1x32x128xbf16> to vector<32x128xbf16>
    %cst_39 = arith.constant dense<0.000000e+00> : vector<32x32xf32>
    %47 = tpu.matmul %46, %11, %cst_39 {dimension_numbers = #tpu.dot_dimension_numbers<[1], [0], [0], [1], [0, 0, 1, 1], [], []>} : vector<32x128xbf16>, vector<128x32xbf16>, vector<32x32xf32> -> vector<32x32xf32>
    %48 = arith.truncf %47 : vector<32x32xf32> to vector<32x32xbf16>
    %c4_40 = arith.constant 4 : index
    %c0_41 = arith.constant 0 : index
    %c0_42 = arith.constant 0 : index
    %49 = vector.load %arg4[%c4_40, %c0_41, %c0_42] : memref<9x32x64xbf16, #tpu.memory_space<vmem>>, vector<1x32x64xbf16>
    %50 = vector.shape_cast %49 : vector<1x32x64xbf16> to vector<32x64xbf16>
    %cst_43 = arith.constant dense<0.000000e+00> : vector<32x64xf32>
    %51 = tpu.matmul %48, %50, %cst_43 {dimension_numbers = #tpu.dot_dimension_numbers<[1], [0], [0], [1], [0, 0, 1, 1], [], []>} : vector<32x32xbf16>, vector<32x64xbf16>, vector<32x64xf32> -> vector<32x64xf32>
    %52 = arith.addf %44, %51 : vector<32x64xf32>
    %c5 = arith.constant 5 : index
    %c0_44 = arith.constant 0 : index
    %c0_45 = arith.constant 0 : index
    %53 = vector.load %arg3[%c5, %c0_44, %c0_45] : memref<9x32x128xbf16, #tpu.memory_space<vmem>>, vector<1x32x128xbf16>
    %54 = vector.shape_cast %53 : vector<1x32x128xbf16> to vector<32x128xbf16>
    %cst_46 = arith.constant dense<0.000000e+00> : vector<32x32xf32>
    %55 = tpu.matmul %54, %11, %cst_46 {dimension_numbers = #tpu.dot_dimension_numbers<[1], [0], [0], [1], [0, 0, 1, 1], [], []>} : vector<32x128xbf16>, vector<128x32xbf16>, vector<32x32xf32> -> vector<32x32xf32>
    %56 = arith.truncf %55 : vector<32x32xf32> to vector<32x32xbf16>
    %c5_47 = arith.constant 5 : index
    %c0_48 = arith.constant 0 : index
    %c0_49 = arith.constant 0 : index
    %57 = vector.load %arg4[%c5_47, %c0_48, %c0_49] : memref<9x32x64xbf16, #tpu.memory_space<vmem>>, vector<1x32x64xbf16>
    %58 = vector.shape_cast %57 : vector<1x32x64xbf16> to vector<32x64xbf16>
    %cst_50 = arith.constant dense<0.000000e+00> : vector<32x64xf32>
    %59 = tpu.matmul %56, %58, %cst_50 {dimension_numbers = #tpu.dot_dimension_numbers<[1], [0], [0], [1], [0, 0, 1, 1], [], []>} : vector<32x32xbf16>, vector<32x64xbf16>, vector<32x64xf32> -> vector<32x64xf32>
    %60 = arith.addf %52, %59 : vector<32x64xf32>
    %c6 = arith.constant 6 : index
    %c0_51 = arith.constant 0 : index
    %c0_52 = arith.constant 0 : index
    %61 = vector.load %arg3[%c6, %c0_51, %c0_52] : memref<9x32x128xbf16, #tpu.memory_space<vmem>>, vector<1x32x128xbf16>
    %62 = vector.shape_cast %61 : vector<1x32x128xbf16> to vector<32x128xbf16>
    %cst_53 = arith.constant dense<0.000000e+00> : vector<32x32xf32>
    %63 = tpu.matmul %62, %11, %cst_53 {dimension_numbers = #tpu.dot_dimension_numbers<[1], [0], [0], [1], [0, 0, 1, 1], [], []>} : vector<32x128xbf16>, vector<128x32xbf16>, vector<32x32xf32> -> vector<32x32xf32>
    %64 = arith.truncf %63 : vector<32x32xf32> to vector<32x32xbf16>
    %c6_54 = arith.constant 6 : index
    %c0_55 = arith.constant 0 : index
    %c0_56 = arith.constant 0 : index
    %65 = vector.load %arg4[%c6_54, %c0_55, %c0_56] : memref<9x32x64xbf16, #tpu.memory_space<vmem>>, vector<1x32x64xbf16>
    %66 = vector.shape_cast %65 : vector<1x32x64xbf16> to vector<32x64xbf16>
    %cst_57 = arith.constant dense<0.000000e+00> : vector<32x64xf32>
    %67 = tpu.matmul %64, %66, %cst_57 {dimension_numbers = #tpu.dot_dimension_numbers<[1], [0], [0], [1], [0, 0, 1, 1], [], []>} : vector<32x32xbf16>, vector<32x64xbf16>, vector<32x64xf32> -> vector<32x64xf32>
    %68 = arith.addf %60, %67 : vector<32x64xf32>
    %c7 = arith.constant 7 : index
    %c0_58 = arith.constant 0 : index
    %c0_59 = arith.constant 0 : index
    %69 = vector.load %arg3[%c7, %c0_58, %c0_59] : memref<9x32x128xbf16, #tpu.memory_space<vmem>>, vector<1x32x128xbf16>
    %70 = vector.shape_cast %69 : vector<1x32x128xbf16> to vector<32x128xbf16>
    %cst_60 = arith.constant dense<0.000000e+00> : vector<32x32xf32>
    %71 = tpu.matmul %70, %11, %cst_60 {dimension_numbers = #tpu.dot_dimension_numbers<[1], [0], [0], [1], [0, 0, 1, 1], [], []>} : vector<32x128xbf16>, vector<128x32xbf16>, vector<32x32xf32> -> vector<32x32xf32>
    %72 = arith.truncf %71 : vector<32x32xf32> to vector<32x32xbf16>
    %c7_61 = arith.constant 7 : index
    %c0_62 = arith.constant 0 : index
    %c0_63 = arith.constant 0 : index
    %73 = vector.load %arg4[%c7_61, %c0_62, %c0_63] : memref<9x32x64xbf16, #tpu.memory_space<vmem>>, vector<1x32x64xbf16>
    %74 = vector.shape_cast %73 : vector<1x32x64xbf16> to vector<32x64xbf16>
    %cst_64 = arith.constant dense<0.000000e+00> : vector<32x64xf32>
    %75 = tpu.matmul %72, %74, %cst_64 {dimension_numbers = #tpu.dot_dimension_numbers<[1], [0], [0], [1], [0, 0, 1, 1], [], []>} : vector<32x32xbf16>, vector<32x64xbf16>, vector<32x64xf32> -> vector<32x64xf32>
    %76 = arith.addf %68, %75 : vector<32x64xf32>
    %c8 = arith.constant 8 : index
    %c0_65 = arith.constant 0 : index
    %c0_66 = arith.constant 0 : index
    %77 = vector.load %arg3[%c8, %c0_65, %c0_66] : memref<9x32x128xbf16, #tpu.memory_space<vmem>>, vector<1x32x128xbf16>
    %78 = vector.shape_cast %77 : vector<1x32x128xbf16> to vector<32x128xbf16>
    %cst_67 = arith.constant dense<0.000000e+00> : vector<32x32xf32>
    %79 = tpu.matmul %78, %11, %cst_67 {dimension_numbers = #tpu.dot_dimension_numbers<[1], [0], [0], [1], [0, 0, 1, 1], [], []>} : vector<32x128xbf16>, vector<128x32xbf16>, vector<32x32xf32> -> vector<32x32xf32>
    %80 = arith.truncf %79 : vector<32x32xf32> to vector<32x32xbf16>
    %c8_68 = arith.constant 8 : index
    %c0_69 = arith.constant 0 : index
    %c0_70 = arith.constant 0 : index
    %81 = vector.load %arg4[%c8_68, %c0_69, %c0_70] : memref<9x32x64xbf16, #tpu.memory_space<vmem>>, vector<1x32x64xbf16>
    %82 = vector.shape_cast %81 : vector<1x32x64xbf16> to vector<32x64xbf16>
    %cst_71 = arith.constant dense<0.000000e+00> : vector<32x64xf32>
    %83 = tpu.matmul %80, %82, %cst_71 {dimension_numbers = #tpu.dot_dimension_numbers<[1], [0], [0], [1], [0, 0, 1, 1], [], []>} : vector<32x32xbf16>, vector<32x64xbf16>, vector<32x64xf32> -> vector<32x64xf32>
    %84 = arith.addf %76, %83 : vector<32x64xf32>
    %cst_72 = arith.constant dense<0.000000e+00> : vector<64xf32>
    %85 = vector.multi_reduction <add>, %84, %cst_72 [0] : vector<32x64xf32> to vector<64xf32>
    %86 = vector.shape_cast %85 : vector<64xf32> to vector<1x64xf32>
    %cst_73 = arith.constant 3.200000e+01 : f32
    %87 = vector.broadcast %cst_73 : f32 to vector<1x64xf32>
    %88 = arith.divf %86, %87 : vector<1x64xf32>
    %89 = vector.broadcast %88 : vector<1x64xf32> to vector<32x64xf32>
    %90 = arith.subf %84, %89 : vector<32x64xf32>
    %91 = arith.mulf %90, %90 : vector<32x64xf32>
    %cst_74 = arith.constant dense<0.000000e+00> : vector<64xf32>
    %92 = vector.multi_reduction <add>, %91, %cst_74 [0] : vector<32x64xf32> to vector<64xf32>
    %93 = vector.shape_cast %92 : vector<64xf32> to vector<1x64xf32>
    %cst_75 = arith.constant 3.200000e+01 : f32
    %94 = vector.broadcast %cst_75 : f32 to vector<1x64xf32>
    %95 = arith.divf %93, %94 : vector<1x64xf32>
    %96 = vector.broadcast %88 : vector<1x64xf32> to vector<32x64xf32>
    %97 = arith.subf %84, %96 : vector<32x64xf32>
    %cst_76 = arith.constant 9.99999974E-6 : f32
    %98 = vector.broadcast %cst_76 : f32 to vector<1x64xf32>
    %99 = arith.addf %95, %98 : vector<1x64xf32>
    %100 = math.rsqrt %99 : vector<1x64xf32>
    %101 = vector.broadcast %100 : vector<1x64xf32> to vector<32x64xf32>
    %102 = arith.mulf %97, %101 : vector<32x64xf32>
    %cst_77 = arith.constant 0.000000e+00 : f32
    %103 = vector.broadcast %cst_77 : f32 to vector<32x64xf32>
    %104 = arith.cmpf ogt, %102, %103 : vector<32x64xf32>
    %cst_78 = arith.constant 2.000000e-01 : f32
    %105 = vector.broadcast %cst_78 : f32 to vector<32x64xf32>
    %106 = arith.mulf %105, %102 : vector<32x64xf32>
    %107 = arith.select %104, %102, %106 : vector<32x64xi1>, vector<32x64xf32>
    %108 = arith.truncf %107 : vector<32x64xf32> to vector<32x64xbf16>
    %cst_79 = arith.constant 0.000000e+00 : f32
    %109 = vector.broadcast %cst_79 : f32 to vector<8x128xf32>
    %c0_80 = arith.constant 0 : index
    %c0_81 = arith.constant 0 : index
    %c0_82 = arith.constant 0 : index
    %110 = vector.load %arg5[%c0_80, %c0_81, %c0_82] : memref<9x8x32xbf16, #tpu.memory_space<vmem>>, vector<1x8x32xbf16>
    %111 = vector.shape_cast %110 : vector<1x8x32xbf16> to vector<8x32xbf16>
    %cst_83 = arith.constant dense<0.000000e+00> : vector<8x64xf32>
    %112 = tpu.matmul %111, %108, %cst_83 {dimension_numbers = #tpu.dot_dimension_numbers<[1], [0], [0], [1], [0, 0, 1, 1], [], []>} : vector<8x32xbf16>, vector<32x64xbf16>, vector<8x64xf32> -> vector<8x64xf32>
    %113 = arith.truncf %112 : vector<8x64xf32> to vector<8x64xbf16>
    %c0_84 = arith.constant 0 : index
    %c0_85 = arith.constant 0 : index
    %c0_86 = arith.constant 0 : index
    %114 = vector.load %arg6[%c0_84, %c0_85, %c0_86] : memref<9x64x128xbf16, #tpu.memory_space<vmem>>, vector<1x64x128xbf16>
    %115 = vector.shape_cast %114 : vector<1x64x128xbf16> to vector<64x128xbf16>
    %cst_87 = arith.constant dense<0.000000e+00> : vector<8x128xf32>
    %116 = tpu.matmul %113, %115, %cst_87 {dimension_numbers = #tpu.dot_dimension_numbers<[1], [0], [0], [1], [0, 0, 1, 1], [], []>} : vector<8x64xbf16>, vector<64x128xbf16>, vector<8x128xf32> -> vector<8x128xf32>
    %117 = arith.addf %109, %116 : vector<8x128xf32>
    %c1_88 = arith.constant 1 : index
    %c0_89 = arith.constant 0 : index
    %c0_90 = arith.constant 0 : index
    %118 = vector.load %arg5[%c1_88, %c0_89, %c0_90] : memref<9x8x32xbf16, #tpu.memory_space<vmem>>, vector<1x8x32xbf16>
    %119 = vector.shape_cast %118 : vector<1x8x32xbf16> to vector<8x32xbf16>
    %cst_91 = arith.constant dense<0.000000e+00> : vector<8x64xf32>
    %120 = tpu.matmul %119, %108, %cst_91 {dimension_numbers = #tpu.dot_dimension_numbers<[1], [0], [0], [1], [0, 0, 1, 1], [], []>} : vector<8x32xbf16>, vector<32x64xbf16>, vector<8x64xf32> -> vector<8x64xf32>
    %121 = arith.truncf %120 : vector<8x64xf32> to vector<8x64xbf16>
    %c1_92 = arith.constant 1 : index
    %c0_93 = arith.constant 0 : index
    %c0_94 = arith.constant 0 : index
    %122 = vector.load %arg6[%c1_92, %c0_93, %c0_94] : memref<9x64x128xbf16, #tpu.memory_space<vmem>>, vector<1x64x128xbf16>
    %123 = vector.shape_cast %122 : vector<1x64x128xbf16> to vector<64x128xbf16>
    %cst_95 = arith.constant dense<0.000000e+00> : vector<8x128xf32>
    %124 = tpu.matmul %121, %123, %cst_95 {dimension_numbers = #tpu.dot_dimension_numbers<[1], [0], [0], [1], [0, 0, 1, 1], [], []>} : vector<8x64xbf16>, vector<64x128xbf16>, vector<8x128xf32> -> vector<8x128xf32>
    %125 = arith.addf %117, %124 : vector<8x128xf32>
    %c2_96 = arith.constant 2 : index
    %c0_97 = arith.constant 0 : index
    %c0_98 = arith.constant 0 : index
    %126 = vector.load %arg5[%c2_96, %c0_97, %c0_98] : memref<9x8x32xbf16, #tpu.memory_space<vmem>>, vector<1x8x32xbf16>
    %127 = vector.shape_cast %126 : vector<1x8x32xbf16> to vector<8x32xbf16>
    %cst_99 = arith.constant dense<0.000000e+00> : vector<8x64xf32>
    %128 = tpu.matmul %127, %108, %cst_99 {dimension_numbers = #tpu.dot_dimension_numbers<[1], [0], [0], [1], [0, 0, 1, 1], [], []>} : vector<8x32xbf16>, vector<32x64xbf16>, vector<8x64xf32> -> vector<8x64xf32>
    %129 = arith.truncf %128 : vector<8x64xf32> to vector<8x64xbf16>
    %c2_100 = arith.constant 2 : index
    %c0_101 = arith.constant 0 : index
    %c0_102 = arith.constant 0 : index
    %130 = vector.load %arg6[%c2_100, %c0_101, %c0_102] : memref<9x64x128xbf16, #tpu.memory_space<vmem>>, vector<1x64x128xbf16>
    %131 = vector.shape_cast %130 : vector<1x64x128xbf16> to vector<64x128xbf16>
    %cst_103 = arith.constant dense<0.000000e+00> : vector<8x128xf32>
    %132 = tpu.matmul %129, %131, %cst_103 {dimension_numbers = #tpu.dot_dimension_numbers<[1], [0], [0], [1], [0, 0, 1, 1], [], []>} : vector<8x64xbf16>, vector<64x128xbf16>, vector<8x128xf32> -> vector<8x128xf32>
    %133 = arith.addf %125, %132 : vector<8x128xf32>
    %c3_104 = arith.constant 3 : index
    %c0_105 = arith.constant 0 : index
    %c0_106 = arith.constant 0 : index
    %134 = vector.load %arg5[%c3_104, %c0_105, %c0_106] : memref<9x8x32xbf16, #tpu.memory_space<vmem>>, vector<1x8x32xbf16>
    %135 = vector.shape_cast %134 : vector<1x8x32xbf16> to vector<8x32xbf16>
    %cst_107 = arith.constant dense<0.000000e+00> : vector<8x64xf32>
    %136 = tpu.matmul %135, %108, %cst_107 {dimension_numbers = #tpu.dot_dimension_numbers<[1], [0], [0], [1], [0, 0, 1, 1], [], []>} : vector<8x32xbf16>, vector<32x64xbf16>, vector<8x64xf32> -> vector<8x64xf32>
    %137 = arith.truncf %136 : vector<8x64xf32> to vector<8x64xbf16>
    %c3_108 = arith.constant 3 : index
    %c0_109 = arith.constant 0 : index
    %c0_110 = arith.constant 0 : index
    %138 = vector.load %arg6[%c3_108, %c0_109, %c0_110] : memref<9x64x128xbf16, #tpu.memory_space<vmem>>, vector<1x64x128xbf16>
    %139 = vector.shape_cast %138 : vector<1x64x128xbf16> to vector<64x128xbf16>
    %cst_111 = arith.constant dense<0.000000e+00> : vector<8x128xf32>
    %140 = tpu.matmul %137, %139, %cst_111 {dimension_numbers = #tpu.dot_dimension_numbers<[1], [0], [0], [1], [0, 0, 1, 1], [], []>} : vector<8x64xbf16>, vector<64x128xbf16>, vector<8x128xf32> -> vector<8x128xf32>
    %141 = arith.addf %133, %140 : vector<8x128xf32>
    %c4_112 = arith.constant 4 : index
    %c0_113 = arith.constant 0 : index
    %c0_114 = arith.constant 0 : index
    %142 = vector.load %arg5[%c4_112, %c0_113, %c0_114] : memref<9x8x32xbf16, #tpu.memory_space<vmem>>, vector<1x8x32xbf16>
    %143 = vector.shape_cast %142 : vector<1x8x32xbf16> to vector<8x32xbf16>
    %cst_115 = arith.constant dense<0.000000e+00> : vector<8x64xf32>
    %144 = tpu.matmul %143, %108, %cst_115 {dimension_numbers = #tpu.dot_dimension_numbers<[1], [0], [0], [1], [0, 0, 1, 1], [], []>} : vector<8x32xbf16>, vector<32x64xbf16>, vector<8x64xf32> -> vector<8x64xf32>
    %145 = arith.truncf %144 : vector<8x64xf32> to vector<8x64xbf16>
    %c4_116 = arith.constant 4 : index
    %c0_117 = arith.constant 0 : index
    %c0_118 = arith.constant 0 : index
    %146 = vector.load %arg6[%c4_116, %c0_117, %c0_118] : memref<9x64x128xbf16, #tpu.memory_space<vmem>>, vector<1x64x128xbf16>
    %147 = vector.shape_cast %146 : vector<1x64x128xbf16> to vector<64x128xbf16>
    %cst_119 = arith.constant dense<0.000000e+00> : vector<8x128xf32>
    %148 = tpu.matmul %145, %147, %cst_119 {dimension_numbers = #tpu.dot_dimension_numbers<[1], [0], [0], [1], [0, 0, 1, 1], [], []>} : vector<8x64xbf16>, vector<64x128xbf16>, vector<8x128xf32> -> vector<8x128xf32>
    %149 = arith.addf %141, %148 : vector<8x128xf32>
    %c5_120 = arith.constant 5 : index
    %c0_121 = arith.constant 0 : index
    %c0_122 = arith.constant 0 : index
    %150 = vector.load %arg5[%c5_120, %c0_121, %c0_122] : memref<9x8x32xbf16, #tpu.memory_space<vmem>>, vector<1x8x32xbf16>
    %151 = vector.shape_cast %150 : vector<1x8x32xbf16> to vector<8x32xbf16>
    %cst_123 = arith.constant dense<0.000000e+00> : vector<8x64xf32>
    %152 = tpu.matmul %151, %108, %cst_123 {dimension_numbers = #tpu.dot_dimension_numbers<[1], [0], [0], [1], [0, 0, 1, 1], [], []>} : vector<8x32xbf16>, vector<32x64xbf16>, vector<8x64xf32> -> vector<8x64xf32>
    %153 = arith.truncf %152 : vector<8x64xf32> to vector<8x64xbf16>
    %c5_124 = arith.constant 5 : index
    %c0_125 = arith.constant 0 : index
    %c0_126 = arith.constant 0 : index
    %154 = vector.load %arg6[%c5_124, %c0_125, %c0_126] : memref<9x64x128xbf16, #tpu.memory_space<vmem>>, vector<1x64x128xbf16>
    %155 = vector.shape_cast %154 : vector<1x64x128xbf16> to vector<64x128xbf16>
    %cst_127 = arith.constant dense<0.000000e+00> : vector<8x128xf32>
    %156 = tpu.matmul %153, %155, %cst_127 {dimension_numbers = #tpu.dot_dimension_numbers<[1], [0], [0], [1], [0, 0, 1, 1], [], []>} : vector<8x64xbf16>, vector<64x128xbf16>, vector<8x128xf32> -> vector<8x128xf32>
    %157 = arith.addf %149, %156 : vector<8x128xf32>
    %c6_128 = arith.constant 6 : index
    %c0_129 = arith.constant 0 : index
    %c0_130 = arith.constant 0 : index
    %158 = vector.load %arg5[%c6_128, %c0_129, %c0_130] : memref<9x8x32xbf16, #tpu.memory_space<vmem>>, vector<1x8x32xbf16>
    %159 = vector.shape_cast %158 : vector<1x8x32xbf16> to vector<8x32xbf16>
    %cst_131 = arith.constant dense<0.000000e+00> : vector<8x64xf32>
    %160 = tpu.matmul %159, %108, %cst_131 {dimension_numbers = #tpu.dot_dimension_numbers<[1], [0], [0], [1], [0, 0, 1, 1], [], []>} : vector<8x32xbf16>, vector<32x64xbf16>, vector<8x64xf32> -> vector<8x64xf32>
    %161 = arith.truncf %160 : vector<8x64xf32> to vector<8x64xbf16>
    %c6_132 = arith.constant 6 : index
    %c0_133 = arith.constant 0 : index
    %c0_134 = arith.constant 0 : index
    %162 = vector.load %arg6[%c6_132, %c0_133, %c0_134] : memref<9x64x128xbf16, #tpu.memory_space<vmem>>, vector<1x64x128xbf16>
    %163 = vector.shape_cast %162 : vector<1x64x128xbf16> to vector<64x128xbf16>
    %cst_135 = arith.constant dense<0.000000e+00> : vector<8x128xf32>
    %164 = tpu.matmul %161, %163, %cst_135 {dimension_numbers = #tpu.dot_dimension_numbers<[1], [0], [0], [1], [0, 0, 1, 1], [], []>} : vector<8x64xbf16>, vector<64x128xbf16>, vector<8x128xf32> -> vector<8x128xf32>
    %165 = arith.addf %157, %164 : vector<8x128xf32>
    %c7_136 = arith.constant 7 : index
    %c0_137 = arith.constant 0 : index
    %c0_138 = arith.constant 0 : index
    %166 = vector.load %arg5[%c7_136, %c0_137, %c0_138] : memref<9x8x32xbf16, #tpu.memory_space<vmem>>, vector<1x8x32xbf16>
    %167 = vector.shape_cast %166 : vector<1x8x32xbf16> to vector<8x32xbf16>
    %cst_139 = arith.constant dense<0.000000e+00> : vector<8x64xf32>
    %168 = tpu.matmul %167, %108, %cst_139 {dimension_numbers = #tpu.dot_dimension_numbers<[1], [0], [0], [1], [0, 0, 1, 1], [], []>} : vector<8x32xbf16>, vector<32x64xbf16>, vector<8x64xf32> -> vector<8x64xf32>
    %169 = arith.truncf %168 : vector<8x64xf32> to vector<8x64xbf16>
    %c7_140 = arith.constant 7 : index
    %c0_141 = arith.constant 0 : index
    %c0_142 = arith.constant 0 : index
    %170 = vector.load %arg6[%c7_140, %c0_141, %c0_142] : memref<9x64x128xbf16, #tpu.memory_space<vmem>>, vector<1x64x128xbf16>
    %171 = vector.shape_cast %170 : vector<1x64x128xbf16> to vector<64x128xbf16>
    %cst_143 = arith.constant dense<0.000000e+00> : vector<8x128xf32>
    %172 = tpu.matmul %169, %171, %cst_143 {dimension_numbers = #tpu.dot_dimension_numbers<[1], [0], [0], [1], [0, 0, 1, 1], [], []>} : vector<8x64xbf16>, vector<64x128xbf16>, vector<8x128xf32> -> vector<8x128xf32>
    %173 = arith.addf %165, %172 : vector<8x128xf32>
    %c8_144 = arith.constant 8 : index
    %c0_145 = arith.constant 0 : index
    %c0_146 = arith.constant 0 : index
    %174 = vector.load %arg5[%c8_144, %c0_145, %c0_146] : memref<9x8x32xbf16, #tpu.memory_space<vmem>>, vector<1x8x32xbf16>
    %175 = vector.shape_cast %174 : vector<1x8x32xbf16> to vector<8x32xbf16>
    %cst_147 = arith.constant dense<0.000000e+00> : vector<8x64xf32>
    %176 = tpu.matmul %175, %108, %cst_147 {dimension_numbers = #tpu.dot_dimension_numbers<[1], [0], [0], [1], [0, 0, 1, 1], [], []>} : vector<8x32xbf16>, vector<32x64xbf16>, vector<8x64xf32> -> vector<8x64xf32>
    %177 = arith.truncf %176 : vector<8x64xf32> to vector<8x64xbf16>
    %c8_148 = arith.constant 8 : index
    %c0_149 = arith.constant 0 : index
    %c0_150 = arith.constant 0 : index
    %178 = vector.load %arg6[%c8_148, %c0_149, %c0_150] : memref<9x64x128xbf16, #tpu.memory_space<vmem>>, vector<1x64x128xbf16>
    %179 = vector.shape_cast %178 : vector<1x64x128xbf16> to vector<64x128xbf16>
    %cst_151 = arith.constant dense<0.000000e+00> : vector<8x128xf32>
    %180 = tpu.matmul %177, %179, %cst_151 {dimension_numbers = #tpu.dot_dimension_numbers<[1], [0], [0], [1], [0, 0, 1, 1], [], []>} : vector<8x64xbf16>, vector<64x128xbf16>, vector<8x128xf32> -> vector<8x128xf32>
    %181 = arith.addf %173, %180 : vector<8x128xf32>
    %cst_152 = arith.constant dense<0.000000e+00> : vector<128xf32>
    %182 = vector.multi_reduction <add>, %181, %cst_152 [0] : vector<8x128xf32> to vector<128xf32>
    %183 = vector.shape_cast %182 : vector<128xf32> to vector<1x128xf32>
    %cst_153 = arith.constant 8.000000e+00 : f32
    %184 = vector.broadcast %cst_153 : f32 to vector<1x128xf32>
    %185 = arith.divf %183, %184 : vector<1x128xf32>
    %186 = vector.broadcast %185 : vector<1x128xf32> to vector<8x128xf32>
    %187 = arith.subf %181, %186 : vector<8x128xf32>
    %188 = arith.mulf %187, %187 : vector<8x128xf32>
    %cst_154 = arith.constant dense<0.000000e+00> : vector<128xf32>
    %189 = vector.multi_reduction <add>, %188, %cst_154 [0] : vector<8x128xf32> to vector<128xf32>
    %190 = vector.shape_cast %189 : vector<128xf32> to vector<1x128xf32>
    %cst_155 = arith.constant 8.000000e+00 : f32
    %191 = vector.broadcast %cst_155 : f32 to vector<1x128xf32>
    %192 = arith.divf %190, %191 : vector<1x128xf32>
    %193 = vector.broadcast %185 : vector<1x128xf32> to vector<8x128xf32>
    %194 = arith.subf %181, %193 : vector<8x128xf32>
    %cst_156 = arith.constant 9.99999974E-6 : f32
    %195 = vector.broadcast %cst_156 : f32 to vector<1x128xf32>
    %196 = arith.addf %192, %195 : vector<1x128xf32>
    %197 = math.rsqrt %196 : vector<1x128xf32>
    %198 = vector.broadcast %197 : vector<1x128xf32> to vector<8x128xf32>
    %199 = arith.mulf %194, %198 : vector<8x128xf32>
    %cst_157 = arith.constant 0.000000e+00 : f32
    %200 = vector.broadcast %cst_157 : f32 to vector<8x128xf32>
    %201 = arith.cmpf ogt, %199, %200 : vector<8x128xf32>
    %cst_158 = arith.constant 2.000000e-01 : f32
    %202 = vector.broadcast %cst_158 : f32 to vector<8x128xf32>
    %203 = arith.mulf %202, %199 : vector<8x128xf32>
    %204 = arith.select %201, %199, %203 : vector<8x128xi1>, vector<8x128xf32>
    %205 = arith.truncf %204 : vector<8x128xf32> to vector<8x128xbf16>
    %cst_159 = arith.constant 0.000000e+00 : f32
    %206 = vector.broadcast %cst_159 : f32 to vector<2x256xf32>
    %c0_160 = arith.constant 0 : index
    %c0_161 = arith.constant 0 : index
    %c0_162 = arith.constant 0 : index
    %207 = vector.load %arg7[%c0_160, %c0_161, %c0_162] : memref<4x2x8xbf16, #tpu.memory_space<vmem>>, vector<1x2x8xbf16>
    %208 = vector.shape_cast %207 : vector<1x2x8xbf16> to vector<2x8xbf16>
    %cst_163 = arith.constant dense<0.000000e+00> : vector<2x128xf32>
    %209 = tpu.matmul %208, %205, %cst_163 {dimension_numbers = #tpu.dot_dimension_numbers<[1], [0], [0], [1], [0, 0, 1, 1], [], []>} : vector<2x8xbf16>, vector<8x128xbf16>, vector<2x128xf32> -> vector<2x128xf32>
    %210 = arith.truncf %209 : vector<2x128xf32> to vector<2x128xbf16>
    %c0_164 = arith.constant 0 : index
    %c0_165 = arith.constant 0 : index
    %c0_166 = arith.constant 0 : index
    %211 = vector.load %arg8[%c0_164, %c0_165, %c0_166] : memref<4x128x256xbf16, #tpu.memory_space<vmem>>, vector<1x128x256xbf16>
    %212 = vector.shape_cast %211 : vector<1x128x256xbf16> to vector<128x256xbf16>
    %cst_167 = arith.constant dense<0.000000e+00> : vector<2x256xf32>
    %213 = tpu.matmul %210, %212, %cst_167 {dimension_numbers = #tpu.dot_dimension_numbers<[1], [0], [0], [1], [0, 0, 1, 1], [], []>} : vector<2x128xbf16>, vector<128x256xbf16>, vector<2x256xf32> -> vector<2x256xf32>
    %214 = arith.addf %206, %213 : vector<2x256xf32>
    %c1_168 = arith.constant 1 : index
    %c0_169 = arith.constant 0 : index
    %c0_170 = arith.constant 0 : index
    %215 = vector.load %arg7[%c1_168, %c0_169, %c0_170] : memref<4x2x8xbf16, #tpu.memory_space<vmem>>, vector<1x2x8xbf16>
    %216 = vector.shape_cast %215 : vector<1x2x8xbf16> to vector<2x8xbf16>
    %cst_171 = arith.constant dense<0.000000e+00> : vector<2x128xf32>
    %217 = tpu.matmul %216, %205, %cst_171 {dimension_numbers = #tpu.dot_dimension_numbers<[1], [0], [0], [1], [0, 0, 1, 1], [], []>} : vector<2x8xbf16>, vector<8x128xbf16>, vector<2x128xf32> -> vector<2x128xf32>
    %218 = arith.truncf %217 : vector<2x128xf32> to vector<2x128xbf16>
    %c1_172 = arith.constant 1 : index
    %c0_173 = arith.constant 0 : index
    %c0_174 = arith.constant 0 : index
    %219 = vector.load %arg8[%c1_172, %c0_173, %c0_174] : memref<4x128x256xbf16, #tpu.memory_space<vmem>>, vector<1x128x256xbf16>
    %220 = vector.shape_cast %219 : vector<1x128x256xbf16> to vector<128x256xbf16>
    %cst_175 = arith.constant dense<0.000000e+00> : vector<2x256xf32>
    %221 = tpu.matmul %218, %220, %cst_175 {dimension_numbers = #tpu.dot_dimension_numbers<[1], [0], [0], [1], [0, 0, 1, 1], [], []>} : vector<2x128xbf16>, vector<128x256xbf16>, vector<2x256xf32> -> vector<2x256xf32>
    %222 = arith.addf %214, %221 : vector<2x256xf32>
    %c2_176 = arith.constant 2 : index
    %c0_177 = arith.constant 0 : index
    %c0_178 = arith.constant 0 : index
    %223 = vector.load %arg7[%c2_176, %c0_177, %c0_178] : memref<4x2x8xbf16, #tpu.memory_space<vmem>>, vector<1x2x8xbf16>
    %224 = vector.shape_cast %223 : vector<1x2x8xbf16> to vector<2x8xbf16>
    %cst_179 = arith.constant dense<0.000000e+00> : vector<2x128xf32>
    %225 = tpu.matmul %224, %205, %cst_179 {dimension_numbers = #tpu.dot_dimension_numbers<[1], [0], [0], [1], [0, 0, 1, 1], [], []>} : vector<2x8xbf16>, vector<8x128xbf16>, vector<2x128xf32> -> vector<2x128xf32>
    %226 = arith.truncf %225 : vector<2x128xf32> to vector<2x128xbf16>
    %c2_180 = arith.constant 2 : index
    %c0_181 = arith.constant 0 : index
    %c0_182 = arith.constant 0 : index
    %227 = vector.load %arg8[%c2_180, %c0_181, %c0_182] : memref<4x128x256xbf16, #tpu.memory_space<vmem>>, vector<1x128x256xbf16>
    %228 = vector.shape_cast %227 : vector<1x128x256xbf16> to vector<128x256xbf16>
    %cst_183 = arith.constant dense<0.000000e+00> : vector<2x256xf32>
    %229 = tpu.matmul %226, %228, %cst_183 {dimension_numbers = #tpu.dot_dimension_numbers<[1], [0], [0], [1], [0, 0, 1, 1], [], []>} : vector<2x128xbf16>, vector<128x256xbf16>, vector<2x256xf32> -> vector<2x256xf32>
    %230 = arith.addf %222, %229 : vector<2x256xf32>
    %c3_184 = arith.constant 3 : index
    %c0_185 = arith.constant 0 : index
    %c0_186 = arith.constant 0 : index
    %231 = vector.load %arg7[%c3_184, %c0_185, %c0_186] : memref<4x2x8xbf16, #tpu.memory_space<vmem>>, vector<1x2x8xbf16>
    %232 = vector.shape_cast %231 : vector<1x2x8xbf16> to vector<2x8xbf16>
    %cst_187 = arith.constant dense<0.000000e+00> : vector<2x128xf32>
    %233 = tpu.matmul %232, %205, %cst_187 {dimension_numbers = #tpu.dot_dimension_numbers<[1], [0], [0], [1], [0, 0, 1, 1], [], []>} : vector<2x8xbf16>, vector<8x128xbf16>, vector<2x128xf32> -> vector<2x128xf32>
    %234 = arith.truncf %233 : vector<2x128xf32> to vector<2x128xbf16>
    %c3_188 = arith.constant 3 : index
    %c0_189 = arith.constant 0 : index
    %c0_190 = arith.constant 0 : index
    %235 = vector.load %arg8[%c3_188, %c0_189, %c0_190] : memref<4x128x256xbf16, #tpu.memory_space<vmem>>, vector<1x128x256xbf16>
    %236 = vector.shape_cast %235 : vector<1x128x256xbf16> to vector<128x256xbf16>
    %cst_191 = arith.constant dense<0.000000e+00> : vector<2x256xf32>
    %237 = tpu.matmul %234, %236, %cst_191 {dimension_numbers = #tpu.dot_dimension_numbers<[1], [0], [0], [1], [0, 0, 1, 1], [], []>} : vector<2x128xbf16>, vector<128x256xbf16>, vector<2x256xf32> -> vector<2x256xf32>
    %238 = arith.addf %230, %237 : vector<2x256xf32>
    %cst_192 = arith.constant dense<0.000000e+00> : vector<256xf32>
    %239 = vector.multi_reduction <add>, %238, %cst_192 [0] : vector<2x256xf32> to vector<256xf32>
    %240 = vector.shape_cast %239 : vector<256xf32> to vector<1x256xf32>
    %cst_193 = arith.constant 2.000000e+00 : f32
    %241 = vector.broadcast %cst_193 : f32 to vector<1x256xf32>
    %242 = arith.divf %240, %241 : vector<1x256xf32>
    %243 = vector.broadcast %242 : vector<1x256xf32> to vector<2x256xf32>
    %244 = arith.subf %238, %243 : vector<2x256xf32>
    %245 = arith.mulf %244, %244 : vector<2x256xf32>
    %cst_194 = arith.constant dense<0.000000e+00> : vector<256xf32>
    %246 = vector.multi_reduction <add>, %245, %cst_194 [0] : vector<2x256xf32> to vector<256xf32>
    %247 = vector.shape_cast %246 : vector<256xf32> to vector<1x256xf32>
    %cst_195 = arith.constant 2.000000e+00 : f32
    %248 = vector.broadcast %cst_195 : f32 to vector<1x256xf32>
    %249 = arith.divf %247, %248 : vector<1x256xf32>
    %250 = vector.broadcast %242 : vector<1x256xf32> to vector<2x256xf32>
    %251 = arith.subf %238, %250 : vector<2x256xf32>
    %cst_196 = arith.constant 9.99999974E-6 : f32
    %252 = vector.broadcast %cst_196 : f32 to vector<1x256xf32>
    %253 = arith.addf %249, %252 : vector<1x256xf32>
    %254 = math.rsqrt %253 : vector<1x256xf32>
    %255 = vector.broadcast %254 : vector<1x256xf32> to vector<2x256xf32>
    %256 = arith.mulf %251, %255 : vector<2x256xf32>
    %cst_197 = arith.constant 0.000000e+00 : f32
    %257 = vector.broadcast %cst_197 : f32 to vector<2x256xf32>
    %258 = arith.cmpf ogt, %256, %257 : vector<2x256xf32>
    %cst_198 = arith.constant 2.000000e-01 : f32
    %259 = vector.broadcast %cst_198 : f32 to vector<2x256xf32>
    %260 = arith.mulf %259, %256 : vector<2x256xf32>
    %261 = arith.select %258, %256, %260 : vector<2x256xi1>, vector<2x256xf32>
    %262 = arith.truncf %261 : vector<2x256xf32> to vector<2x256xbf16>
    %cst_199 = arith.constant 0.000000e+00 : f32
    %263 = vector.broadcast %cst_199 : f32 to vector<2x512xf32>
    %c0_200 = arith.constant 0 : index
    %c0_201 = arith.constant 0 : index
    %c0_202 = arith.constant 0 : index
    %264 = vector.load %arg9[%c0_200, %c0_201, %c0_202] : memref<1x256x512xbf16, #tpu.memory_space<vmem>>, vector<1x256x512xbf16>
    %265 = vector.shape_cast %264 : vector<1x256x512xbf16> to vector<256x512xbf16>
    %cst_203 = arith.constant dense<0.000000e+00> : vector<2x512xf32>
    %266 = tpu.matmul %262, %265, %cst_203 {dimension_numbers = #tpu.dot_dimension_numbers<[1], [0], [0], [1], [0, 0, 1, 1], [], []>} : vector<2x256xbf16>, vector<256x512xbf16>, vector<2x512xf32> -> vector<2x512xf32>
    %267 = arith.addf %263, %266 : vector<2x512xf32>
    %cst_204 = arith.constant dense<0.000000e+00> : vector<512xf32>
    %268 = vector.multi_reduction <add>, %267, %cst_204 [0] : vector<2x512xf32> to vector<512xf32>
    %269 = vector.shape_cast %268 : vector<512xf32> to vector<1x512xf32>
    %cst_205 = arith.constant 2.000000e+00 : f32
    %270 = vector.broadcast %cst_205 : f32 to vector<1x512xf32>
    %271 = arith.divf %269, %270 : vector<1x512xf32>
    %272 = vector.broadcast %271 : vector<1x512xf32> to vector<2x512xf32>
    %273 = arith.subf %267, %272 : vector<2x512xf32>
    %274 = arith.mulf %273, %273 : vector<2x512xf32>
    %cst_206 = arith.constant dense<0.000000e+00> : vector<512xf32>
    %275 = vector.multi_reduction <add>, %274, %cst_206 [0] : vector<2x512xf32> to vector<512xf32>
    %276 = vector.shape_cast %275 : vector<512xf32> to vector<1x512xf32>
    %cst_207 = arith.constant 2.000000e+00 : f32
    %277 = vector.broadcast %cst_207 : f32 to vector<1x512xf32>
    %278 = arith.divf %276, %277 : vector<1x512xf32>
    %279 = vector.broadcast %271 : vector<1x512xf32> to vector<2x512xf32>
    %280 = arith.subf %267, %279 : vector<2x512xf32>
    %cst_208 = arith.constant 9.99999974E-6 : f32
    %281 = vector.broadcast %cst_208 : f32 to vector<1x512xf32>
    %282 = arith.addf %278, %281 : vector<1x512xf32>
    %283 = math.rsqrt %282 : vector<1x512xf32>
    %284 = vector.broadcast %283 : vector<1x512xf32> to vector<2x512xf32>
    %285 = arith.mulf %280, %284 : vector<2x512xf32>
    %cst_209 = arith.constant 0.000000e+00 : f32
    %286 = vector.broadcast %cst_209 : f32 to vector<2x512xf32>
    %287 = arith.cmpf ogt, %285, %286 : vector<2x512xf32>
    %cst_210 = arith.constant 2.000000e-01 : f32
    %288 = vector.broadcast %cst_210 : f32 to vector<2x512xf32>
    %289 = arith.mulf %288, %285 : vector<2x512xf32>
    %290 = arith.select %287, %285, %289 : vector<2x512xi1>, vector<2x512xf32>
    %c0_211 = arith.constant 0 : index
    %c0_212 = arith.constant 0 : index
    %291 = vector.load %arg10[%c0_211, %c0_212] : memref<512x128xbf16, #tpu.memory_space<vmem>>, vector<512x128xbf16>
    %c0_213 = arith.constant 0 : index
    %c0_214 = arith.constant 0 : index
    %292 = vector.load %arg11[%c0_213, %c0_214] : memref<1x128xf32, #tpu.memory_space<vmem>>, vector<1x128xf32>
    %293 = arith.truncf %290 : vector<2x512xf32> to vector<2x512xbf16>
    %cst_215 = arith.constant dense<0.000000e+00> : vector<2x128xf32>
    %294 = tpu.matmul %293, %291, %cst_215 {dimension_numbers = #tpu.dot_dimension_numbers<[1], [0], [0], [1], [0, 0, 1, 1], [], []>} : vector<2x512xbf16>, vector<512x128xbf16>, vector<2x128xf32> -> vector<2x128xf32>
    %295 = vector.broadcast %292 : vector<1x128xf32> to vector<2x128xf32>
    %296 = arith.addf %294, %295 : vector<2x128xf32>
    %c0_216 = arith.constant 0 : index
    %c0_217 = arith.constant 0 : index
    %297 = vector.load %arg12[%c0_216, %c0_217] : memref<2x128xf32, #tpu.memory_space<vmem>>, vector<2x128xf32>
    tpu.vector_store %arg12[%c0_216, %c0_217], %296 {strides = array<i32>} : memref<2x128xf32, #tpu.memory_space<vmem>>, vector<2x128xf32>,
    return
  }
}

</mosaic_0001>

<llo_original>
// kernel: _forward.1
$region0: #{_forward.1}
  #allocation0 [shape = 'u32[]', space=smem, size = 0x4, offset = 0x4, fixed_abs, tag = 'smem constant byte address 0x4 - core index']
  #allocation1 [shape = 'u32[144,128]{1,0:T(1,128)}', space=vmem, size = 0x12000, scoped, tag = 'internal scratch']
  %s0 = inlined_call_operand.vmem [shape: f32[128,9], index: 0, kind: input, shape index: {}]
  %s1 = inlined_call_operand.hbm [shape: f32[9,32], index: 1, kind: input, shape index: {}]
  %s2 = inlined_call_operand.vmem [shape: f32[1,32], index: 2, kind: input, shape index: {}]
  %s3 = inlined_call_operand.vmem [shape: bf16[9,32,128], index: 3, kind: input, shape index: {}]
  %s4 = inlined_call_operand.hbm [shape: bf16[9,32,64], index: 4, kind: input, shape index: {}]
  %s5 = inlined_call_operand.vmem [shape: bf16[9,8,32], index: 5, kind: input, shape index: {}]
  %s6 = inlined_call_operand.hbm [shape: bf16[9,64,128], index: 6, kind: input, shape index: {}]
  %s7 = inlined_call_operand.vmem [shape: bf16[4,2,8], index: 7, kind: input, shape index: {}]
  %s8 = inlined_call_operand.vmem [shape: bf16[4,128,256], index: 8, kind: input, shape index: {}]
  %s9 = inlined_call_operand.hbm [shape: bf16[1,256,512], index: 9, kind: input, shape index: {}]
  %s10 = inlined_call_operand.hbm [shape: bf16[512,128], index: 10, kind: input, shape index: {}]
  %s11 = inlined_call_operand.vmem [shape: f32[1,128], index: 11, kind: input, shape index: {}]
  %s12 = inlined_call_operand.vmem [shape: f32[2,128], index: 12, kind: output, shape index: {}]
  %s13 = sld [smem:[#allocation0]]
  $region78: #{_forward.1} parent=0
    _
  %s15 = ssub.s32 1, %s13
  %s16 = scalar_select 0, %s15, %s13
  $region1: #{_forward.1} parent=0
    #allocation2 [shape = 'u8[8192]{0}', space=vmem, size = 0x2000, scoped, tag = 'input window, operand 1, single buffered']
    #allocation3 [shape = 's32[1]{0}', space=sflag, size = 0x4, scoped, tag = 'scoped memory for _forward.1']
    #allocation4 [shape = 'u8[73728]{0}', space=vmem, size = 0x12000, scoped, tag = 'input window, operand 4, single buffered']
    #allocation5 [shape = 's32[1]{0}', space=sflag, size = 0x4, scoped, tag = 'scoped memory for _forward.1']
    #allocation6 [shape = 'u8[147456]{0}', space=vmem, size = 0x24000, scoped, tag = 'input window, operand 6, single buffered']
    #allocation7 [shape = 'u8[262144]{0}', space=vmem, size = 0x40000, scoped, tag = 'input window, operand 9, single buffered']
    #allocation8 [shape = 's32[1]{0}', space=sflag, size = 0x4, scoped, tag = 'scoped memory for _forward.1']
    #allocation9 [shape = 'u8[131072]{0}', space=vmem, size = 0x20000, scoped, tag = 'input window, operand 10, single buffered']
    %17 = vsyncpa [#allocation3], 0
    %18 = vsyncpa [#allocation5], 0
    %19 = vsyncpa [#allocation8], 0
    // Predicated region
    $region2: #{_forward.1} parent=1 // pred_check
      _
    $region3: #{_forward.1} parent=1 // pred_check_branch
      %21 = sbr.rel (0) target = $region5
    $region4: #{_forward.1} parent=1 // pred_region
      _
    $region5: #{_forward.1} parent=1 // pred_fallthru
      _
    // Predicated region
    $region6: #{_forward.1} parent=1 // pred_check
      _
    $region7: #{_forward.1} parent=1 // pred_check_branch
      %23 = sbr.rel (0) target = $region9
    $region8: #{_forward.1} parent=1 // pred_region
      %s25 = ssub.s32 256, 256
      %26 = vsyncadd [#allocation3], %s25
      %s27 = sshll.u32 [#allocation2], 4
      %s28 = int_to_ptr.vmem [resolvable:$true] %s27
      %33 = dma.hbm_to_vmem [thread:$0]  %s1, 256, %s28, [#allocation3], 128, 128, 8
    $region9: #{_forward.1} parent=1 // pred_fallthru
      _
    // Predicated region
    $region10: #{_forward.1} parent=1 // pred_check
      _
    $region11: #{_forward.1} parent=1 // pred_check_branch
      %35 = sbr.rel (0) target = $region13
    $region12: #{_forward.1} parent=1 // pred_region
      _
    $region13: #{_forward.1} parent=1 // pred_fallthru
      _
    // Predicated region
    $region14: #{_forward.1} parent=1 // pred_check
      _
    $region15: #{_forward.1} parent=1 // pred_check_branch
      %37 = sbr.rel (0) target = $region17
    $region16: #{_forward.1} parent=1 // pred_region
      _
    $region17: #{_forward.1} parent=1 // pred_fallthru
      _
    // Predicated region
    $region18: #{_forward.1} parent=1 // pred_check
      _
    $region19: #{_forward.1} parent=1 // pred_check_branch
      %39 = sbr.rel (0) target = $region21
    $region20: #{_forward.1} parent=1 // pred_region
      %s41 = ssub.s32 2304, 2304
      %42 = vsyncadd [#allocation5], %s41
      %s43 = sshll.u32 [#allocation4], 4
      %s44 = int_to_ptr.vmem [resolvable:$true] %s43
      %49 = dma.hbm_to_vmem [thread:$0]  %s4, 2304, %s44, [#allocation5], 64, 64, 4
    $region21: #{_forward.1} parent=1 // pred_fallthru
      _
    // Predicated region
    $region22: #{_forward.1} parent=1 // pred_check
      _
    $region23: #{_forward.1} parent=1 // pred_check_branch
      %51 = sbr.rel (0) target = $region25
    $region24: #{_forward.1} parent=1 // pred_region
      _
    $region25: #{_forward.1} parent=1 // pred_fallthru
      _
    // Predicated region
    $region26: #{_forward.1} parent=1 // pred_check
      _
    $region27: #{_forward.1} parent=1 // pred_check_branch
      %53 = sbr.rel (0) target = $region29
    $region28: #{_forward.1} parent=1 // pred_region
      %s55 = ssub.s32 4608, 4608
      %56 = vsyncadd [#allocation5], %s55
      %s57 = sshll.u32 [#allocation6], 4
      %s58 = int_to_ptr.vmem [resolvable:$true] %s57
      %63 = dma.hbm_to_vmem [thread:$0]  %s6, 4608, %s58, [#allocation5], 64, 64, 4
    $region29: #{_forward.1} parent=1 // pred_fallthru
      _
    // Predicated region
    $region30: #{_forward.1} parent=1 // pred_check
      _
    $region31: #{_forward.1} parent=1 // pred_check_branch
      %65 = sbr.rel (0) target = $region33
    $region32: #{_forward.1} parent=1 // pred_region
      _
    $region33: #{_forward.1} parent=1 // pred_fallthru
      _
    // Predicated region
    $region34: #{_forward.1} parent=1 // pred_check
      _
    $region35: #{_forward.1} parent=1 // pred_check_branch
      %67 = sbr.rel (0) target = $region37
    $region36: #{_forward.1} parent=1 // pred_region
      _
    $region37: #{_forward.1} parent=1 // pred_fallthru
      _
    // Predicated region
    $region38: #{_forward.1} parent=1 // pred_check
      _
    $region39: #{_forward.1} parent=1 // pred_check_branch
      %69 = sbr.rel (0) target = $region41
    $region40: #{_forward.1} parent=1 // pred_region
      %s71 = ssub.s32 8192, 8192
      %72 = vsyncadd [#allocation8], %s71
      %s73 = sshll.u32 [#allocation7], 4
      %s74 = int_to_ptr.vmem [resolvable:$true] %s73
      %79 = dma.hbm_to_vmem [thread:$0]  %s9, 8192, %s74, [#allocation8], 256, 256, 16
    $region41: #{_forward.1} parent=1 // pred_fallthru
      _
    // Predicated region
    $region42: #{_forward.1} parent=1 // pred_check
      _
    $region43: #{_forward.1} parent=1 // pred_check_branch
      %81 = sbr.rel (0) target = $region45
    $region44: #{_forward.1} parent=1 // pred_region
      %s83 = ssub.s32 4096, 4096
      %84 = vsyncadd [#allocation8], %s83
      %s85 = sshll.u32 [#allocation9], 4
      %s86 = int_to_ptr.vmem [resolvable:$true] %s85
      %91 = dma.hbm_to_vmem [thread:$0]  %s10, 4096, %s86, [#allocation8], 64, 64, 4
    $region45: #{_forward.1} parent=1 // pred_fallthru
      _
    // Predicated region
    $region46: #{_forward.1} parent=1 // pred_check
      _
    $region47: #{_forward.1} parent=1 // pred_check_branch
      %93 = sbr.rel (0) target = $region49
    $region48: #{_forward.1} parent=1 // pred_region
      _
    $region49: #{_forward.1} parent=1 // pred_fallthru
      _
    // Predicated region
    $region50: #{_forward.1} parent=1 // pred_check
      _
    $region51: #{_forward.1} parent=1 // pred_check_branch
      %95 = sbr.rel (0) target = $region53
    $region52: #{_forward.1} parent=1 // pred_region
      %96 = dma.done [#allocation3], 256
    $region53: #{_forward.1} parent=1 // pred_fallthru
      _
    // Predicated region
    $region54: #{_forward.1} parent=1 // pred_check
      _
    $region55: #{_forward.1} parent=1 // pred_check_branch
      %98 = sbr.rel (0) target = $region57
    $region56: #{_forward.1} parent=1 // pred_region
      %99 = dma.done [#allocation5], 2304
    $region57: #{_forward.1} parent=1 // pred_fallthru
      _
    // Predicated region
    $region58: #{_forward.1} parent=1 // pred_check
      _
    $region59: #{_forward.1} parent=1 // pred_check_branch
      %101 = sbr.rel (0) target = $region61
    $region60: #{_forward.1} parent=1 // pred_region
      %102 = dma.done [#allocation5], 4608
    $region61: #{_forward.1} parent=1 // pred_fallthru
      _
    // Predicated region
    $region62: #{_forward.1} parent=1 // pred_check
      _
    $region63: #{_forward.1} parent=1 // pred_check_branch
      %104 = sbr.rel (0) target = $region65
    $region64: #{_forward.1} parent=1 // pred_region
      %105 = dma.done [#allocation8], 8192
    $region65: #{_forward.1} parent=1 // pred_fallthru
      _
    // Predicated region
    $region66: #{_forward.1} parent=1 // pred_check
      _
    $region67: #{_forward.1} parent=1 // pred_check_branch
      %107 = sbr.rel (0) target = $region69
    $region68: #{_forward.1} parent=1 // pred_region
      %108 = dma.done [#allocation8], 4096
    $region69: #{_forward.1} parent=1 // pred_fallthru
      _
    %v110 = vld [vmem:[%s0] sm:$0xff]
    %v111 = vld [vmem:[%s0 + $0x8] sm:$0xff]
    %v112 = vld [vmem:[%s0 + $0x10] sm:$0xff]
    %v113 = vld [vmem:[%s0 + $0x18] sm:$0xff]
    %v114 = vld [vmem:[%s0 + $0x20] sm:$0xff]
    %v115 = vld [vmem:[%s0 + $0x28] sm:$0xff]
    %v116 = vld [vmem:[%s0 + $0x30] sm:$0xff]
    %v117 = vld [vmem:[%s0 + $0x38] sm:$0xff]
    %v118 = vld [vmem:[%s0 + $0x40] sm:$0xff]
    %v119 = vld [vmem:[%s0 + $0x48] sm:$0xff]
    %v120 = vld [vmem:[%s0 + $0x50] sm:$0xff]
    %v121 = vld [vmem:[%s0 + $0x58] sm:$0xff]
    %v122 = vld [vmem:[%s0 + $0x60] sm:$0xff]
    %v123 = vld [vmem:[%s0 + $0x68] sm:$0xff]
    %v124 = vld [vmem:[%s0 + $0x70] sm:$0xff]
    %v125 = vld [vmem:[%s0 + $0x78] sm:$0xff]
    %v126 = vld [vmem:[#allocation2] sm:$0xff]
    %v127 = vld [vmem:[#allocation2 + $0x8] sm:$0x1]
    %v128 = vld [vmem:[%s2] sm:$0x1]
    %v130 = vlaneseq
    %v131 = vshrl.u32 %v130, 7
    %v132 = vsub.s32 0, %v131
    %v133 = vrot.slane %v128, %v132
    %vm135 = vcmask 72704
    %v137 = vsel %vm135, %v110, 0
    %v140 = vsel %vm135, %v111, 0
    %v143 = vsel %vm135, %v112, 0
    %v146 = vsel %vm135, %v113, 0
    %v149 = vsel %vm135, %v114, 0
    %v152 = vsel %vm135, %v115, 0
    %v155 = vsel %vm135, %v116, 0
    %v158 = vsel %vm135, %v117, 0
    %v161 = vsel %vm135, %v118, 0
    %v164 = vsel %vm135, %v119, 0
    %v167 = vsel %vm135, %v120, 0
    %v170 = vsel %vm135, %v121, 0
    %v173 = vsel %vm135, %v122, 0
    %v176 = vsel %vm135, %v123, 0
    %v179 = vsel %vm135, %v124, 0
    %v182 = vsel %vm135, %v125, 0
    %vm184 = vcmask 1040384
    %v186 = vsel %vm184, %v127, 0
    %188 = vmatprep.subr.mxu0 0.0
    %189 = vmatpush1.msra.mxu0 0.0
    %190 = vmatprep.subr.mxu0 0.0
    %191 = vmatpush1.msra.mxu0 0.0
    %192 = vmatprep.subr.mxu0 0.0
    %193 = vmatpush1.msra.mxu0 0.0
    %194 = vmatprep.subr.mxu0 0.0
    %195 = vmatpush1.msra.mxu0 0.0
    %196 = vmatprep.subr.mxu0 0.0
    %197 = vmatpush1.msra.mxu0 0.0
    %198 = vmatprep.subr.mxu0 0.0
    %199 = vmatpush1.msra.mxu0 0.0
    %200 = vmatprep.subr.mxu0 0.0
    %201 = vmatpush1.msra.mxu0 0.0
    %202 = vmatprep.subr.mxu0 0.0
    %203 = vmatpush1.msra.mxu0 0.0
    %204 = vmatprep.subr.mxu0 0.0
    %205 = vmatpush1.msra.mxu0 0.0
    %206 = vmatprep.subr.mxu0 0.0
    %207 = vmatpush1.msra.mxu0 0.0
    %208 = vmatprep.subr.mxu0 0.0
    %209 = vmatpush1.msra.mxu0 0.0
    %210 = vmatprep.subr.mxu0 0.0
    %211 = vmatpush1.msra.mxu0 0.0
    %212 = vmatprep.subr.mxu0 0.0
    %213 = vmatpush1.msra.mxu0 0.0
    %214 = vmatprep.subr.mxu0 0.0
    %215 = vmatpush1.msra.mxu0 0.0
    %216 = vmatprep.subr.mxu0 0.0
    %217 = vmatpush1.msra.mxu0 %v186
    %218 = vmatprep.subr.mxu0 0.0
    %219 = vmatpush1.msra.mxu0 %v126
    %220 = vmatprep.subr.mxu0 0.0
    %221 = vmatpush2.msra.mxu0 0.0
    %222 = vmatprep.subr.mxu0 0.0
    %223 = vmatpush2.msra.mxu0 0.0
    %224 = vmatprep.subr.mxu0 0.0
    %225 = vmatpush2.msra.mxu0 0.0
    %226 = vmatprep.subr.mxu0 0.0
    %227 = vmatpush2.msra.mxu0 0.0
    %228 = vmatprep.subr.mxu0 0.0
    %229 = vmatpush2.msra.mxu0 0.0
    %230 = vmatprep.subr.mxu0 0.0
    %231 = vmatpush2.msra.mxu0 0.0
    %232 = vmatprep.subr.mxu0 0.0
    %233 = vmatpush2.msra.mxu0 0.0
    %234 = vmatprep.subr.mxu0 0.0
    %235 = vmatpush2.msra.mxu0 0.0
    %236 = vmatprep.subr.mxu0 0.0
    %237 = vmatpush2.msra.mxu0 0.0
    %238 = vmatprep.subr.mxu0 0.0
    %239 = vmatpush2.msra.mxu0 0.0
    %240 = vmatprep.subr.mxu0 0.0
    %241 = vmatpush2.msra.mxu0 0.0
    %242 = vmatprep.subr.mxu0 0.0
    %243 = vmatpush2.msra.mxu0 0.0
    %244 = vmatprep.subr.mxu0 0.0
    %245 = vmatpush2.msra.mxu0 0.0
    %246 = vmatprep.subr.mxu0 0.0
    %247 = vmatpush2.msra.mxu0 0.0
    %248 = vmatprep.subr.mxu0 0.0
    %249 = vmatpush2.msra.mxu0 0.0
    %250 = vmatprep.subr.mxu0 0.0
    %251 = vmatpush2.msra.mxu0 0.0
    %252 = vmatprep.mubr.f32.mxu0 0.0
    %253 = vmatmul.mubr.f32.gmra.mxu0 %v137
    %v254 = vpop.f32.mrf.mxu0
    %v255 = vadd.f32 %v133, %v254
    %v256 = vpop.f32.mrf.mxu0
    %257 = vmatprep.mubr.f32.mxu0 0.0
    %258 = vmatmul.mubr.f32.gmra.mxu0 %v140
    %v259 = vpop.f32.mrf.mxu0
    %v260 = vadd.f32 %v133, %v259
    %v261 = vpop.f32.mrf.mxu0
    %262 = vmatprep.mubr.f32.mxu0 0.0
    %263 = vmatmul.mubr.f32.gmra.mxu0 %v143
    %v264 = vpop.f32.mrf.mxu0
    %v265 = vadd.f32 %v133, %v264
    %v266 = vpop.f32.mrf.mxu0
    %267 = vmatprep.mubr.f32.mxu0 0.0
    %268 = vmatmul.mubr.f32.gmra.mxu0 %v146
    %v269 = vpop.f32.mrf.mxu0
    %v270 = vadd.f32 %v133, %v269
    %v271 = vpop.f32.mrf.mxu0
    %272 = vmatprep.mubr.f32.mxu0 0.0
    %273 = vmatmul.mubr.f32.gmra.mxu0 %v149
    %v274 = vpop.f32.mrf.mxu0
    %v275 = vadd.f32 %v133, %v274
    %v276 = vpop.f32.mrf.mxu0
    %277 = vmatprep.mubr.f32.mxu0 0.0
    %278 = vmatmul.mubr.f32.gmra.mxu0 %v152
    %v279 = vpop.f32.mrf.mxu0
    %v280 = vadd.f32 %v133, %v279
    %v281 = vpop.f32.mrf.mxu0
    %282 = vmatprep.mubr.f32.mxu0 0.0
    %283 = vmatmul.mubr.f32.gmra.mxu0 %v155
    %v284 = vpop.f32.mrf.mxu0
    %v285 = vadd.f32 %v133, %v284
    %v286 = vpop.f32.mrf.mxu0
    %287 = vmatprep.mubr.f32.mxu0 0.0
    %288 = vmatmul.mubr.f32.gmra.mxu0 %v158
    %v289 = vpop.f32.mrf.mxu0
    %v290 = vadd.f32 %v133, %v289
    %v291 = vpop.f32.mrf.mxu0
    %292 = vmatprep.mubr.f32.mxu0 0.0
    %293 = vmatmul.mubr.f32.gmra.mxu0 %v161
    %v294 = vpop.f32.mrf.mxu0
    %v295 = vadd.f32 %v133, %v294
    %v296 = vpop.f32.mrf.mxu0
    %297 = vmatprep.mubr.f32.mxu0 0.0
    %298 = vmatmul.mubr.f32.gmra.mxu0 %v164
    %v299 = vpop.f32.mrf.mxu0
    %v300 = vadd.f32 %v133, %v299
    %v301 = vpop.f32.mrf.mxu0
    %302 = vmatprep.mubr.f32.mxu0 0.0
    %303 = vmatmul.mubr.f32.gmra.mxu0 %v167
    %v304 = vpop.f32.mrf.mxu0
    %v305 = vadd.f32 %v133, %v304
    %v306 = vpop.f32.mrf.mxu0
    %307 = vmatprep.mubr.f32.mxu0 0.0
    %308 = vmatmul.mubr.f32.gmra.mxu0 %v170
    %v309 = vpop.f32.mrf.mxu0
    %v310 = vadd.f32 %v133, %v309
    %v311 = vpop.f32.mrf.mxu0
    %312 = vmatprep.mubr.f32.mxu0 0.0
    %313 = vmatmul.mubr.f32.gmra.mxu0 %v173
    %v314 = vpop.f32.mrf.mxu0
    %v315 = vadd.f32 %v133, %v314
    %v316 = vpop.f32.mrf.mxu0
    %317 = vmatprep.mubr.f32.mxu0 0.0
    %318 = vmatmul.mubr.f32.gmra.mxu0 %v176
    %v319 = vpop.f32.mrf.mxu0
    %v320 = vadd.f32 %v133, %v319
    %v321 = vpop.f32.mrf.mxu0
    %322 = vmatprep.mubr.f32.mxu0 0.0
    %323 = vmatmul.mubr.f32.gmra.mxu0 %v179
    %v324 = vpop.f32.mrf.mxu0
    %v325 = vadd.f32 %v133, %v324
    %v326 = vpop.f32.mrf.mxu0
    %327 = vmatprep.mubr.f32.mxu0 0.0
    %328 = vmatmul.mubr.f32.gmra.mxu0 %v182
    %v329 = vpop.f32.mrf.mxu0
    %v330 = vadd.f32 %v133, %v329
    %v331 = vpop.f32.mrf.mxu0
    %332 = vdwg.mxu0
    %vm333 = vcmp.gt.f32.partialorder %v255, 0.0
    %vm334 = vcmp.gt.f32.partialorder %v260, 0.0
    %vm335 = vcmp.gt.f32.partialorder %v265, 0.0
    %vm336 = vcmp.gt.f32.partialorder %v270, 0.0
    %vm337 = vcmp.gt.f32.partialorder %v275, 0.0
    %vm338 = vcmp.gt.f32.partialorder %v280, 0.0
    %vm339 = vcmp.gt.f32.partialorder %v285, 0.0
    %vm340 = vcmp.gt.f32.partialorder %v290, 0.0
    %vm341 = vcmp.gt.f32.partialorder %v295, 0.0
    %vm342 = vcmp.gt.f32.partialorder %v300, 0.0
    %vm343 = vcmp.gt.f32.partialorder %v305, 0.0
    %vm344 = vcmp.gt.f32.partialorder %v310, 0.0
    %vm345 = vcmp.gt.f32.partialorder %v315, 0.0
    %vm346 = vcmp.gt.f32.partialorder %v320, 0.0
    %vm347 = vcmp.gt.f32.partialorder %v325, 0.0
    %vm348 = vcmp.gt.f32.partialorder %v330, 0.0
    %v349 = vmul.f32 %v255, 0.2
    %v350 = vmul.f32 %v260, 0.2
    %v351 = vmul.f32 %v265, 0.2
    %v352 = vmul.f32 %v270, 0.2
    %v353 = vmul.f32 %v275, 0.2
    %v354 = vmul.f32 %v280, 0.2
    %v355 = vmul.f32 %v285, 0.2
    %v356 = vmul.f32 %v290, 0.2
    %v357 = vmul.f32 %v295, 0.2
    %v358 = vmul.f32 %v300, 0.2
    %v359 = vmul.f32 %v305, 0.2
    %v360 = vmul.f32 %v310, 0.2
    %v361 = vmul.f32 %v315, 0.2
    %v362 = vmul.f32 %v320, 0.2
    %v363 = vmul.f32 %v325, 0.2
    %v364 = vmul.f32 %v330, 0.2
    %v365 = vsel %vm333, %v255, %v349
    %v366 = vsel %vm334, %v260, %v350
    %v367 = vsel %vm335, %v265, %v351
    %v368 = vsel %vm336, %v270, %v352
    %v369 = vsel %vm337, %v275, %v353
    %v370 = vsel %vm338, %v280, %v354
    %v371 = vsel %vm339, %v285, %v355
    %v372 = vsel %vm340, %v290, %v356
    %v373 = vsel %vm341, %v295, %v357
    %v374 = vsel %vm342, %v300, %v358
    %v375 = vsel %vm343, %v305, %v359
    %v376 = vsel %vm344, %v310, %v360
    %v377 = vsel %vm345, %v315, %v361
    %v378 = vsel %vm346, %v320, %v362
    %v379 = vsel %vm347, %v325, %v363
    %v380 = vsel %vm348, %v330, %v364
    %v381 = vpack.c.bf16 %v366, %v365
    %v382 = vpack.c.bf16 %v368, %v367
    %v383 = vpack.c.bf16 %v370, %v369
    %v384 = vpack.c.bf16 %v372, %v371
    %v385 = vpack.c.bf16 %v374, %v373
    %v386 = vpack.c.bf16 %v376, %v375
    %v387 = vpack.c.bf16 %v378, %v377
    %v388 = vpack.c.bf16 %v380, %v379
    %v389 = vld [vmem:[%s3] sm:$0xf]
    %v390 = vld [vmem:[%s3 + $0x4] sm:$0xf]
    %v391 = vld [vmem:[%s3 + $0x8] sm:$0xf]
    %v392 = vld [vmem:[%s3 + $0xc] sm:$0xf]
    %v397 = vunpack.c.l.b16 %v389
    %v398 = vunpack.c.l.b16 %v390
    %v399 = vunpack.c.l.b16 %v391
    %v400 = vunpack.c.l.b16 %v392
    %v401 = vpack.c.b16 %v398, %v397
    %v402 = vpack.c.b16 %v400, %v399
    %405 = vmatprep.subr.bf16.mxu0 0
    %406 = vmatpush1.bf16.msra.mxu0 %v388
    %407 = vmatprep.subr.bf16.mxu0 0
    %408 = vmatpush1.bf16.msra.mxu0 %v387
    %409 = vmatprep.subr.bf16.mxu0 0
    %410 = vmatpush1.bf16.msra.mxu0 %v386
    %411 = vmatprep.subr.bf16.mxu0 0
    %412 = vmatpush1.bf16.msra.mxu0 %v385
    %413 = vmatprep.subr.bf16.mxu0 0
    %414 = vmatpush1.bf16.msra.mxu0 %v384
    %415 = vmatprep.subr.bf16.mxu0 0
    %416 = vmatpush1.bf16.msra.mxu0 %v383
    %417 = vmatprep.subr.bf16.mxu0 0
    %418 = vmatpush1.bf16.msra.mxu0 %v382
    %419 = vmatprep.subr.bf16.mxu0 0
    %420 = vmatpush1.bf16.msra.mxu0 %v381
    %421 = vmatprep.subr.bf16.mxu0 0
    %422 = vmatpush2.bf16.msra.mxu0 0
    %423 = vmatprep.subr.bf16.mxu0 0
    %424 = vmatpush2.bf16.msra.mxu0 0
    %425 = vmatprep.subr.bf16.mxu0 0
    %426 = vmatpush2.bf16.msra.mxu0 0
    %427 = vmatprep.subr.bf16.mxu0 0
    %428 = vmatpush2.bf16.msra.mxu0 0
    %429 = vmatprep.subr.bf16.mxu0 0
    %430 = vmatpush2.bf16.msra.mxu0 0
    %431 = vmatprep.subr.bf16.mxu0 0
    %432 = vmatpush2.bf16.msra.mxu0 0
    %433 = vmatprep.subr.bf16.mxu0 0
    %434 = vmatpush2.bf16.msra.mxu0 0
    %435 = vmatprep.subr.bf16.mxu0 0
    %436 = vmatpush2.bf16.msra.mxu0 0
    %437 = vmatprep.mubr.bf16.mxu0 0
    %438 = vmatmul.mubr.bf16.gmra.mxu0 %v401
    %v439 = vpop.f32.mrf.mxu0
    %v440 = vadd.f32 0.0, %v439
    %v441 = vpop.f32.mrf.mxu0
    %v442 = vpop.f32.mrf.mxu0
    %v443 = vadd.f32 0.0, %v442
    %v444 = vpop.f32.mrf.mxu0
    %445 = vmatprep.mubr.bf16.mxu0 0
    %446 = vmatmul.mubr.bf16.gmra.mxu0 %v402
    %v447 = vpop.f32.mrf.mxu0
    %v448 = vadd.f32 0.0, %v447
    %v449 = vpop.f32.mrf.mxu0
    %v450 = vpop.f32.mrf.mxu0
    %v451 = vadd.f32 0.0, %v450
    %v452 = vpop.f32.mrf.mxu0
    %453 = vdwg.mxu0
    %v454 = vpack.c.bf16 %v443, %v440
    %v455 = vpack.c.bf16 %v451, %v448
    %v456 = vld [vmem:[#allocation4] sm:$0xf]
    %v457 = vld [vmem:[#allocation4 + $0x4] sm:$0xf]
    %v458 = vld [vmem:[#allocation4 + $0x8] sm:$0xf]
    %v459 = vld [vmem:[#allocation4 + $0xc] sm:$0xf]
    %s460 = scalar_lea.vmem %s3, 16
    %v461 = vld [vmem:[%s460] sm:$0xf]
    %v462 = vld [vmem:[%s460 + $0x4] sm:$0xf]
    %v463 = vld [vmem:[%s460 + $0x8] sm:$0xf]
    %v464 = vld [vmem:[%s460 + $0xc] sm:$0xf]
    %v469 = vunpack.c.l.b16 %v461
    %v470 = vunpack.c.l.b16 %v462
    %v471 = vunpack.c.l.b16 %v463
    %v472 = vunpack.c.l.b16 %v464
    %v473 = vpack.c.b16 %v470, %v469
    %v474 = vpack.c.b16 %v472, %v471
    %477 = vmatprep.subr.bf16.mxu0 0
    %478 = vmatpush1.bf16.msra.mxu0 %v388
    %479 = vmatprep.subr.bf16.mxu0 0
    %480 = vmatpush1.bf16.msra.mxu0 %v387
    %481 = vmatprep.subr.bf16.mxu0 0
    %482 = vmatpush1.bf16.msra.mxu0 %v386
    %483 = vmatprep.subr.bf16.mxu0 0
    %484 = vmatpush1.bf16.msra.mxu0 %v385
    %485 = vmatprep.subr.bf16.mxu0 0
    %486 = vmatpush1.bf16.msra.mxu0 %v384
    %487 = vmatprep.subr.bf16.mxu0 0
    %488 = vmatpush1.bf16.msra.mxu0 %v383
    %489 = vmatprep.subr.bf16.mxu0 0
    %490 = vmatpush1.bf16.msra.mxu0 %v382
    %491 = vmatprep.subr.bf16.mxu0 0
    %492 = vmatpush1.bf16.msra.mxu0 %v381
    %493 = vmatprep.subr.bf16.mxu0 0
    %494 = vmatpush2.bf16.msra.mxu0 0
    %495 = vmatprep.subr.bf16.mxu0 0
    %496 = vmatpush2.bf16.msra.mxu0 0
    %497 = vmatprep.subr.bf16.mxu0 0
    %498 = vmatpush2.bf16.msra.mxu0 0
    %499 = vmatprep.subr.bf16.mxu0 0
    %500 = vmatpush2.bf16.msra.mxu0 0
    %501 = vmatprep.subr.bf16.mxu0 0
    %502 = vmatpush2.bf16.msra.mxu0 0
    %503 = vmatprep.subr.bf16.mxu0 0
    %504 = vmatpush2.bf16.msra.mxu0 0
    %505 = vmatprep.subr.bf16.mxu0 0
    %506 = vmatpush2.bf16.msra.mxu0 0
    %507 = vmatprep.subr.bf16.mxu0 0
    %508 = vmatpush2.bf16.msra.mxu0 0
    %509 = vmatprep.mubr.bf16.mxu0 0
    %510 = vmatmul.mubr.bf16.gmra.mxu0 %v473
    %v511 = vpop.f32.mrf.mxu0
    %v512 = vadd.f32 0.0, %v511
    %v513 = vpop.f32.mrf.mxu0
    %v514 = vpop.f32.mrf.mxu0
    %v515 = vadd.f32 0.0, %v514
    %v516 = vpop.f32.mrf.mxu0
    %517 = vmatprep.mubr.bf16.mxu0 0
    %518 = vmatmul.mubr.bf16.gmra.mxu0 %v474
    %v519 = vpop.f32.mrf.mxu0
    %v520 = vadd.f32 0.0, %v519
    %v521 = vpop.f32.mrf.mxu0
    %v522 = vpop.f32.mrf.mxu0
    %v523 = vadd.f32 0.0, %v522
    %v524 = vpop.f32.mrf.mxu0
    %525 = vdwg.mxu0
    %v526 = vpack.c.bf16 %v515, %v512
    %v527 = vpack.c.bf16 %v523, %v520
    %s528 = scalar_lea.vmem [#allocation4], 16
    %v529 = vld [vmem:[%s528] sm:$0xf]
    %v530 = vld [vmem:[%s528 + $0x4] sm:$0xf]
    %v531 = vld [vmem:[%s528 + $0x8] sm:$0xf]
    %v532 = vld [vmem:[%s528 + $0xc] sm:$0xf]
    %v537 = vunpack.c.l.b16 %v529
    %v538 = vunpack.c.l.b16 %v530
    %v539 = vunpack.c.l.b16 %v531
    %v540 = vunpack.c.l.b16 %v532
    %v541 = vpack.c.b16 %v538, %v537
    %v542 = vpack.c.b16 %v540, %v539
    %vm545 = vcmask 261120
    %v547 = vsel %vm545, %v526, 0
    %v550 = vsel %vm545, %v527, 0
    %552 = vmatprep.subr.bf16.mxu0 0
    %553 = vmatpush1.bf16.msra.mxu0 0
    %554 = vmatprep.subr.bf16.mxu0 0
    %555 = vmatpush1.bf16.msra.mxu0 0
    %556 = vmatprep.subr.bf16.mxu0 0
    %557 = vmatpush1.bf16.msra.mxu0 0
    %558 = vmatprep.subr.bf16.mxu0 0
    %559 = vmatpush1.bf16.msra.mxu0 0
    %560 = vmatprep.subr.bf16.mxu0 0
    %561 = vmatpush1.bf16.msra.mxu0 0
    %562 = vmatprep.subr.bf16.mxu0 0
    %563 = vmatpush1.bf16.msra.mxu0 0
    %564 = vmatprep.subr.bf16.mxu0 0
    %565 = vmatpush1.bf16.msra.mxu0 %v542
    %566 = vmatprep.subr.bf16.mxu0 0
    %567 = vmatpush1.bf16.msra.mxu0 %v541
    %568 = vmatprep.subr.bf16.mxu0 0
    %569 = vmatpush2.bf16.msra.mxu0 0
    %570 = vmatprep.subr.bf16.mxu0 0
    %571 = vmatpush2.bf16.msra.mxu0 0
    %572 = vmatprep.subr.bf16.mxu0 0
    %573 = vmatpush2.bf16.msra.mxu0 0
    %574 = vmatprep.subr.bf16.mxu0 0
    %575 = vmatpush2.bf16.msra.mxu0 0
    %576 = vmatprep.subr.bf16.mxu0 0
    %577 = vmatpush2.bf16.msra.mxu0 0
    %578 = vmatprep.subr.bf16.mxu0 0
    %579 = vmatpush2.bf16.msra.mxu0 0
    %580 = vmatprep.subr.bf16.mxu0 0
    %581 = vmatpush2.bf16.msra.mxu0 0
    %582 = vmatprep.subr.bf16.mxu0 0
    %583 = vmatpush2.bf16.msra.mxu0 0
    %584 = vmatprep.mubr.bf16.mxu0 0
    %585 = vmatmul.mubr.bf16.gmra.mxu0 %v547
    %v586 = vpop.f32.mrf.mxu0
    %v587 = vadd.f32 0.0, %v586
    %v588 = vpop.f32.mrf.mxu0
    %v589 = vpop.f32.mrf.mxu0
    %v590 = vadd.f32 0.0, %v589
    %v591 = vpop.f32.mrf.mxu0
    %592 = vmatprep.mubr.bf16.mxu0 0
    %593 = vmatmul.mubr.bf16.gmra.mxu0 %v550
    %v594 = vpop.f32.mrf.mxu0
    %v595 = vadd.f32 0.0, %v594
    %v596 = vpop.f32.mrf.mxu0
    %v597 = vpop.f32.mrf.mxu0
    %v598 = vadd.f32 0.0, %v597
    %v599 = vpop.f32.mrf.mxu0
    %600 = vdwg.mxu0
    %v605 = vunpack.c.l.b16 %v456
    %v606 = vunpack.c.l.b16 %v457
    %v607 = vunpack.c.l.b16 %v458
    %v608 = vunpack.c.l.b16 %v459
    %v609 = vpack.c.b16 %v606, %v605
    %v610 = vpack.c.b16 %v608, %v607
    %v614 = vsel %vm545, %v454, 0
    %v617 = vsel %vm545, %v455, 0
    %619 = vmatprep.subr.bf16.mxu0 0
    %620 = vmatpush1.bf16.msra.mxu0 0
    %621 = vmatprep.subr.bf16.mxu0 0
    %622 = vmatpush1.bf16.msra.mxu0 0
    %623 = vmatprep.subr.bf16.mxu0 0
    %624 = vmatpush1.bf16.msra.mxu0 0
    %625 = vmatprep.subr.bf16.mxu0 0
    %626 = vmatpush1.bf16.msra.mxu0 0
    %627 = vmatprep.subr.bf16.mxu0 0
    %628 = vmatpush1.bf16.msra.mxu0 0
    %629 = vmatprep.subr.bf16.mxu0 0
    %630 = vmatpush1.bf16.msra.mxu0 0
    %631 = vmatprep.subr.bf16.mxu0 0
    %632 = vmatpush1.bf16.msra.mxu0 %v610
    %633 = vmatprep.subr.bf16.mxu0 0
    %634 = vmatpush1.bf16.msra.mxu0 %v609
    %635 = vmatprep.subr.bf16.mxu0 0
    %636 = vmatpush2.bf16.msra.mxu0 0
    %637 = vmatprep.subr.bf16.mxu0 0
    %638 = vmatpush2.bf16.msra.mxu0 0
    %639 = vmatprep.subr.bf16.mxu0 0
    %640 = vmatpush2.bf16.msra.mxu0 0
    %641 = vmatprep.subr.bf16.mxu0 0
    %642 = vmatpush2.bf16.msra.mxu0 0
    %643 = vmatprep.subr.bf16.mxu0 0
    %644 = vmatpush2.bf16.msra.mxu0 0
    %645 = vmatprep.subr.bf16.mxu0 0
    %646 = vmatpush2.bf16.msra.mxu0 0
    %647 = vmatprep.subr.bf16.mxu0 0
    %648 = vmatpush2.bf16.msra.mxu0 0
    %649 = vmatprep.subr.bf16.mxu0 0
    %650 = vmatpush2.bf16.msra.mxu0 0
    %651 = vmatprep.mubr.bf16.mxu0 0
    %652 = vmatmul.mubr.bf16.gmra.mxu0 %v614
    %v653 = vpop.f32.mrf.mxu0
    %v654 = vadd.f32 %v587, %v653
    %v655 = vpop.f32.mrf.mxu0
    %v656 = vpop.f32.mrf.mxu0
    %v657 = vadd.f32 %v590, %v656
    %v658 = vpop.f32.mrf.mxu0
    %659 = vmatprep.mubr.bf16.mxu0 0
    %660 = vmatmul.mubr.bf16.gmra.mxu0 %v617
    %v661 = vpop.f32.mrf.mxu0
    %v662 = vadd.f32 %v595, %v661
    %v663 = vpop.f32.mrf.mxu0
    %v664 = vpop.f32.mrf.mxu0
    %v665 = vadd.f32 %v598, %v664
    %v666 = vpop.f32.mrf.mxu0
    %667 = vdwg.mxu0
    %s668 = scalar_lea.vmem %s3, 32
    %v669 = vld [vmem:[%s668] sm:$0xf]
    %v670 = vld [vmem:[%s668 + $0x4] sm:$0xf]
    %v671 = vld [vmem:[%s668 + $0x8] sm:$0xf]
    %v672 = vld [vmem:[%s668 + $0xc] sm:$0xf]
    %v677 = vunpack.c.l.b16 %v669
    %v678 = vunpack.c.l.b16 %v670
    %v679 = vunpack.c.l.b16 %v671
    %v680 = vunpack.c.l.b16 %v672
    %v681 = vpack.c.b16 %v678, %v677
    %v682 = vpack.c.b16 %v680, %v679
    %685 = vmatprep.subr.bf16.mxu0 0
    %686 = vmatpush1.bf16.msra.mxu0 %v388
    %687 = vmatprep.subr.bf16.mxu0 0
    %688 = vmatpush1.bf16.msra.mxu0 %v387
    %689 = vmatprep.subr.bf16.mxu0 0
    %690 = vmatpush1.bf16.msra.mxu0 %v386
    %691 = vmatprep.subr.bf16.mxu0 0
    %692 = vmatpush1.bf16.msra.mxu0 %v385
    %693 = vmatprep.subr.bf16.mxu0 0
    %694 = vmatpush1.bf16.msra.mxu0 %v384
    %695 = vmatprep.subr.bf16.mxu0 0
    %696 = vmatpush1.bf16.msra.mxu0 %v383
    %697 = vmatprep.subr.bf16.mxu0 0
    %698 = vmatpush1.bf16.msra.mxu0 %v382
    %699 = vmatprep.subr.bf16.mxu0 0
    %700 = vmatpush1.bf16.msra.mxu0 %v381
    %701 = vmatprep.subr.bf16.mxu0 0
    %702 = vmatpush2.bf16.msra.mxu0 0
    %703 = vmatprep.subr.bf16.mxu0 0
    %704 = vmatpush2.bf16.msra.mxu0 0
    %705 = vmatprep.subr.bf16.mxu0 0
    %706 = vmatpush2.bf16.msra.mxu0 0
    %707 = vmatprep.subr.bf16.mxu0 0
    %708 = vmatpush2.bf16.msra.mxu0 0
    %709 = vmatprep.subr.bf16.mxu0 0
    %710 = vmatpush2.bf16.msra.mxu0 0
    %711 = vmatprep.subr.bf16.mxu0 0
    %712 = vmatpush2.bf16.msra.mxu0 0
    %713 = vmatprep.subr.bf16.mxu0 0
    %714 = vmatpush2.bf16.msra.mxu0 0
    %715 = vmatprep.subr.bf16.mxu0 0
    %716 = vmatpush2.bf16.msra.mxu0 0
    %717 = vmatprep.mubr.bf16.mxu0 0
    %718 = vmatmul.mubr.bf16.gmra.mxu0 %v681
    %v719 = vpop.f32.mrf.mxu0
    %v720 = vadd.f32 0.0, %v719
    %v721 = vpop.f32.mrf.mxu0
    %v722 = vpop.f32.mrf.mxu0
    %v723 = vadd.f32 0.0, %v722
    %v724 = vpop.f32.mrf.mxu0
    %725 = vmatprep.mubr.bf16.mxu0 0
    %726 = vmatmul.mubr.bf16.gmra.mxu0 %v682
    %v727 = vpop.f32.mrf.mxu0
    %v728 = vadd.f32 0.0, %v727
    %v729 = vpop.f32.mrf.mxu0
    %v730 = vpop.f32.mrf.mxu0
    %v731 = vadd.f32 0.0, %v730
    %v732 = vpop.f32.mrf.mxu0
    %733 = vdwg.mxu0
    %v734 = vpack.c.bf16 %v723, %v720
    %v735 = vpack.c.bf16 %v731, %v728
    %s736 = scalar_lea.vmem [#allocation4], 32
    %v737 = vld [vmem:[%s736] sm:$0xf]
    %v738 = vld [vmem:[%s736 + $0x4] sm:$0xf]
    %v739 = vld [vmem:[%s736 + $0x8] sm:$0xf]
    %v740 = vld [vmem:[%s736 + $0xc] sm:$0xf]
    %v745 = vunpack.c.l.b16 %v737
    %v746 = vunpack.c.l.b16 %v738
    %v747 = vunpack.c.l.b16 %v739
    %v748 = vunpack.c.l.b16 %v740
    %v749 = vpack.c.b16 %v746, %v745
    %v750 = vpack.c.b16 %v748, %v747
    %v754 = vsel %vm545, %v734, 0
    %v757 = vsel %vm545, %v735, 0
    %759 = vmatprep.subr.bf16.mxu0 0
    %760 = vmatpush1.bf16.msra.mxu0 0
    %761 = vmatprep.subr.bf16.mxu0 0
    %762 = vmatpush1.bf16.msra.mxu0 0
    %763 = vmatprep.subr.bf16.mxu0 0
    %764 = vmatpush1.bf16.msra.mxu0 0
    %765 = vmatprep.subr.bf16.mxu0 0
    %766 = vmatpush1.bf16.msra.mxu0 0
    %767 = vmatprep.subr.bf16.mxu0 0
    %768 = vmatpush1.bf16.msra.mxu0 0
    %769 = vmatprep.subr.bf16.mxu0 0
    %770 = vmatpush1.bf16.msra.mxu0 0
    %771 = vmatprep.subr.bf16.mxu0 0
    %772 = vmatpush1.bf16.msra.mxu0 %v750
    %773 = vmatprep.subr.bf16.mxu0 0
    %774 = vmatpush1.bf16.msra.mxu0 %v749
    %775 = vmatprep.subr.bf16.mxu0 0
    %776 = vmatpush2.bf16.msra.mxu0 0
    %777 = vmatprep.subr.bf16.mxu0 0
    %778 = vmatpush2.bf16.msra.mxu0 0
    %779 = vmatprep.subr.bf16.mxu0 0
    %780 = vmatpush2.bf16.msra.mxu0 0
    %781 = vmatprep.subr.bf16.mxu0 0
    %782 = vmatpush2.bf16.msra.mxu0 0
    %783 = vmatprep.subr.bf16.mxu0 0
    %784 = vmatpush2.bf16.msra.mxu0 0
    %785 = vmatprep.subr.bf16.mxu0 0
    %786 = vmatpush2.bf16.msra.mxu0 0
    %787 = vmatprep.subr.bf16.mxu0 0
    %788 = vmatpush2.bf16.msra.mxu0 0
    %789 = vmatprep.subr.bf16.mxu0 0
    %790 = vmatpush2.bf16.msra.mxu0 0
    %791 = vmatprep.mubr.bf16.mxu0 0
    %792 = vmatmul.mubr.bf16.gmra.mxu0 %v754
    %v793 = vpop.f32.mrf.mxu0
    %v794 = vadd.f32 0.0, %v793
    %v795 = vpop.f32.mrf.mxu0
    %v796 = vpop.f32.mrf.mxu0
    %v797 = vadd.f32 0.0, %v796
    %v798 = vpop.f32.mrf.mxu0
    %799 = vmatprep.mubr.bf16.mxu0 0
    %800 = vmatmul.mubr.bf16.gmra.mxu0 %v757
    %v801 = vpop.f32.mrf.mxu0
    %v802 = vadd.f32 0.0, %v801
    %v803 = vpop.f32.mrf.mxu0
    %v804 = vpop.f32.mrf.mxu0
    %v805 = vadd.f32 0.0, %v804
    %v806 = vpop.f32.mrf.mxu0
    %807 = vdwg.mxu0
    %v808 = vadd.f32 %v654, %v794
    %v809 = vadd.f32 %v657, %v797
    %v810 = vadd.f32 %v662, %v802
    %v811 = vadd.f32 %v665, %v805
    %s812 = scalar_lea.vmem %s3, 48
    %v813 = vld [vmem:[%s812] sm:$0xf]
    %v814 = vld [vmem:[%s812 + $0x4] sm:$0xf]
    %v815 = vld [vmem:[%s812 + $0x8] sm:$0xf]
    %v816 = vld [vmem:[%s812 + $0xc] sm:$0xf]
    %v821 = vunpack.c.l.b16 %v813
    %v822 = vunpack.c.l.b16 %v814
    %v823 = vunpack.c.l.b16 %v815
    %v824 = vunpack.c.l.b16 %v816
    %v825 = vpack.c.b16 %v822, %v821
    %v826 = vpack.c.b16 %v824, %v823
    %829 = vmatprep.subr.bf16.mxu0 0
    %830 = vmatpush1.bf16.msra.mxu0 %v388
    %831 = vmatprep.subr.bf16.mxu0 0
    %832 = vmatpush1.bf16.msra.mxu0 %v387
    %833 = vmatprep.subr.bf16.mxu0 0
    %834 = vmatpush1.bf16.msra.mxu0 %v386
    %835 = vmatprep.subr.bf16.mxu0 0
    %836 = vmatpush1.bf16.msra.mxu0 %v385
    %837 = vmatprep.subr.bf16.mxu0 0
    %838 = vmatpush1.bf16.msra.mxu0 %v384
    %839 = vmatprep.subr.bf16.mxu0 0
    %840 = vmatpush1.bf16.msra.mxu0 %v383
    %841 = vmatprep.subr.bf16.mxu0 0
    %842 = vmatpush1.bf16.msra.mxu0 %v382
    %843 = vmatprep.subr.bf16.mxu0 0
    %844 = vmatpush1.bf16.msra.mxu0 %v381
    %845 = vmatprep.subr.bf16.mxu0 0
    %846 = vmatpush2.bf16.msra.mxu0 0
    %847 = vmatprep.subr.bf16.mxu0 0
    %848 = vmatpush2.bf16.msra.mxu0 0
    %849 = vmatprep.subr.bf16.mxu0 0
    %850 = vmatpush2.bf16.msra.mxu0 0
    %851 = vmatprep.subr.bf16.mxu0 0
    %852 = vmatpush2.bf16.msra.mxu0 0
    %853 = vmatprep.subr.bf16.mxu0 0
    %854 = vmatpush2.bf16.msra.mxu0 0
    %855 = vmatprep.subr.bf16.mxu0 0
    %856 = vmatpush2.bf16.msra.mxu0 0
    %857 = vmatprep.subr.bf16.mxu0 0
    %858 = vmatpush2.bf16.msra.mxu0 0
    %859 = vmatprep.subr.bf16.mxu0 0
    %860 = vmatpush2.bf16.msra.mxu0 0
    %861 = vmatprep.mubr.bf16.mxu0 0
    %862 = vmatmul.mubr.bf16.gmra.mxu0 %v825
    %v863 = vpop.f32.mrf.mxu0
    %v864 = vadd.f32 0.0, %v863
    %v865 = vpop.f32.mrf.mxu0
    %v866 = vpop.f32.mrf.mxu0
    %v867 = vadd.f32 0.0, %v866
    %v868 = vpop.f32.mrf.mxu0
    %869 = vmatprep.mubr.bf16.mxu0 0
    %870 = vmatmul.mubr.bf16.gmra.mxu0 %v826
    %v871 = vpop.f32.mrf.mxu0
    %v872 = vadd.f32 0.0, %v871
    %v873 = vpop.f32.mrf.mxu0
    %v874 = vpop.f32.mrf.mxu0
    %v875 = vadd.f32 0.0, %v874
    %v876 = vpop.f32.mrf.mxu0
    %877 = vdwg.mxu0
    %v878 = vpack.c.bf16 %v867, %v864
    %v879 = vpack.c.bf16 %v875, %v872
    %s880 = scalar_lea.vmem [#allocation4], 48
    %v881 = vld [vmem:[%s880] sm:$0xf]
    %v882 = vld [vmem:[%s880 + $0x4] sm:$0xf]
    %v883 = vld [vmem:[%s880 + $0x8] sm:$0xf]
    %v884 = vld [vmem:[%s880 + $0xc] sm:$0xf]
    %v889 = vunpack.c.l.b16 %v881
    %v890 = vunpack.c.l.b16 %v882
    %v891 = vunpack.c.l.b16 %v883
    %v892 = vunpack.c.l.b16 %v884
    %v893 = vpack.c.b16 %v890, %v889
    %v894 = vpack.c.b16 %v892, %v891
    %v898 = vsel %vm545, %v878, 0
    %v901 = vsel %vm545, %v879, 0
    %903 = vmatprep.subr.bf16.mxu0 0
    %904 = vmatpush1.bf16.msra.mxu0 0
    %905 = vmatprep.subr.bf16.mxu0 0
    %906 = vmatpush1.bf16.msra.mxu0 0
    %907 = vmatprep.subr.bf16.mxu0 0
    %908 = vmatpush1.bf16.msra.mxu0 0
    %909 = vmatprep.subr.bf16.mxu0 0
    %910 = vmatpush1.bf16.msra.mxu0 0
    %911 = vmatprep.subr.bf16.mxu0 0
    %912 = vmatpush1.bf16.msra.mxu0 0
    %913 = vmatprep.subr.bf16.mxu0 0
    %914 = vmatpush1.bf16.msra.mxu0 0
    %915 = vmatprep.subr.bf16.mxu0 0
    %916 = vmatpush1.bf16.msra.mxu0 %v894
    %917 = vmatprep.subr.bf16.mxu0 0
    %918 = vmatpush1.bf16.msra.mxu0 %v893
    %919 = vmatprep.subr.bf16.mxu0 0
    %920 = vmatpush2.bf16.msra.mxu0 0
    %921 = vmatprep.subr.bf16.mxu0 0
    %922 = vmatpush2.bf16.msra.mxu0 0
    %923 = vmatprep.subr.bf16.mxu0 0
    %924 = vmatpush2.bf16.msra.mxu0 0
    %925 = vmatprep.subr.bf16.mxu0 0
    %926 = vmatpush2.bf16.msra.mxu0 0
    %927 = vmatprep.subr.bf16.mxu0 0
    %928 = vmatpush2.bf16.msra.mxu0 0
    %929 = vmatprep.subr.bf16.mxu0 0
    %930 = vmatpush2.bf16.msra.mxu0 0
    %931 = vmatprep.subr.bf16.mxu0 0
    %932 = vmatpush2.bf16.msra.mxu0 0
    %933 = vmatprep.subr.bf16.mxu0 0
    %934 = vmatpush2.bf16.msra.mxu0 0
    %935 = vmatprep.mubr.bf16.mxu0 0
    %936 = vmatmul.mubr.bf16.gmra.mxu0 %v898
    %v937 = vpop.f32.mrf.mxu0
    %v938 = vadd.f32 0.0, %v937
    %v939 = vpop.f32.mrf.mxu0
    %v940 = vpop.f32.mrf.mxu0
    %v941 = vadd.f32 0.0, %v940
    %v942 = vpop.f32.mrf.mxu0
    %943 = vmatprep.mubr.bf16.mxu0 0
    %944 = vmatmul.mubr.bf16.gmra.mxu0 %v901
    %v945 = vpop.f32.mrf.mxu0
    %v946 = vadd.f32 0.0, %v945
    %v947 = vpop.f32.mrf.mxu0
    %v948 = vpop.f32.mrf.mxu0
    %v949 = vadd.f32 0.0, %v948
    %v950 = vpop.f32.mrf.mxu0
    %951 = vdwg.mxu0
    %v952 = vadd.f32 %v808, %v938
    %v953 = vadd.f32 %v809, %v941
    %v954 = vadd.f32 %v810, %v946
    %v955 = vadd.f32 %v811, %v949
    %s956 = scalar_lea.vmem %s3, 64
    %v957 = vld [vmem:[%s956] sm:$0xf]
    %v958 = vld [vmem:[%s956 + $0x4] sm:$0xf]
    %v959 = vld [vmem:[%s956 + $0x8] sm:$0xf]
    %v960 = vld [vmem:[%s956 + $0xc] sm:$0xf]
    %v965 = vunpack.c.l.b16 %v957
    %v966 = vunpack.c.l.b16 %v958
    %v967 = vunpack.c.l.b16 %v959
    %v968 = vunpack.c.l.b16 %v960
    %v969 = vpack.c.b16 %v966, %v965
    %v970 = vpack.c.b16 %v968, %v967
    %973 = vmatprep.subr.bf16.mxu0 0
    %974 = vmatpush1.bf16.msra.mxu0 %v388
    %975 = vmatprep.subr.bf16.mxu0 0
    %976 = vmatpush1.bf16.msra.mxu0 %v387
    %977 = vmatprep.subr.bf16.mxu0 0
    %978 = vmatpush1.bf16.msra.mxu0 %v386
    %979 = vmatprep.subr.bf16.mxu0 0
    %980 = vmatpush1.bf16.msra.mxu0 %v385
    %981 = vmatprep.subr.bf16.mxu0 0
    %982 = vmatpush1.bf16.msra.mxu0 %v384
    %983 = vmatprep.subr.bf16.mxu0 0
    %984 = vmatpush1.bf16.msra.mxu0 %v383
    %985 = vmatprep.subr.bf16.mxu0 0
    %986 = vmatpush1.bf16.msra.mxu0 %v382
    %987 = vmatprep.subr.bf16.mxu0 0
    %988 = vmatpush1.bf16.msra.mxu0 %v381
    %989 = vmatprep.subr.bf16.mxu0 0
    %990 = vmatpush2.bf16.msra.mxu0 0
    %991 = vmatprep.subr.bf16.mxu0 0
    %992 = vmatpush2.bf16.msra.mxu0 0
    %993 = vmatprep.subr.bf16.mxu0 0
    %994 = vmatpush2.bf16.msra.mxu0 0
    %995 = vmatprep.subr.bf16.mxu0 0
    %996 = vmatpush2.bf16.msra.mxu0 0
    %997 = vmatprep.subr.bf16.mxu0 0
    %998 = vmatpush2.bf16.msra.mxu0 0
    %999 = vmatprep.subr.bf16.mxu0 0
    %1000 = vmatpush2.bf16.msra.mxu0 0
    %1001 = vmatprep.subr.bf16.mxu0 0
    %1002 = vmatpush2.bf16.msra.mxu0 0
    %1003 = vmatprep.subr.bf16.mxu0 0
    %1004 = vmatpush2.bf16.msra.mxu0 0
    %1005 = vmatprep.mubr.bf16.mxu0 0
    %1006 = vmatmul.mubr.bf16.gmra.mxu0 %v969
    %v1007 = vpop.f32.mrf.mxu0
    %v1008 = vadd.f32 0.0, %v1007
    %v1009 = vpop.f32.mrf.mxu0
    %v1010 = vpop.f32.mrf.mxu0
    %v1011 = vadd.f32 0.0, %v1010
    %v1012 = vpop.f32.mrf.mxu0
    %1013 = vmatprep.mubr.bf16.mxu0 0
    %1014 = vmatmul.mubr.bf16.gmra.mxu0 %v970
    %v1015 = vpop.f32.mrf.mxu0
    %v1016 = vadd.f32 0.0, %v1015
    %v1017 = vpop.f32.mrf.mxu0
    %v1018 = vpop.f32.mrf.mxu0
    %v1019 = vadd.f32 0.0, %v1018
    %v1020 = vpop.f32.mrf.mxu0
    %1021 = vdwg.mxu0
    %v1022 = vpack.c.bf16 %v1011, %v1008
    %v1023 = vpack.c.bf16 %v1019, %v1016
    %s1024 = scalar_lea.vmem [#allocation4], 64
    %v1025 = vld [vmem:[%s1024] sm:$0xf]
    %v1026 = vld [vmem:[%s1024 + $0x4] sm:$0xf]
    %v1027 = vld [vmem:[%s1024 + $0x8] sm:$0xf]
    %v1028 = vld [vmem:[%s1024 + $0xc] sm:$0xf]
    %v1033 = vunpack.c.l.b16 %v1025
    %v1034 = vunpack.c.l.b16 %v1026
    %v1035 = vunpack.c.l.b16 %v1027
    %v1036 = vunpack.c.l.b16 %v1028
    %v1037 = vpack.c.b16 %v1034, %v1033
    %v1038 = vpack.c.b16 %v1036, %v1035
    %v1042 = vsel %vm545, %v1022, 0
    %v1045 = vsel %vm545, %v1023, 0
    %1047 = vmatprep.subr.bf16.mxu0 0
    %1048 = vmatpush1.bf16.msra.mxu0 0
    %1049 = vmatprep.subr.bf16.mxu0 0
    %1050 = vmatpush1.bf16.msra.mxu0 0
    %1051 = vmatprep.subr.bf16.mxu0 0
    %1052 = vmatpush1.bf16.msra.mxu0 0
    %1053 = vmatprep.subr.bf16.mxu0 0
    %1054 = vmatpush1.bf16.msra.mxu0 0
    %1055 = vmatprep.subr.bf16.mxu0 0
    %1056 = vmatpush1.bf16.msra.mxu0 0
    %1057 = vmatprep.subr.bf16.mxu0 0
    %1058 = vmatpush1.bf16.msra.mxu0 0
    %1059 = vmatprep.subr.bf16.mxu0 0
    %1060 = vmatpush1.bf16.msra.mxu0 %v1038
    %1061 = vmatprep.subr.bf16.mxu0 0
    %1062 = vmatpush1.bf16.msra.mxu0 %v1037
    %1063 = vmatprep.subr.bf16.mxu0 0
    %1064 = vmatpush2.bf16.msra.mxu0 0
    %1065 = vmatprep.subr.bf16.mxu0 0
    %1066 = vmatpush2.bf16.msra.mxu0 0
    %1067 = vmatprep.subr.bf16.mxu0 0
    %1068 = vmatpush2.bf16.msra.mxu0 0
    %1069 = vmatprep.subr.bf16.mxu0 0
    %1070 = vmatpush2.bf16.msra.mxu0 0
    %1071 = vmatprep.subr.bf16.mxu0 0
    %1072 = vmatpush2.bf16.msra.mxu0 0
    %1073 = vmatprep.subr.bf16.mxu0 0
    %1074 = vmatpush2.bf16.msra.mxu0 0
    %1075 = vmatprep.subr.bf16.mxu0 0
    %1076 = vmatpush2.bf16.msra.mxu0 0
    %1077 = vmatprep.subr.bf16.mxu0 0
    %1078 = vmatpush2.bf16.msra.mxu0 0
    %1079 = vmatprep.mubr.bf16.mxu0 0
    %1080 = vmatmul.mubr.bf16.gmra.mxu0 %v1042
    %v1081 = vpop.f32.mrf.mxu0
    %v1082 = vadd.f32 0.0, %v1081
    %v1083 = vpop.f32.mrf.mxu0
    %v1084 = vpop.f32.mrf.mxu0
    %v1085 = vadd.f32 0.0, %v1084
    %v1086 = vpop.f32.mrf.mxu0
    %1087 = vmatprep.mubr.bf16.mxu0 0
    %1088 = vmatmul.mubr.bf16.gmra.mxu0 %v1045
    %v1089 = vpop.f32.mrf.mxu0
    %v1090 = vadd.f32 0.0, %v1089
    %v1091 = vpop.f32.mrf.mxu0
    %v1092 = vpop.f32.mrf.mxu0
    %v1093 = vadd.f32 0.0, %v1092
    %v1094 = vpop.f32.mrf.mxu0
    %1095 = vdwg.mxu0
    %v1096 = vadd.f32 %v952, %v1082
    %v1097 = vadd.f32 %v953, %v1085
    %v1098 = vadd.f32 %v954, %v1090
    %v1099 = vadd.f32 %v955, %v1093
    %s1100 = scalar_lea.vmem %s3, 80
    %v1101 = vld [vmem:[%s1100] sm:$0xf]
    %v1102 = vld [vmem:[%s1100 + $0x4] sm:$0xf]
    %v1103 = vld [vmem:[%s1100 + $0x8] sm:$0xf]
    %v1104 = vld [vmem:[%s1100 + $0xc] sm:$0xf]
    %v1109 = vunpack.c.l.b16 %v1101
    %v1110 = vunpack.c.l.b16 %v1102
    %v1111 = vunpack.c.l.b16 %v1103
    %v1112 = vunpack.c.l.b16 %v1104
    %v1113 = vpack.c.b16 %v1110, %v1109
    %v1114 = vpack.c.b16 %v1112, %v1111
    %1117 = vmatprep.subr.bf16.mxu0 0
    %1118 = vmatpush1.bf16.msra.mxu0 %v388
    %1119 = vmatprep.subr.bf16.mxu0 0
    %1120 = vmatpush1.bf16.msra.mxu0 %v387
    %1121 = vmatprep.subr.bf16.mxu0 0
    %1122 = vmatpush1.bf16.msra.mxu0 %v386
    %1123 = vmatprep.subr.bf16.mxu0 0
    %1124 = vmatpush1.bf16.msra.mxu0 %v385
    %1125 = vmatprep.subr.bf16.mxu0 0
    %1126 = vmatpush1.bf16.msra.mxu0 %v384
    %1127 = vmatprep.subr.bf16.mxu0 0
    %1128 = vmatpush1.bf16.msra.mxu0 %v383
    %1129 = vmatprep.subr.bf16.mxu0 0
    %1130 = vmatpush1.bf16.msra.mxu0 %v382
    %1131 = vmatprep.subr.bf16.mxu0 0
    %1132 = vmatpush1.bf16.msra.mxu0 %v381
    %1133 = vmatprep.subr.bf16.mxu0 0
    %1134 = vmatpush2.bf16.msra.mxu0 0
    %1135 = vmatprep.subr.bf16.mxu0 0
    %1136 = vmatpush2.bf16.msra.mxu0 0
    %1137 = vmatprep.subr.bf16.mxu0 0
    %1138 = vmatpush2.bf16.msra.mxu0 0
    %1139 = vmatprep.subr.bf16.mxu0 0
    %1140 = vmatpush2.bf16.msra.mxu0 0
    %1141 = vmatprep.subr.bf16.mxu0 0
    %1142 = vmatpush2.bf16.msra.mxu0 0
    %1143 = vmatprep.subr.bf16.mxu0 0
    %1144 = vmatpush2.bf16.msra.mxu0 0
    %1145 = vmatprep.subr.bf16.mxu0 0
    %1146 = vmatpush2.bf16.msra.mxu0 0
    %1147 = vmatprep.subr.bf16.mxu0 0
    %1148 = vmatpush2.bf16.msra.mxu0 0
    %1149 = vmatprep.mubr.bf16.mxu0 0
    %1150 = vmatmul.mubr.bf16.gmra.mxu0 %v1113
    %v1151 = vpop.f32.mrf.mxu0
    %v1152 = vadd.f32 0.0, %v1151
    %v1153 = vpop.f32.mrf.mxu0
    %v1154 = vpop.f32.mrf.mxu0
    %v1155 = vadd.f32 0.0, %v1154
    %v1156 = vpop.f32.mrf.mxu0
    %1157 = vmatprep.mubr.bf16.mxu0 0
    %1158 = vmatmul.mubr.bf16.gmra.mxu0 %v1114
    %v1159 = vpop.f32.mrf.mxu0
    %v1160 = vadd.f32 0.0, %v1159
    %v1161 = vpop.f32.mrf.mxu0
    %v1162 = vpop.f32.mrf.mxu0
    %v1163 = vadd.f32 0.0, %v1162
    %v1164 = vpop.f32.mrf.mxu0
    %1165 = vdwg.mxu0
    %v1166 = vpack.c.bf16 %v1155, %v1152
    %v1167 = vpack.c.bf16 %v1163, %v1160
    %s1168 = scalar_lea.vmem [#allocation4], 80
    %v1169 = vld [vmem:[%s1168] sm:$0xf]
    %v1170 = vld [vmem:[%s1168 + $0x4] sm:$0xf]
    %v1171 = vld [vmem:[%s1168 + $0x8] sm:$0xf]
    %v1172 = vld [vmem:[%s1168 + $0xc] sm:$0xf]
    %v1177 = vunpack.c.l.b16 %v1169
    %v1178 = vunpack.c.l.b16 %v1170
    %v1179 = vunpack.c.l.b16 %v1171
    %v1180 = vunpack.c.l.b16 %v1172
    %v1181 = vpack.c.b16 %v1178, %v1177
    %v1182 = vpack.c.b16 %v1180, %v1179
    %v1186 = vsel %vm545, %v1166, 0
    %v1189 = vsel %vm545, %v1167, 0
    %1191 = vmatprep.subr.bf16.mxu0 0
    %1192 = vmatpush1.bf16.msra.mxu0 0
    %1193 = vmatprep.subr.bf16.mxu0 0
    %1194 = vmatpush1.bf16.msra.mxu0 0
    %1195 = vmatprep.subr.bf16.mxu0 0
    %1196 = vmatpush1.bf16.msra.mxu0 0
    %1197 = vmatprep.subr.bf16.mxu0 0
    %1198 = vmatpush1.bf16.msra.mxu0 0
    %1199 = vmatprep.subr.bf16.mxu0 0
    %1200 = vmatpush1.bf16.msra.mxu0 0
    %1201 = vmatprep.subr.bf16.mxu0 0
    %1202 = vmatpush1.bf16.msra.mxu0 0
    %1203 = vmatprep.subr.bf16.mxu0 0
    %1204 = vmatpush1.bf16.msra.mxu0 %v1182
    %1205 = vmatprep.subr.bf16.mxu0 0
    %1206 = vmatpush1.bf16.msra.mxu0 %v1181
    %1207 = vmatprep.subr.bf16.mxu0 0
    %1208 = vmatpush2.bf16.msra.mxu0 0
    %1209 = vmatprep.subr.bf16.mxu0 0
    %1210 = vmatpush2.bf16.msra.mxu0 0
    %1211 = vmatprep.subr.bf16.mxu0 0
    %1212 = vmatpush2.bf16.msra.mxu0 0
    %1213 = vmatprep.subr.bf16.mxu0 0
    %1214 = vmatpush2.bf16.msra.mxu0 0
    %1215 = vmatprep.subr.bf16.mxu0 0
    %1216 = vmatpush2.bf16.msra.mxu0 0
    %1217 = vmatprep.subr.bf16.mxu0 0
    %1218 = vmatpush2.bf16.msra.mxu0 0
    %1219 = vmatprep.subr.bf16.mxu0 0
    %1220 = vmatpush2.bf16.msra.mxu0 0
    %1221 = vmatprep.subr.bf16.mxu0 0
    %1222 = vmatpush2.bf16.msra.mxu0 0
    %1223 = vmatprep.mubr.bf16.mxu0 0
    %1224 = vmatmul.mubr.bf16.gmra.mxu0 %v1186
    %v1225 = vpop.f32.mrf.mxu0
    %v1226 = vadd.f32 0.0, %v1225
    %v1227 = vpop.f32.mrf.mxu0
    %v1228 = vpop.f32.mrf.mxu0
    %v1229 = vadd.f32 0.0, %v1228
    %v1230 = vpop.f32.mrf.mxu0
    %1231 = vmatprep.mubr.bf16.mxu0 0
    %1232 = vmatmul.mubr.bf16.gmra.mxu0 %v1189
    %v1233 = vpop.f32.mrf.mxu0
    %v1234 = vadd.f32 0.0, %v1233
    %v1235 = vpop.f32.mrf.mxu0
    %v1236 = vpop.f32.mrf.mxu0
    %v1237 = vadd.f32 0.0, %v1236
    %v1238 = vpop.f32.mrf.mxu0
    %1239 = vdwg.mxu0
    %v1240 = vadd.f32 %v1096, %v1226
    %v1241 = vadd.f32 %v1097, %v1229
    %v1242 = vadd.f32 %v1098, %v1234
    %v1243 = vadd.f32 %v1099, %v1237
    %s1244 = scalar_lea.vmem %s3, 96
    %v1245 = vld [vmem:[%s1244] sm:$0xf]
    %v1246 = vld [vmem:[%s1244 + $0x4] sm:$0xf]
    %v1247 = vld [vmem:[%s1244 + $0x8] sm:$0xf]
    %v1248 = vld [vmem:[%s1244 + $0xc] sm:$0xf]
    %v1253 = vunpack.c.l.b16 %v1245
    %v1254 = vunpack.c.l.b16 %v1246
    %v1255 = vunpack.c.l.b16 %v1247
    %v1256 = vunpack.c.l.b16 %v1248
    %v1257 = vpack.c.b16 %v1254, %v1253
    %v1258 = vpack.c.b16 %v1256, %v1255
    %1261 = vmatprep.subr.bf16.mxu0 0
    %1262 = vmatpush1.bf16.msra.mxu0 %v388
    %1263 = vmatprep.subr.bf16.mxu0 0
    %1264 = vmatpush1.bf16.msra.mxu0 %v387
    %1265 = vmatprep.subr.bf16.mxu0 0
    %1266 = vmatpush1.bf16.msra.mxu0 %v386
    %1267 = vmatprep.subr.bf16.mxu0 0
    %1268 = vmatpush1.bf16.msra.mxu0 %v385
    %1269 = vmatprep.subr.bf16.mxu0 0
    %1270 = vmatpush1.bf16.msra.mxu0 %v384
    %1271 = vmatprep.subr.bf16.mxu0 0
    %1272 = vmatpush1.bf16.msra.mxu0 %v383
    %1273 = vmatprep.subr.bf16.mxu0 0
    %1274 = vmatpush1.bf16.msra.mxu0 %v382
    %1275 = vmatprep.subr.bf16.mxu0 0
    %1276 = vmatpush1.bf16.msra.mxu0 %v381
    %1277 = vmatprep.subr.bf16.mxu0 0
    %1278 = vmatpush2.bf16.msra.mxu0 0
    %1279 = vmatprep.subr.bf16.mxu0 0
    %1280 = vmatpush2.bf16.msra.mxu0 0
    %1281 = vmatprep.subr.bf16.mxu0 0
    %1282 = vmatpush2.bf16.msra.mxu0 0
    %1283 = vmatprep.subr.bf16.mxu0 0
    %1284 = vmatpush2.bf16.msra.mxu0 0
    %1285 = vmatprep.subr.bf16.mxu0 0
    %1286 = vmatpush2.bf16.msra.mxu0 0
    %1287 = vmatprep.subr.bf16.mxu0 0
    %1288 = vmatpush2.bf16.msra.mxu0 0
    %1289 = vmatprep.subr.bf16.mxu0 0
    %1290 = vmatpush2.bf16.msra.mxu0 0
    %1291 = vmatprep.subr.bf16.mxu0 0
    %1292 = vmatpush2.bf16.msra.mxu0 0
    %1293 = vmatprep.mubr.bf16.mxu0 0
    %1294 = vmatmul.mubr.bf16.gmra.mxu0 %v1257
    %v1295 = vpop.f32.mrf.mxu0
    %v1296 = vadd.f32 0.0, %v1295
    %v1297 = vpop.f32.mrf.mxu0
    %v1298 = vpop.f32.mrf.mxu0
    %v1299 = vadd.f32 0.0, %v1298
    %v1300 = vpop.f32.mrf.mxu0
    %1301 = vmatprep.mubr.bf16.mxu0 0
    %1302 = vmatmul.mubr.bf16.gmra.mxu0 %v1258
    %v1303 = vpop.f32.mrf.mxu0
    %v1304 = vadd.f32 0.0, %v1303
    %v1305 = vpop.f32.mrf.mxu0
    %v1306 = vpop.f32.mrf.mxu0
    %v1307 = vadd.f32 0.0, %v1306
    %v1308 = vpop.f32.mrf.mxu0
    %1309 = vdwg.mxu0
    %v1310 = vpack.c.bf16 %v1299, %v1296
    %v1311 = vpack.c.bf16 %v1307, %v1304
    %s1312 = scalar_lea.vmem [#allocation4], 96
    %v1313 = vld [vmem:[%s1312] sm:$0xf]
    %v1314 = vld [vmem:[%s1312 + $0x4] sm:$0xf]
    %v1315 = vld [vmem:[%s1312 + $0x8] sm:$0xf]
    %v1316 = vld [vmem:[%s1312 + $0xc] sm:$0xf]
    %v1321 = vunpack.c.l.b16 %v1313
    %v1322 = vunpack.c.l.b16 %v1314
    %v1323 = vunpack.c.l.b16 %v1315
    %v1324 = vunpack.c.l.b16 %v1316
    %v1325 = vpack.c.b16 %v1322, %v1321
    %v1326 = vpack.c.b16 %v1324, %v1323
    %v1330 = vsel %vm545, %v1310, 0
    %v1333 = vsel %vm545, %v1311, 0
    %1335 = vmatprep.subr.bf16.mxu0 0
    %1336 = vmatpush1.bf16.msra.mxu0 0
    %1337 = vmatprep.subr.bf16.mxu0 0
    %1338 = vmatpush1.bf16.msra.mxu0 0
    %1339 = vmatprep.subr.bf16.mxu0 0
    %1340 = vmatpush1.bf16.msra.mxu0 0
    %1341 = vmatprep.subr.bf16.mxu0 0
    %1342 = vmatpush1.bf16.msra.mxu0 0
    %1343 = vmatprep.subr.bf16.mxu0 0
    %1344 = vmatpush1.bf16.msra.mxu0 0
    %1345 = vmatprep.subr.bf16.mxu0 0
    %1346 = vmatpush1.bf16.msra.mxu0 0
    %1347 = vmatprep.subr.bf16.mxu0 0
    %1348 = vmatpush1.bf16.msra.mxu0 %v1326
    %1349 = vmatprep.subr.bf16.mxu0 0
    %1350 = vmatpush1.bf16.msra.mxu0 %v1325
    %1351 = vmatprep.subr.bf16.mxu0 0
    %1352 = vmatpush2.bf16.msra.mxu0 0
    %1353 = vmatprep.subr.bf16.mxu0 0
    %1354 = vmatpush2.bf16.msra.mxu0 0
    %1355 = vmatprep.subr.bf16.mxu0 0
    %1356 = vmatpush2.bf16.msra.mxu0 0
    %1357 = vmatprep.subr.bf16.mxu0 0
    %1358 = vmatpush2.bf16.msra.mxu0 0
    %1359 = vmatprep.subr.bf16.mxu0 0
    %1360 = vmatpush2.bf16.msra.mxu0 0
    %1361 = vmatprep.subr.bf16.mxu0 0
    %1362 = vmatpush2.bf16.msra.mxu0 0
    %1363 = vmatprep.subr.bf16.mxu0 0
    %1364 = vmatpush2.bf16.msra.mxu0 0
    %1365 = vmatprep.subr.bf16.mxu0 0
    %1366 = vmatpush2.bf16.msra.mxu0 0
    %1367 = vmatprep.mubr.bf16.mxu0 0
    %1368 = vmatmul.mubr.bf16.gmra.mxu0 %v1330
    %v1369 = vpop.f32.mrf.mxu0
    %v1370 = vadd.f32 0.0, %v1369
    %v1371 = vpop.f32.mrf.mxu0
    %v1372 = vpop.f32.mrf.mxu0
    %v1373 = vadd.f32 0.0, %v1372
    %v1374 = vpop.f32.mrf.mxu0
    %1375 = vmatprep.mubr.bf16.mxu0 0
    %1376 = vmatmul.mubr.bf16.gmra.mxu0 %v1333
    %v1377 = vpop.f32.mrf.mxu0
    %v1378 = vadd.f32 0.0, %v1377
    %v1379 = vpop.f32.mrf.mxu0
    %v1380 = vpop.f32.mrf.mxu0
    %v1381 = vadd.f32 0.0, %v1380
    %v1382 = vpop.f32.mrf.mxu0
    %1383 = vdwg.mxu0
    %v1384 = vadd.f32 %v1240, %v1370
    %v1385 = vadd.f32 %v1241, %v1373
    %v1386 = vadd.f32 %v1242, %v1378
    %v1387 = vadd.f32 %v1243, %v1381
    %s1388 = scalar_lea.vmem %s3, 112
    %v1389 = vld [vmem:[%s1388] sm:$0xf]
    %v1390 = vld [vmem:[%s1388 + $0x4] sm:$0xf]
    %v1391 = vld [vmem:[%s1388 + $0x8] sm:$0xf]
    %v1392 = vld [vmem:[%s1388 + $0xc] sm:$0xf]
    %v1397 = vunpack.c.l.b16 %v1389
    %v1398 = vunpack.c.l.b16 %v1390
    %v1399 = vunpack.c.l.b16 %v1391
    %v1400 = vunpack.c.l.b16 %v1392
    %v1401 = vpack.c.b16 %v1398, %v1397
    %v1402 = vpack.c.b16 %v1400, %v1399
    %1405 = vmatprep.subr.bf16.mxu0 0
    %1406 = vmatpush1.bf16.msra.mxu0 %v388
    %1407 = vmatprep.subr.bf16.mxu0 0
    %1408 = vmatpush1.bf16.msra.mxu0 %v387
    %1409 = vmatprep.subr.bf16.mxu0 0
    %1410 = vmatpush1.bf16.msra.mxu0 %v386
    %1411 = vmatprep.subr.bf16.mxu0 0
    %1412 = vmatpush1.bf16.msra.mxu0 %v385
    %1413 = vmatprep.subr.bf16.mxu0 0
    %1414 = vmatpush1.bf16.msra.mxu0 %v384
    %1415 = vmatprep.subr.bf16.mxu0 0
    %1416 = vmatpush1.bf16.msra.mxu0 %v383
    %1417 = vmatprep.subr.bf16.mxu0 0
    %1418 = vmatpush1.bf16.msra.mxu0 %v382
    %1419 = vmatprep.subr.bf16.mxu0 0
    %1420 = vmatpush1.bf16.msra.mxu0 %v381
    %1421 = vmatprep.subr.bf16.mxu0 0
    %1422 = vmatpush2.bf16.msra.mxu0 0
    %1423 = vmatprep.subr.bf16.mxu0 0
    %1424 = vmatpush2.bf16.msra.mxu0 0
    %1425 = vmatprep.subr.bf16.mxu0 0
    %1426 = vmatpush2.bf16.msra.mxu0 0
    %1427 = vmatprep.subr.bf16.mxu0 0
    %1428 = vmatpush2.bf16.msra.mxu0 0
    %1429 = vmatprep.subr.bf16.mxu0 0
    %1430 = vmatpush2.bf16.msra.mxu0 0
    %1431 = vmatprep.subr.bf16.mxu0 0
    %1432 = vmatpush2.bf16.msra.mxu0 0
    %1433 = vmatprep.subr.bf16.mxu0 0
    %1434 = vmatpush2.bf16.msra.mxu0 0
    %1435 = vmatprep.subr.bf16.mxu0 0
    %1436 = vmatpush2.bf16.msra.mxu0 0
    %1437 = vmatprep.mubr.bf16.mxu0 0
    %1438 = vmatmul.mubr.bf16.gmra.mxu0 %v1401
    %v1439 = vpop.f32.mrf.mxu0
    %v1440 = vadd.f32 0.0, %v1439
    %v1441 = vpop.f32.mrf.mxu0
    %v1442 = vpop.f32.mrf.mxu0
    %v1443 = vadd.f32 0.0, %v1442
    %v1444 = vpop.f32.mrf.mxu0
    %1445 = vmatprep.mubr.bf16.mxu0 0
    %1446 = vmatmul.mubr.bf16.gmra.mxu0 %v1402
    %v1447 = vpop.f32.mrf.mxu0
    %v1448 = vadd.f32 0.0, %v1447
    %v1449 = vpop.f32.mrf.mxu0
    %v1450 = vpop.f32.mrf.mxu0
    %v1451 = vadd.f32 0.0, %v1450
    %v1452 = vpop.f32.mrf.mxu0
    %1453 = vdwg.mxu0
    %v1454 = vpack.c.bf16 %v1443, %v1440
    %v1455 = vpack.c.bf16 %v1451, %v1448
    %s1456 = scalar_lea.vmem [#allocation4], 112
    %v1457 = vld [vmem:[%s1456] sm:$0xf]
    %v1458 = vld [vmem:[%s1456 + $0x4] sm:$0xf]
    %v1459 = vld [vmem:[%s1456 + $0x8] sm:$0xf]
    %v1460 = vld [vmem:[%s1456 + $0xc] sm:$0xf]
    %v1465 = vunpack.c.l.b16 %v1457
    %v1466 = vunpack.c.l.b16 %v1458
    %v1467 = vunpack.c.l.b16 %v1459
    %v1468 = vunpack.c.l.b16 %v1460
    %v1469 = vpack.c.b16 %v1466, %v1465
    %v1470 = vpack.c.b16 %v1468, %v1467
    %v1474 = vsel %vm545, %v1454, 0
    %v1477 = vsel %vm545, %v1455, 0
    %1479 = vmatprep.subr.bf16.mxu0 0
    %1480 = vmatpush1.bf16.msra.mxu0 0
    %1481 = vmatprep.subr.bf16.mxu0 0
    %1482 = vmatpush1.bf16.msra.mxu0 0
    %1483 = vmatprep.subr.bf16.mxu0 0
    %1484 = vmatpush1.bf16.msra.mxu0 0
    %1485 = vmatprep.subr.bf16.mxu0 0
    %1486 = vmatpush1.bf16.msra.mxu0 0
    %1487 = vmatprep.subr.bf16.mxu0 0
    %1488 = vmatpush1.bf16.msra.mxu0 0
    %1489 = vmatprep.subr.bf16.mxu0 0
    %1490 = vmatpush1.bf16.msra.mxu0 0
    %1491 = vmatprep.subr.bf16.mxu0 0
    %1492 = vmatpush1.bf16.msra.mxu0 %v1470
    %1493 = vmatprep.subr.bf16.mxu0 0
    %1494 = vmatpush1.bf16.msra.mxu0 %v1469
    %1495 = vmatprep.subr.bf16.mxu0 0
    %1496 = vmatpush2.bf16.msra.mxu0 0
    %1497 = vmatprep.subr.bf16.mxu0 0
    %1498 = vmatpush2.bf16.msra.mxu0 0
    %1499 = vmatprep.subr.bf16.mxu0 0
    %1500 = vmatpush2.bf16.msra.mxu0 0
    %1501 = vmatprep.subr.bf16.mxu0 0
    %1502 = vmatpush2.bf16.msra.mxu0 0
    %1503 = vmatprep.subr.bf16.mxu0 0
    %1504 = vmatpush2.bf16.msra.mxu0 0
    %1505 = vmatprep.subr.bf16.mxu0 0
    %1506 = vmatpush2.bf16.msra.mxu0 0
    %1507 = vmatprep.subr.bf16.mxu0 0
    %1508 = vmatpush2.bf16.msra.mxu0 0
    %1509 = vmatprep.subr.bf16.mxu0 0
    %1510 = vmatpush2.bf16.msra.mxu0 0
    %1511 = vmatprep.mubr.bf16.mxu0 0
    %1512 = vmatmul.mubr.bf16.gmra.mxu0 %v1474
    %v1513 = vpop.f32.mrf.mxu0
    %v1514 = vadd.f32 0.0, %v1513
    %v1515 = vpop.f32.mrf.mxu0
    %v1516 = vpop.f32.mrf.mxu0
    %v1517 = vadd.f32 0.0, %v1516
    %v1518 = vpop.f32.mrf.mxu0
    %1519 = vmatprep.mubr.bf16.mxu0 0
    %1520 = vmatmul.mubr.bf16.gmra.mxu0 %v1477
    %v1521 = vpop.f32.mrf.mxu0
    %v1522 = vadd.f32 0.0, %v1521
    %v1523 = vpop.f32.mrf.mxu0
    %v1524 = vpop.f32.mrf.mxu0
    %v1525 = vadd.f32 0.0, %v1524
    %v1526 = vpop.f32.mrf.mxu0
    %1527 = vdwg.mxu0
    %v1528 = vadd.f32 %v1384, %v1514
    %v1529 = vadd.f32 %v1385, %v1517
    %v1530 = vadd.f32 %v1386, %v1522
    %v1531 = vadd.f32 %v1387, %v1525
    %s1532 = scalar_lea.vmem %s3, 128
    %v1533 = vld [vmem:[%s1532] sm:$0xf]
    %v1534 = vld [vmem:[%s1532 + $0x4] sm:$0xf]
    %v1535 = vld [vmem:[%s1532 + $0x8] sm:$0xf]
    %v1536 = vld [vmem:[%s1532 + $0xc] sm:$0xf]
    %v1541 = vunpack.c.l.b16 %v1533
    %v1542 = vunpack.c.l.b16 %v1534
    %v1543 = vunpack.c.l.b16 %v1535
    %v1544 = vunpack.c.l.b16 %v1536
    %v1545 = vpack.c.b16 %v1542, %v1541
    %v1546 = vpack.c.b16 %v1544, %v1543
    %1549 = vmatprep.subr.bf16.mxu0 0
    %1550 = vmatpush1.bf16.msra.mxu0 %v388
    %1551 = vmatprep.subr.bf16.mxu0 0
    %1552 = vmatpush1.bf16.msra.mxu0 %v387
    %1553 = vmatprep.subr.bf16.mxu0 0
    %1554 = vmatpush1.bf16.msra.mxu0 %v386
    %1555 = vmatprep.subr.bf16.mxu0 0
    %1556 = vmatpush1.bf16.msra.mxu0 %v385
    %1557 = vmatprep.subr.bf16.mxu0 0
    %1558 = vmatpush1.bf16.msra.mxu0 %v384
    %1559 = vmatprep.subr.bf16.mxu0 0
    %1560 = vmatpush1.bf16.msra.mxu0 %v383
    %1561 = vmatprep.subr.bf16.mxu0 0
    %1562 = vmatpush1.bf16.msra.mxu0 %v382
    %1563 = vmatprep.subr.bf16.mxu0 0
    %1564 = vmatpush1.bf16.msra.mxu0 %v381
    %1565 = vmatprep.subr.bf16.mxu0 0
    %1566 = vmatpush2.bf16.msra.mxu0 0
    %1567 = vmatprep.subr.bf16.mxu0 0
    %1568 = vmatpush2.bf16.msra.mxu0 0
    %1569 = vmatprep.subr.bf16.mxu0 0
    %1570 = vmatpush2.bf16.msra.mxu0 0
    %1571 = vmatprep.subr.bf16.mxu0 0
    %1572 = vmatpush2.bf16.msra.mxu0 0
    %1573 = vmatprep.subr.bf16.mxu0 0
    %1574 = vmatpush2.bf16.msra.mxu0 0
    %1575 = vmatprep.subr.bf16.mxu0 0
    %1576 = vmatpush2.bf16.msra.mxu0 0
    %1577 = vmatprep.subr.bf16.mxu0 0
    %1578 = vmatpush2.bf16.msra.mxu0 0
    %1579 = vmatprep.subr.bf16.mxu0 0
    %1580 = vmatpush2.bf16.msra.mxu0 0
    %1581 = vmatprep.mubr.bf16.mxu0 0
    %1582 = vmatmul.mubr.bf16.gmra.mxu0 %v1545
    %v1583 = vpop.f32.mrf.mxu0
    %v1584 = vadd.f32 0.0, %v1583
    %v1585 = vpop.f32.mrf.mxu0
    %v1586 = vpop.f32.mrf.mxu0
    %v1587 = vadd.f32 0.0, %v1586
    %v1588 = vpop.f32.mrf.mxu0
    %1589 = vmatprep.mubr.bf16.mxu0 0
    %1590 = vmatmul.mubr.bf16.gmra.mxu0 %v1546
    %v1591 = vpop.f32.mrf.mxu0
    %v1592 = vadd.f32 0.0, %v1591
    %v1593 = vpop.f32.mrf.mxu0
    %v1594 = vpop.f32.mrf.mxu0
    %v1595 = vadd.f32 0.0, %v1594
    %v1596 = vpop.f32.mrf.mxu0
    %1597 = vdwg.mxu0
    %v1598 = vpack.c.bf16 %v1587, %v1584
    %v1599 = vpack.c.bf16 %v1595, %v1592
    %s1600 = scalar_lea.vmem [#allocation4], 128
    %v1601 = vld [vmem:[%s1600] sm:$0xf]
    %v1602 = vld [vmem:[%s1600 + $0x4] sm:$0xf]
    %v1603 = vld [vmem:[%s1600 + $0x8] sm:$0xf]
    %v1604 = vld [vmem:[%s1600 + $0xc] sm:$0xf]
    %v1609 = vunpack.c.l.b16 %v1601
    %v1610 = vunpack.c.l.b16 %v1602
    %v1611 = vunpack.c.l.b16 %v1603
    %v1612 = vunpack.c.l.b16 %v1604
    %v1613 = vpack.c.b16 %v1610, %v1609
    %v1614 = vpack.c.b16 %v1612, %v1611
    %v1618 = vsel %vm545, %v1598, 0
    %v1621 = vsel %vm545, %v1599, 0
    %1623 = vmatprep.subr.bf16.mxu0 0
    %1624 = vmatpush1.bf16.msra.mxu0 0
    %1625 = vmatprep.subr.bf16.mxu0 0
    %1626 = vmatpush1.bf16.msra.mxu0 0
    %1627 = vmatprep.subr.bf16.mxu0 0
    %1628 = vmatpush1.bf16.msra.mxu0 0
    %1629 = vmatprep.subr.bf16.mxu0 0
    %1630 = vmatpush1.bf16.msra.mxu0 0
    %1631 = vmatprep.subr.bf16.mxu0 0
    %1632 = vmatpush1.bf16.msra.mxu0 0
    %1633 = vmatprep.subr.bf16.mxu0 0
    %1634 = vmatpush1.bf16.msra.mxu0 0
    %1635 = vmatprep.subr.bf16.mxu0 0
    %1636 = vmatpush1.bf16.msra.mxu0 %v1614
    %1637 = vmatprep.subr.bf16.mxu0 0
    %1638 = vmatpush1.bf16.msra.mxu0 %v1613
    %1639 = vmatprep.subr.bf16.mxu0 0
    %1640 = vmatpush2.bf16.msra.mxu0 0
    %1641 = vmatprep.subr.bf16.mxu0 0
    %1642 = vmatpush2.bf16.msra.mxu0 0
    %1643 = vmatprep.subr.bf16.mxu0 0
    %1644 = vmatpush2.bf16.msra.mxu0 0
    %1645 = vmatprep.subr.bf16.mxu0 0
    %1646 = vmatpush2.bf16.msra.mxu0 0
    %1647 = vmatprep.subr.bf16.mxu0 0
    %1648 = vmatpush2.bf16.msra.mxu0 0
    %1649 = vmatprep.subr.bf16.mxu0 0
    %1650 = vmatpush2.bf16.msra.mxu0 0
    %1651 = vmatprep.subr.bf16.mxu0 0
    %1652 = vmatpush2.bf16.msra.mxu0 0
    %1653 = vmatprep.subr.bf16.mxu0 0
    %1654 = vmatpush2.bf16.msra.mxu0 0
    %1655 = vmatprep.mubr.bf16.mxu0 0
    %1656 = vmatmul.mubr.bf16.gmra.mxu0 %v1618
    %v1657 = vpop.f32.mrf.mxu0
    %v1658 = vadd.f32 0.0, %v1657
    %v1659 = vpop.f32.mrf.mxu0
    %v1660 = vpop.f32.mrf.mxu0
    %v1661 = vadd.f32 0.0, %v1660
    %v1662 = vpop.f32.mrf.mxu0
    %1663 = vmatprep.mubr.bf16.mxu0 0
    %1664 = vmatmul.mubr.bf16.gmra.mxu0 %v1621
    %v1665 = vpop.f32.mrf.mxu0
    %v1666 = vadd.f32 0.0, %v1665
    %v1667 = vpop.f32.mrf.mxu0
    %v1668 = vpop.f32.mrf.mxu0
    %v1669 = vadd.f32 0.0, %v1668
    %v1670 = vpop.f32.mrf.mxu0
    %1671 = vdwg.mxu0
    %v1672 = vadd.f32 %v1528, %v1658
    %v1673 = vadd.f32 %v1529, %v1661
    %v1674 = vadd.f32 %v1530, %v1666
    %v1675 = vadd.f32 %v1531, %v1669
    %vm1676 = vcmask 523264
    %v1677 = vsel %vm1676, %v1672, 0.0
    %v1678 = vsel %vm1676, %v1673, 0.0
    %v1679 = vadd.f32 %v1677, %v1678
    %v1680 = vsel %vm1676, %v1674, 0.0
    %v1681 = vadd.f32 %v1679, %v1680
    %v1682 = vsel %vm1676, %v1675, 0.0
    %v1683 = vadd.f32 %v1681, %v1682
    %v1684 = vrot.slane %v1683, 4
    %v1685 = vadd.f32 %v1683, %v1684
    %v1686 = vrot.slane %v1685, 2
    %v1687 = vadd.f32 %v1685, %v1686
    %v1688 = vrot.slane %v1687, 1
    %v1689 = vadd.f32 %v1687, %v1688
    %v1690 = vrcp.pop 32.0
    %v1691 = vmul.f32 %v1689, %v1690
    %v1692 = vsub.f32 %v1672, %v1691
    %v1693 = vsub.f32 %v1673, %v1691
    %v1694 = vsub.f32 %v1674, %v1691
    %v1695 = vsub.f32 %v1675, %v1691
    %v1696 = vmul.f32 %v1692, %v1692
    %v1697 = vmul.f32 %v1693, %v1693
    %v1698 = vmul.f32 %v1694, %v1694
    %v1699 = vmul.f32 %v1695, %v1695
    %v1700 = vsel %vm1676, %v1696, 0.0
    %v1701 = vsel %vm1676, %v1697, 0.0
    %v1702 = vadd.f32 %v1700, %v1701
    %v1703 = vsel %vm1676, %v1698, 0.0
    %v1704 = vadd.f32 %v1702, %v1703
    %v1705 = vsel %vm1676, %v1699, 0.0
    %v1706 = vadd.f32 %v1704, %v1705
    %v1707 = vrot.slane %v1706, 4
    %v1708 = vadd.f32 %v1706, %v1707
    %v1709 = vrot.slane %v1708, 2
    %v1710 = vadd.f32 %v1708, %v1709
    %v1711 = vrot.slane %v1710, 1
    %v1712 = vadd.f32 %v1710, %v1711
    %v1713 = vmul.f32 %v1712, %v1690
    %v1714 = vadd.f32 %v1713, 1e-05
    %v1715 = vrsqrt.pop %v1714
    %v1716 = vmul.f32 %v1692, %v1715
    %v1717 = vmul.f32 %v1693, %v1715
    %v1718 = vmul.f32 %v1694, %v1715
    %v1719 = vmul.f32 %v1695, %v1715
    %vm1720 = vcmp.gt.f32.partialorder %v1716, 0.0
    %vm1721 = vcmp.gt.f32.partialorder %v1717, 0.0
    %vm1722 = vcmp.gt.f32.partialorder %v1718, 0.0
    %vm1723 = vcmp.gt.f32.partialorder %v1719, 0.0
    %v1724 = vmul.f32 %v1716, 0.2
    %v1725 = vmul.f32 %v1717, 0.2
    %v1726 = vmul.f32 %v1718, 0.2
    %v1727 = vmul.f32 %v1719, 0.2
    %v1728 = vsel %vm1720, %v1716, %v1724
    %v1729 = vsel %vm1721, %v1717, %v1725
    %v1730 = vsel %vm1722, %v1718, %v1726
    %v1731 = vsel %vm1723, %v1719, %v1727
    %v1732 = vpack.c.bf16 %v1729, %v1728
    %v1733 = vpack.c.bf16 %v1731, %v1730
    %v1734 = vld [vmem:[%s5] sm:$0xf]
    %v1736 = vsel %vm545, %v1734, 0
    %1738 = vmatprep.subr.bf16.mxu0 0
    %1739 = vmatpush1.bf16.msra.mxu0 0
    %1740 = vmatprep.subr.bf16.mxu0 0
    %1741 = vmatpush1.bf16.msra.mxu0 0
    %1742 = vmatprep.subr.bf16.mxu0 0
    %1743 = vmatpush1.bf16.msra.mxu0 0
    %1744 = vmatprep.subr.bf16.mxu0 0
    %1745 = vmatpush1.bf16.msra.mxu0 0
    %1746 = vmatprep.subr.bf16.mxu0 0
    %1747 = vmatpush1.bf16.msra.mxu0 0
    %1748 = vmatprep.subr.bf16.mxu0 0
    %1749 = vmatpush1.bf16.msra.mxu0 0
    %1750 = vmatprep.subr.bf16.mxu0 0
    %1751 = vmatpush1.bf16.msra.mxu0 %v1733
    %1752 = vmatprep.subr.bf16.mxu0 0
    %1753 = vmatpush1.bf16.msra.mxu0 %v1732
    %1754 = vmatprep.subr.bf16.mxu0 0
    %1755 = vmatpush2.bf16.msra.mxu0 0
    %1756 = vmatprep.subr.bf16.mxu0 0
    %1757 = vmatpush2.bf16.msra.mxu0 0
    %1758 = vmatprep.subr.bf16.mxu0 0
    %1759 = vmatpush2.bf16.msra.mxu0 0
    %1760 = vmatprep.subr.bf16.mxu0 0
    %1761 = vmatpush2.bf16.msra.mxu0 0
    %1762 = vmatprep.subr.bf16.mxu0 0
    %1763 = vmatpush2.bf16.msra.mxu0 0
    %1764 = vmatprep.subr.bf16.mxu0 0
    %1765 = vmatpush2.bf16.msra.mxu0 0
    %1766 = vmatprep.subr.bf16.mxu0 0
    %1767 = vmatpush2.bf16.msra.mxu0 0
    %1768 = vmatprep.subr.bf16.mxu0 0
    %1769 = vmatpush2.bf16.msra.mxu0 0
    %1770 = vmatprep.mubr.bf16.mxu0 0
    %1771 = vmatmul.mubr.bf16.gmra.mxu0 %v1736
    %v1772 = vpop.f32.mrf.mxu0
    %v1773 = vadd.f32 0.0, %v1772
    %v1774 = vpop.f32.mrf.mxu0
    %v1775 = vpop.f32.mrf.mxu0
    %v1776 = vpop.f32.mrf.mxu0
    %1777 = vdwg.mxu0
    %v1778 = vpack.c.bf16 %v1773, %v1773
    %v1779 = vld [vmem:[#allocation6] sm:$0xf]
    %v1780 = vld [vmem:[#allocation6 + $0x4] sm:$0xf]
    %v1781 = vld [vmem:[#allocation6 + $0x8] sm:$0xf]
    %v1782 = vld [vmem:[#allocation6 + $0xc] sm:$0xf]
    %v1783 = vld [vmem:[#allocation6 + $0x10] sm:$0xf]
    %v1784 = vld [vmem:[#allocation6 + $0x14] sm:$0xf]
    %v1785 = vld [vmem:[#allocation6 + $0x18] sm:$0xf]
    %v1786 = vld [vmem:[#allocation6 + $0x1c] sm:$0xf]
    %s1787 = scalar_lea.vmem %s5, 4
    %v1788 = vld [vmem:[%s1787] sm:$0xf]
    %v1790 = vsel %vm545, %v1788, 0
    %1792 = vmatprep.subr.bf16.mxu0 0
    %1793 = vmatpush1.bf16.msra.mxu0 0
    %1794 = vmatprep.subr.bf16.mxu0 0
    %1795 = vmatpush1.bf16.msra.mxu0 0
    %1796 = vmatprep.subr.bf16.mxu0 0
    %1797 = vmatpush1.bf16.msra.mxu0 0
    %1798 = vmatprep.subr.bf16.mxu0 0
    %1799 = vmatpush1.bf16.msra.mxu0 0
    %1800 = vmatprep.subr.bf16.mxu0 0
    %1801 = vmatpush1.bf16.msra.mxu0 0
    %1802 = vmatprep.subr.bf16.mxu0 0
    %1803 = vmatpush1.bf16.msra.mxu0 0
    %1804 = vmatprep.subr.bf16.mxu0 0
    %1805 = vmatpush1.bf16.msra.mxu0 %v1733
    %1806 = vmatprep.subr.bf16.mxu0 0
    %1807 = vmatpush1.bf16.msra.mxu0 %v1732
    %1808 = vmatprep.subr.bf16.mxu0 0
    %1809 = vmatpush2.bf16.msra.mxu0 0
    %1810 = vmatprep.subr.bf16.mxu0 0
    %1811 = vmatpush2.bf16.msra.mxu0 0
    %1812 = vmatprep.subr.bf16.mxu0 0
    %1813 = vmatpush2.bf16.msra.mxu0 0
    %1814 = vmatprep.subr.bf16.mxu0 0
    %1815 = vmatpush2.bf16.msra.mxu0 0
    %1816 = vmatprep.subr.bf16.mxu0 0
    %1817 = vmatpush2.bf16.msra.mxu0 0
    %1818 = vmatprep.subr.bf16.mxu0 0
    %1819 = vmatpush2.bf16.msra.mxu0 0
    %1820 = vmatprep.subr.bf16.mxu0 0
    %1821 = vmatpush2.bf16.msra.mxu0 0
    %1822 = vmatprep.subr.bf16.mxu0 0
    %1823 = vmatpush2.bf16.msra.mxu0 0
    %1824 = vmatprep.mubr.bf16.mxu0 0
    %1825 = vmatmul.mubr.bf16.gmra.mxu0 %v1790
    %v1826 = vpop.f32.mrf.mxu0
    %v1827 = vadd.f32 0.0, %v1826
    %v1828 = vpop.f32.mrf.mxu0
    %v1829 = vpop.f32.mrf.mxu0
    %v1830 = vpop.f32.mrf.mxu0
    %1831 = vdwg.mxu0
    %v1832 = vpack.c.bf16 %v1827, %v1827
    %s1833 = scalar_lea.vmem [#allocation6], 32
    %v1834 = vld [vmem:[%s1833] sm:$0xf]
    %v1835 = vld [vmem:[%s1833 + $0x4] sm:$0xf]
    %v1836 = vld [vmem:[%s1833 + $0x8] sm:$0xf]
    %v1837 = vld [vmem:[%s1833 + $0xc] sm:$0xf]
    %v1838 = vld [vmem:[%s1833 + $0x10] sm:$0xf]
    %v1839 = vld [vmem:[%s1833 + $0x14] sm:$0xf]
    %v1840 = vld [vmem:[%s1833 + $0x18] sm:$0xf]
    %v1841 = vld [vmem:[%s1833 + $0x1c] sm:$0xf]
    %v1850 = vunpack.c.l.b16 %v1834
    %v1851 = vunpack.c.l.b16 %v1835
    %v1852 = vunpack.c.l.b16 %v1836
    %v1853 = vunpack.c.l.b16 %v1837
    %v1854 = vunpack.c.l.b16 %v1838
    %v1855 = vunpack.c.l.b16 %v1839
    %v1856 = vunpack.c.l.b16 %v1840
    %v1857 = vunpack.c.l.b16 %v1841
    %v1858 = vpack.c.b16 %v1851, %v1850
    %v1859 = vpack.c.b16 %v1853, %v1852
    %v1860 = vpack.c.b16 %v1855, %v1854
    %v1861 = vpack.c.b16 %v1857, %v1856
    %v1867 = vsel %vm1676, %v1832, 0
    %1869 = vmatprep.subr.bf16.mxu0 0
    %1870 = vmatpush1.bf16.msra.mxu0 0
    %1871 = vmatprep.subr.bf16.mxu0 0
    %1872 = vmatpush1.bf16.msra.mxu0 0
    %1873 = vmatprep.subr.bf16.mxu0 0
    %1874 = vmatpush1.bf16.msra.mxu0 0
    %1875 = vmatprep.subr.bf16.mxu0 0
    %1876 = vmatpush1.bf16.msra.mxu0 0
    %1877 = vmatprep.subr.bf16.mxu0 0
    %1878 = vmatpush1.bf16.msra.mxu0 %v1861
    %1879 = vmatprep.subr.bf16.mxu0 0
    %1880 = vmatpush1.bf16.msra.mxu0 %v1860
    %1881 = vmatprep.subr.bf16.mxu0 0
    %1882 = vmatpush1.bf16.msra.mxu0 %v1859
    %1883 = vmatprep.subr.bf16.mxu0 0
    %1884 = vmatpush1.bf16.msra.mxu0 %v1858
    %1885 = vmatprep.subr.bf16.mxu0 0
    %1886 = vmatpush2.bf16.msra.mxu0 0
    %1887 = vmatprep.subr.bf16.mxu0 0
    %1888 = vmatpush2.bf16.msra.mxu0 0
    %1889 = vmatprep.subr.bf16.mxu0 0
    %1890 = vmatpush2.bf16.msra.mxu0 0
    %1891 = vmatprep.subr.bf16.mxu0 0
    %1892 = vmatpush2.bf16.msra.mxu0 0
    %1893 = vmatprep.subr.bf16.mxu0 0
    %1894 = vmatpush2.bf16.msra.mxu0 0
    %1895 = vmatprep.subr.bf16.mxu0 0
    %1896 = vmatpush2.bf16.msra.mxu0 0
    %1897 = vmatprep.subr.bf16.mxu0 0
    %1898 = vmatpush2.bf16.msra.mxu0 0
    %1899 = vmatprep.subr.bf16.mxu0 0
    %1900 = vmatpush2.bf16.msra.mxu0 0
    %1901 = vmatprep.mubr.bf16.mxu0 0
    %1902 = vmatmul.mubr.bf16.gmra.mxu0 %v1867
    %v1903 = vpop.f32.mrf.mxu0
    %v1904 = vadd.f32 0.0, %v1903
    %v1905 = vpop.f32.mrf.mxu0
    %v1906 = vpop.f32.mrf.mxu0
    %v1907 = vpop.f32.mrf.mxu0
    %1908 = vdwg.mxu0
    %v1917 = vunpack.c.l.b16 %v1779
    %v1918 = vunpack.c.l.b16 %v1780
    %v1919 = vunpack.c.l.b16 %v1781
    %v1920 = vunpack.c.l.b16 %v1782
    %v1921 = vunpack.c.l.b16 %v1783
    %v1922 = vunpack.c.l.b16 %v1784
    %v1923 = vunpack.c.l.b16 %v1785
    %v1924 = vunpack.c.l.b16 %v1786
    %v1925 = vpack.c.b16 %v1918, %v1917
    %v1926 = vpack.c.b16 %v1920, %v1919
    %v1927 = vpack.c.b16 %v1922, %v1921
    %v1928 = vpack.c.b16 %v1924, %v1923
    %v1934 = vsel %vm1676, %v1778, 0
    %1936 = vmatprep.subr.bf16.mxu0 0
    %1937 = vmatpush1.bf16.msra.mxu0 0
    %1938 = vmatprep.subr.bf16.mxu0 0
    %1939 = vmatpush1.bf16.msra.mxu0 0
    %1940 = vmatprep.subr.bf16.mxu0 0
    %1941 = vmatpush1.bf16.msra.mxu0 0
    %1942 = vmatprep.subr.bf16.mxu0 0
    %1943 = vmatpush1.bf16.msra.mxu0 0
    %1944 = vmatprep.subr.bf16.mxu0 0
    %1945 = vmatpush1.bf16.msra.mxu0 %v1928
    %1946 = vmatprep.subr.bf16.mxu0 0
    %1947 = vmatpush1.bf16.msra.mxu0 %v1927
    %1948 = vmatprep.subr.bf16.mxu0 0
    %1949 = vmatpush1.bf16.msra.mxu0 %v1926
    %1950 = vmatprep.subr.bf16.mxu0 0
    %1951 = vmatpush1.bf16.msra.mxu0 %v1925
    %1952 = vmatprep.subr.bf16.mxu0 0
    %1953 = vmatpush2.bf16.msra.mxu0 0
    %1954 = vmatprep.subr.bf16.mxu0 0
    %1955 = vmatpush2.bf16.msra.mxu0 0
    %1956 = vmatprep.subr.bf16.mxu0 0
    %1957 = vmatpush2.bf16.msra.mxu0 0
    %1958 = vmatprep.subr.bf16.mxu0 0
    %1959 = vmatpush2.bf16.msra.mxu0 0
    %1960 = vmatprep.subr.bf16.mxu0 0
    %1961 = vmatpush2.bf16.msra.mxu0 0
    %1962 = vmatprep.subr.bf16.mxu0 0
    %1963 = vmatpush2.bf16.msra.mxu0 0
    %1964 = vmatprep.subr.bf16.mxu0 0
    %1965 = vmatpush2.bf16.msra.mxu0 0
    %1966 = vmatprep.subr.bf16.mxu0 0
    %1967 = vmatpush2.bf16.msra.mxu0 0
    %1968 = vmatprep.mubr.bf16.mxu0 0
    %1969 = vmatmul.mubr.bf16.gmra.mxu0 %v1934
    %v1970 = vpop.f32.mrf.mxu0
    %v1971 = vadd.f32 %v1904, %v1970
    %v1972 = vpop.f32.mrf.mxu0
    %v1973 = vpop.f32.mrf.mxu0
    %v1974 = vpop.f32.mrf.mxu0
    %1975 = vdwg.mxu0
    %s1976 = scalar_lea.vmem %s5, 8
    %v1977 = vld [vmem:[%s1976] sm:$0xf]
    %v1979 = vsel %vm545, %v1977, 0
    %1981 = vmatprep.subr.bf16.mxu0 0
    %1982 = vmatpush1.bf16.msra.mxu0 0
    %1983 = vmatprep.subr.bf16.mxu0 0
    %1984 = vmatpush1.bf16.msra.mxu0 0
    %1985 = vmatprep.subr.bf16.mxu0 0
    %1986 = vmatpush1.bf16.msra.mxu0 0
    %1987 = vmatprep.subr.bf16.mxu0 0
    %1988 = vmatpush1.bf16.msra.mxu0 0
    %1989 = vmatprep.subr.bf16.mxu0 0
    %1990 = vmatpush1.bf16.msra.mxu0 0
    %1991 = vmatprep.subr.bf16.mxu0 0
    %1992 = vmatpush1.bf16.msra.mxu0 0
    %1993 = vmatprep.subr.bf16.mxu0 0
    %1994 = vmatpush1.bf16.msra.mxu0 %v1733
    %1995 = vmatprep.subr.bf16.mxu0 0
    %1996 = vmatpush1.bf16.msra.mxu0 %v1732
    %1997 = vmatprep.subr.bf16.mxu0 0
    %1998 = vmatpush2.bf16.msra.mxu0 0
    %1999 = vmatprep.subr.bf16.mxu0 0
    %2000 = vmatpush2.bf16.msra.mxu0 0
    %2001 = vmatprep.subr.bf16.mxu0 0
    %2002 = vmatpush2.bf16.msra.mxu0 0
    %2003 = vmatprep.subr.bf16.mxu0 0
    %2004 = vmatpush2.bf16.msra.mxu0 0
    %2005 = vmatprep.subr.bf16.mxu0 0
    %2006 = vmatpush2.bf16.msra.mxu0 0
    %2007 = vmatprep.subr.bf16.mxu0 0
    %2008 = vmatpush2.bf16.msra.mxu0 0
    %2009 = vmatprep.subr.bf16.mxu0 0
    %2010 = vmatpush2.bf16.msra.mxu0 0
    %2011 = vmatprep.subr.bf16.mxu0 0
    %2012 = vmatpush2.bf16.msra.mxu0 0
    %2013 = vmatprep.mubr.bf16.mxu0 0
    %2014 = vmatmul.mubr.bf16.gmra.mxu0 %v1979
    %v2015 = vpop.f32.mrf.mxu0
    %v2016 = vadd.f32 0.0, %v2015
    %v2017 = vpop.f32.mrf.mxu0
    %v2018 = vpop.f32.mrf.mxu0
    %v2019 = vpop.f32.mrf.mxu0
    %2020 = vdwg.mxu0
    %v2021 = vpack.c.bf16 %v2016, %v2016
    %s2022 = scalar_lea.vmem [#allocation6], 64
    %v2023 = vld [vmem:[%s2022] sm:$0xf]
    %v2024 = vld [vmem:[%s2022 + $0x4] sm:$0xf]
    %v2025 = vld [vmem:[%s2022 + $0x8] sm:$0xf]
    %v2026 = vld [vmem:[%s2022 + $0xc] sm:$0xf]
    %v2027 = vld [vmem:[%s2022 + $0x10] sm:$0xf]
    %v2028 = vld [vmem:[%s2022 + $0x14] sm:$0xf]
    %v2029 = vld [vmem:[%s2022 + $0x18] sm:$0xf]
    %v2030 = vld [vmem:[%s2022 + $0x1c] sm:$0xf]
    %v2039 = vunpack.c.l.b16 %v2023
    %v2040 = vunpack.c.l.b16 %v2024
    %v2041 = vunpack.c.l.b16 %v2025
    %v2042 = vunpack.c.l.b16 %v2026
    %v2043 = vunpack.c.l.b16 %v2027
    %v2044 = vunpack.c.l.b16 %v2028
    %v2045 = vunpack.c.l.b16 %v2029
    %v2046 = vunpack.c.l.b16 %v2030
    %v2047 = vpack.c.b16 %v2040, %v2039
    %v2048 = vpack.c.b16 %v2042, %v2041
    %v2049 = vpack.c.b16 %v2044, %v2043
    %v2050 = vpack.c.b16 %v2046, %v2045
    %v2056 = vsel %vm1676, %v2021, 0
    %2058 = vmatprep.subr.bf16.mxu0 0
    %2059 = vmatpush1.bf16.msra.mxu0 0
    %2060 = vmatprep.subr.bf16.mxu0 0
    %2061 = vmatpush1.bf16.msra.mxu0 0
    %2062 = vmatprep.subr.bf16.mxu0 0
    %2063 = vmatpush1.bf16.msra.mxu0 0
    %2064 = vmatprep.subr.bf16.mxu0 0
    %2065 = vmatpush1.bf16.msra.mxu0 0
    %2066 = vmatprep.subr.bf16.mxu0 0
    %2067 = vmatpush1.bf16.msra.mxu0 %v2050
    %2068 = vmatprep.subr.bf16.mxu0 0
    %2069 = vmatpush1.bf16.msra.mxu0 %v2049
    %2070 = vmatprep.subr.bf16.mxu0 0
    %2071 = vmatpush1.bf16.msra.mxu0 %v2048
    %2072 = vmatprep.subr.bf16.mxu0 0
    %2073 = vmatpush1.bf16.msra.mxu0 %v2047
    %2074 = vmatprep.subr.bf16.mxu0 0
    %2075 = vmatpush2.bf16.msra.mxu0 0
    %2076 = vmatprep.subr.bf16.mxu0 0
    %2077 = vmatpush2.bf16.msra.mxu0 0
    %2078 = vmatprep.subr.bf16.mxu0 0
    %2079 = vmatpush2.bf16.msra.mxu0 0
    %2080 = vmatprep.subr.bf16.mxu0 0
    %2081 = vmatpush2.bf16.msra.mxu0 0
    %2082 = vmatprep.subr.bf16.mxu0 0
    %2083 = vmatpush2.bf16.msra.mxu0 0
    %2084 = vmatprep.subr.bf16.mxu0 0
    %2085 = vmatpush2.bf16.msra.mxu0 0
    %2086 = vmatprep.subr.bf16.mxu0 0
    %2087 = vmatpush2.bf16.msra.mxu0 0
    %2088 = vmatprep.subr.bf16.mxu0 0
    %2089 = vmatpush2.bf16.msra.mxu0 0
    %2090 = vmatprep.mubr.bf16.mxu0 0
    %2091 = vmatmul.mubr.bf16.gmra.mxu0 %v2056
    %v2092 = vpop.f32.mrf.mxu0
    %v2093 = vadd.f32 0.0, %v2092
    %v2094 = vpop.f32.mrf.mxu0
    %v2095 = vpop.f32.mrf.mxu0
    %v2096 = vpop.f32.mrf.mxu0
    %2097 = vdwg.mxu0
    %v2098 = vadd.f32 %v1971, %v2093
    %s2099 = scalar_lea.vmem %s5, 12
    %v2100 = vld [vmem:[%s2099] sm:$0xf]
    %v2102 = vsel %vm545, %v2100, 0
    %2104 = vmatprep.subr.bf16.mxu0 0
    %2105 = vmatpush1.bf16.msra.mxu0 0
    %2106 = vmatprep.subr.bf16.mxu0 0
    %2107 = vmatpush1.bf16.msra.mxu0 0
    %2108 = vmatprep.subr.bf16.mxu0 0
    %2109 = vmatpush1.bf16.msra.mxu0 0
    %2110 = vmatprep.subr.bf16.mxu0 0
    %2111 = vmatpush1.bf16.msra.mxu0 0
    %2112 = vmatprep.subr.bf16.mxu0 0
    %2113 = vmatpush1.bf16.msra.mxu0 0
    %2114 = vmatprep.subr.bf16.mxu0 0
    %2115 = vmatpush1.bf16.msra.mxu0 0
    %2116 = vmatprep.subr.bf16.mxu0 0
    %2117 = vmatpush1.bf16.msra.mxu0 %v1733
    %2118 = vmatprep.subr.bf16.mxu0 0
    %2119 = vmatpush1.bf16.msra.mxu0 %v1732
    %2120 = vmatprep.subr.bf16.mxu0 0
    %2121 = vmatpush2.bf16.msra.mxu0 0
    %2122 = vmatprep.subr.bf16.mxu0 0
    %2123 = vmatpush2.bf16.msra.mxu0 0
    %2124 = vmatprep.subr.bf16.mxu0 0
    %2125 = vmatpush2.bf16.msra.mxu0 0
    %2126 = vmatprep.subr.bf16.mxu0 0
    %2127 = vmatpush2.bf16.msra.mxu0 0
    %2128 = vmatprep.subr.bf16.mxu0 0
    %2129 = vmatpush2.bf16.msra.mxu0 0
    %2130 = vmatprep.subr.bf16.mxu0 0
    %2131 = vmatpush2.bf16.msra.mxu0 0
    %2132 = vmatprep.subr.bf16.mxu0 0
    %2133 = vmatpush2.bf16.msra.mxu0 0
    %2134 = vmatprep.subr.bf16.mxu0 0
    %2135 = vmatpush2.bf16.msra.mxu0 0
    %2136 = vmatprep.mubr.bf16.mxu0 0
    %2137 = vmatmul.mubr.bf16.gmra.mxu0 %v2102
    %v2138 = vpop.f32.mrf.mxu0
    %v2139 = vadd.f32 0.0, %v2138
    %v2140 = vpop.f32.mrf.mxu0
    %v2141 = vpop.f32.mrf.mxu0
    %v2142 = vpop.f32.mrf.mxu0
    %2143 = vdwg.mxu0
    %v2144 = vpack.c.bf16 %v2139, %v2139
    %s2145 = scalar_lea.vmem [#allocation6], 96
    %v2146 = vld [vmem:[%s2145] sm:$0xf]
    %v2147 = vld [vmem:[%s2145 + $0x4] sm:$0xf]
    %v2148 = vld [vmem:[%s2145 + $0x8] sm:$0xf]
    %v2149 = vld [vmem:[%s2145 + $0xc] sm:$0xf]
    %v2150 = vld [vmem:[%s2145 + $0x10] sm:$0xf]
    %v2151 = vld [vmem:[%s2145 + $0x14] sm:$0xf]
    %v2152 = vld [vmem:[%s2145 + $0x18] sm:$0xf]
    %v2153 = vld [vmem:[%s2145 + $0x1c] sm:$0xf]
    %v2162 = vunpack.c.l.b16 %v2146
    %v2163 = vunpack.c.l.b16 %v2147
    %v2164 = vunpack.c.l.b16 %v2148
    %v2165 = vunpack.c.l.b16 %v2149
    %v2166 = vunpack.c.l.b16 %v2150
    %v2167 = vunpack.c.l.b16 %v2151
    %v2168 = vunpack.c.l.b16 %v2152
    %v2169 = vunpack.c.l.b16 %v2153
    %v2170 = vpack.c.b16 %v2163, %v2162
    %v2171 = vpack.c.b16 %v2165, %v2164
    %v2172 = vpack.c.b16 %v2167, %v2166
    %v2173 = vpack.c.b16 %v2169, %v2168
    %v2179 = vsel %vm1676, %v2144, 0
    %2181 = vmatprep.subr.bf16.mxu0 0
    %2182 = vmatpush1.bf16.msra.mxu0 0
    %2183 = vmatprep.subr.bf16.mxu0 0
    %2184 = vmatpush1.bf16.msra.mxu0 0
    %2185 = vmatprep.subr.bf16.mxu0 0
    %2186 = vmatpush1.bf16.msra.mxu0 0
    %2187 = vmatprep.subr.bf16.mxu0 0
    %2188 = vmatpush1.bf16.msra.mxu0 0
    %2189 = vmatprep.subr.bf16.mxu0 0
    %2190 = vmatpush1.bf16.msra.mxu0 %v2173
    %2191 = vmatprep.subr.bf16.mxu0 0
    %2192 = vmatpush1.bf16.msra.mxu0 %v2172
    %2193 = vmatprep.subr.bf16.mxu0 0
    %2194 = vmatpush1.bf16.msra.mxu0 %v2171
    %2195 = vmatprep.subr.bf16.mxu0 0
    %2196 = vmatpush1.bf16.msra.mxu0 %v2170
    %2197 = vmatprep.subr.bf16.mxu0 0
    %2198 = vmatpush2.bf16.msra.mxu0 0
    %2199 = vmatprep.subr.bf16.mxu0 0
    %2200 = vmatpush2.bf16.msra.mxu0 0
    %2201 = vmatprep.subr.bf16.mxu0 0
    %2202 = vmatpush2.bf16.msra.mxu0 0
    %2203 = vmatprep.subr.bf16.mxu0 0
    %2204 = vmatpush2.bf16.msra.mxu0 0
    %2205 = vmatprep.subr.bf16.mxu0 0
    %2206 = vmatpush2.bf16.msra.mxu0 0
    %2207 = vmatprep.subr.bf16.mxu0 0
    %2208 = vmatpush2.bf16.msra.mxu0 0
    %2209 = vmatprep.subr.bf16.mxu0 0
    %2210 = vmatpush2.bf16.msra.mxu0 0
    %2211 = vmatprep.subr.bf16.mxu0 0
    %2212 = vmatpush2.bf16.msra.mxu0 0
    %2213 = vmatprep.mubr.bf16.mxu0 0
    %2214 = vmatmul.mubr.bf16.gmra.mxu0 %v2179
    %v2215 = vpop.f32.mrf.mxu0
    %v2216 = vadd.f32 0.0, %v2215
    %v2217 = vpop.f32.mrf.mxu0
    %v2218 = vpop.f32.mrf.mxu0
    %v2219 = vpop.f32.mrf.mxu0
    %2220 = vdwg.mxu0
    %v2221 = vadd.f32 %v2098, %v2216
    %s2222 = scalar_lea.vmem %s5, 16
    %v2223 = vld [vmem:[%s2222] sm:$0xf]
    %v2225 = vsel %vm545, %v2223, 0
    %2227 = vmatprep.subr.bf16.mxu0 0
    %2228 = vmatpush1.bf16.msra.mxu0 0
    %2229 = vmatprep.subr.bf16.mxu0 0
    %2230 = vmatpush1.bf16.msra.mxu0 0
    %2231 = vmatprep.subr.bf16.mxu0 0
    %2232 = vmatpush1.bf16.msra.mxu0 0
    %2233 = vmatprep.subr.bf16.mxu0 0
    %2234 = vmatpush1.bf16.msra.mxu0 0
    %2235 = vmatprep.subr.bf16.mxu0 0
    %2236 = vmatpush1.bf16.msra.mxu0 0
    %2237 = vmatprep.subr.bf16.mxu0 0
    %2238 = vmatpush1.bf16.msra.mxu0 0
    %2239 = vmatprep.subr.bf16.mxu0 0
    %2240 = vmatpush1.bf16.msra.mxu0 %v1733
    %2241 = vmatprep.subr.bf16.mxu0 0
    %2242 = vmatpush1.bf16.msra.mxu0 %v1732
    %2243 = vmatprep.subr.bf16.mxu0 0
    %2244 = vmatpush2.bf16.msra.mxu0 0
    %2245 = vmatprep.subr.bf16.mxu0 0
    %2246 = vmatpush2.bf16.msra.mxu0 0
    %2247 = vmatprep.subr.bf16.mxu0 0
    %2248 = vmatpush2.bf16.msra.mxu0 0
    %2249 = vmatprep.subr.bf16.mxu0 0
    %2250 = vmatpush2.bf16.msra.mxu0 0
    %2251 = vmatprep.subr.bf16.mxu0 0
    %2252 = vmatpush2.bf16.msra.mxu0 0
    %2253 = vmatprep.subr.bf16.mxu0 0
    %2254 = vmatpush2.bf16.msra.mxu0 0
    %2255 = vmatprep.subr.bf16.mxu0 0
    %2256 = vmatpush2.bf16.msra.mxu0 0
    %2257 = vmatprep.subr.bf16.mxu0 0
    %2258 = vmatpush2.bf16.msra.mxu0 0
    %2259 = vmatprep.mubr.bf16.mxu0 0
    %2260 = vmatmul.mubr.bf16.gmra.mxu0 %v2225
    %v2261 = vpop.f32.mrf.mxu0
    %v2262 = vadd.f32 0.0, %v2261
    %v2263 = vpop.f32.mrf.mxu0
    %v2264 = vpop.f32.mrf.mxu0
    %v2265 = vpop.f32.mrf.mxu0
    %2266 = vdwg.mxu0
    %v2267 = vpack.c.bf16 %v2262, %v2262
    %s2268 = scalar_lea.vmem [#allocation6], 128
    %v2269 = vld [vmem:[%s2268] sm:$0xf]
    %v2270 = vld [vmem:[%s2268 + $0x4] sm:$0xf]
    %v2271 = vld [vmem:[%s2268 + $0x8] sm:$0xf]
    %v2272 = vld [vmem:[%s2268 + $0xc] sm:$0xf]
    %v2273 = vld [vmem:[%s2268 + $0x10] sm:$0xf]
    %v2274 = vld [vmem:[%s2268 + $0x14] sm:$0xf]
    %v2275 = vld [vmem:[%s2268 + $0x18] sm:$0xf]
    %v2276 = vld [vmem:[%s2268 + $0x1c] sm:$0xf]
    %v2285 = vunpack.c.l.b16 %v2269
    %v2286 = vunpack.c.l.b16 %v2270
    %v2287 = vunpack.c.l.b16 %v2271
    %v2288 = vunpack.c.l.b16 %v2272
    %v2289 = vunpack.c.l.b16 %v2273
    %v2290 = vunpack.c.l.b16 %v2274
    %v2291 = vunpack.c.l.b16 %v2275
    %v2292 = vunpack.c.l.b16 %v2276
    %v2293 = vpack.c.b16 %v2286, %v2285
    %v2294 = vpack.c.b16 %v2288, %v2287
    %v2295 = vpack.c.b16 %v2290, %v2289
    %v2296 = vpack.c.b16 %v2292, %v2291
    %v2302 = vsel %vm1676, %v2267, 0
    %2304 = vmatprep.subr.bf16.mxu0 0
    %2305 = vmatpush1.bf16.msra.mxu0 0
    %2306 = vmatprep.subr.bf16.mxu0 0
    %2307 = vmatpush1.bf16.msra.mxu0 0
    %2308 = vmatprep.subr.bf16.mxu0 0
    %2309 = vmatpush1.bf16.msra.mxu0 0
    %2310 = vmatprep.subr.bf16.mxu0 0
    %2311 = vmatpush1.bf16.msra.mxu0 0
    %2312 = vmatprep.subr.bf16.mxu0 0
    %2313 = vmatpush1.bf16.msra.mxu0 %v2296
    %2314 = vmatprep.subr.bf16.mxu0 0
    %2315 = vmatpush1.bf16.msra.mxu0 %v2295
    %2316 = vmatprep.subr.bf16.mxu0 0
    %2317 = vmatpush1.bf16.msra.mxu0 %v2294
    %2318 = vmatprep.subr.bf16.mxu0 0
    %2319 = vmatpush1.bf16.msra.mxu0 %v2293
    %2320 = vmatprep.subr.bf16.mxu0 0
    %2321 = vmatpush2.bf16.msra.mxu0 0
    %2322 = vmatprep.subr.bf16.mxu0 0
    %2323 = vmatpush2.bf16.msra.mxu0 0
    %2324 = vmatprep.subr.bf16.mxu0 0
    %2325 = vmatpush2.bf16.msra.mxu0 0
    %2326 = vmatprep.subr.bf16.mxu0 0
    %2327 = vmatpush2.bf16.msra.mxu0 0
    %2328 = vmatprep.subr.bf16.mxu0 0
    %2329 = vmatpush2.bf16.msra.mxu0 0
    %2330 = vmatprep.subr.bf16.mxu0 0
    %2331 = vmatpush2.bf16.msra.mxu0 0
    %2332 = vmatprep.subr.bf16.mxu0 0
    %2333 = vmatpush2.bf16.msra.mxu0 0
    %2334 = vmatprep.subr.bf16.mxu0 0
    %2335 = vmatpush2.bf16.msra.mxu0 0
    %2336 = vmatprep.mubr.bf16.mxu0 0
    %2337 = vmatmul.mubr.bf16.gmra.mxu0 %v2302
    %v2338 = vpop.f32.mrf.mxu0
    %v2339 = vadd.f32 0.0, %v2338
    %v2340 = vpop.f32.mrf.mxu0
    %v2341 = vpop.f32.mrf.mxu0
    %v2342 = vpop.f32.mrf.mxu0
    %2343 = vdwg.mxu0
    %v2344 = vadd.f32 %v2221, %v2339
    %s2345 = scalar_lea.vmem %s5, 20
    %v2346 = vld [vmem:[%s2345] sm:$0xf]
    %v2348 = vsel %vm545, %v2346, 0
    %2350 = vmatprep.subr.bf16.mxu0 0
    %2351 = vmatpush1.bf16.msra.mxu0 0
    %2352 = vmatprep.subr.bf16.mxu0 0
    %2353 = vmatpush1.bf16.msra.mxu0 0
    %2354 = vmatprep.subr.bf16.mxu0 0
    %2355 = vmatpush1.bf16.msra.mxu0 0
    %2356 = vmatprep.subr.bf16.mxu0 0
    %2357 = vmatpush1.bf16.msra.mxu0 0
    %2358 = vmatprep.subr.bf16.mxu0 0
    %2359 = vmatpush1.bf16.msra.mxu0 0
    %2360 = vmatprep.subr.bf16.mxu0 0
    %2361 = vmatpush1.bf16.msra.mxu0 0
    %2362 = vmatprep.subr.bf16.mxu0 0
    %2363 = vmatpush1.bf16.msra.mxu0 %v1733
    %2364 = vmatprep.subr.bf16.mxu0 0
    %2365 = vmatpush1.bf16.msra.mxu0 %v1732
    %2366 = vmatprep.subr.bf16.mxu0 0
    %2367 = vmatpush2.bf16.msra.mxu0 0
    %2368 = vmatprep.subr.bf16.mxu0 0
    %2369 = vmatpush2.bf16.msra.mxu0 0
    %2370 = vmatprep.subr.bf16.mxu0 0
    %2371 = vmatpush2.bf16.msra.mxu0 0
    %2372 = vmatprep.subr.bf16.mxu0 0
    %2373 = vmatpush2.bf16.msra.mxu0 0
    %2374 = vmatprep.subr.bf16.mxu0 0
    %2375 = vmatpush2.bf16.msra.mxu0 0
    %2376 = vmatprep.subr.bf16.mxu0 0
    %2377 = vmatpush2.bf16.msra.mxu0 0
    %2378 = vmatprep.subr.bf16.mxu0 0
    %2379 = vmatpush2.bf16.msra.mxu0 0
    %2380 = vmatprep.subr.bf16.mxu0 0
    %2381 = vmatpush2.bf16.msra.mxu0 0
    %2382 = vmatprep.mubr.bf16.mxu0 0
    %2383 = vmatmul.mubr.bf16.gmra.mxu0 %v2348
    %v2384 = vpop.f32.mrf.mxu0
    %v2385 = vadd.f32 0.0, %v2384
    %v2386 = vpop.f32.mrf.mxu0
    %v2387 = vpop.f32.mrf.mxu0
    %v2388 = vpop.f32.mrf.mxu0
    %2389 = vdwg.mxu0
    %v2390 = vpack.c.bf16 %v2385, %v2385
    %s2391 = scalar_lea.vmem [#allocation6], 160
    %v2392 = vld [vmem:[%s2391] sm:$0xf]
    %v2393 = vld [vmem:[%s2391 + $0x4] sm:$0xf]
    %v2394 = vld [vmem:[%s2391 + $0x8] sm:$0xf]
    %v2395 = vld [vmem:[%s2391 + $0xc] sm:$0xf]
    %v2396 = vld [vmem:[%s2391 + $0x10] sm:$0xf]
    %v2397 = vld [vmem:[%s2391 + $0x14] sm:$0xf]
    %v2398 = vld [vmem:[%s2391 + $0x18] sm:$0xf]
    %v2399 = vld [vmem:[%s2391 + $0x1c] sm:$0xf]
    %v2408 = vunpack.c.l.b16 %v2392
    %v2409 = vunpack.c.l.b16 %v2393
    %v2410 = vunpack.c.l.b16 %v2394
    %v2411 = vunpack.c.l.b16 %v2395
    %v2412 = vunpack.c.l.b16 %v2396
    %v2413 = vunpack.c.l.b16 %v2397
    %v2414 = vunpack.c.l.b16 %v2398
    %v2415 = vunpack.c.l.b16 %v2399
    %v2416 = vpack.c.b16 %v2409, %v2408
    %v2417 = vpack.c.b16 %v2411, %v2410
    %v2418 = vpack.c.b16 %v2413, %v2412
    %v2419 = vpack.c.b16 %v2415, %v2414
    %v2425 = vsel %vm1676, %v2390, 0
    %2427 = vmatprep.subr.bf16.mxu0 0
    %2428 = vmatpush1.bf16.msra.mxu0 0
    %2429 = vmatprep.subr.bf16.mxu0 0
    %2430 = vmatpush1.bf16.msra.mxu0 0
    %2431 = vmatprep.subr.bf16.mxu0 0
    %2432 = vmatpush1.bf16.msra.mxu0 0
    %2433 = vmatprep.subr.bf16.mxu0 0
    %2434 = vmatpush1.bf16.msra.mxu0 0
    %2435 = vmatprep.subr.bf16.mxu0 0
    %2436 = vmatpush1.bf16.msra.mxu0 %v2419
    %2437 = vmatprep.subr.bf16.mxu0 0
    %2438 = vmatpush1.bf16.msra.mxu0 %v2418
    %2439 = vmatprep.subr.bf16.mxu0 0
    %2440 = vmatpush1.bf16.msra.mxu0 %v2417
    %2441 = vmatprep.subr.bf16.mxu0 0
    %2442 = vmatpush1.bf16.msra.mxu0 %v2416
    %2443 = vmatprep.subr.bf16.mxu0 0
    %2444 = vmatpush2.bf16.msra.mxu0 0
    %2445 = vmatprep.subr.bf16.mxu0 0
    %2446 = vmatpush2.bf16.msra.mxu0 0
    %2447 = vmatprep.subr.bf16.mxu0 0
    %2448 = vmatpush2.bf16.msra.mxu0 0
    %2449 = vmatprep.subr.bf16.mxu0 0
    %2450 = vmatpush2.bf16.msra.mxu0 0
    %2451 = vmatprep.subr.bf16.mxu0 0
    %2452 = vmatpush2.bf16.msra.mxu0 0
    %2453 = vmatprep.subr.bf16.mxu0 0
    %2454 = vmatpush2.bf16.msra.mxu0 0
    %2455 = vmatprep.subr.bf16.mxu0 0
    %2456 = vmatpush2.bf16.msra.mxu0 0
    %2457 = vmatprep.subr.bf16.mxu0 0
    %2458 = vmatpush2.bf16.msra.mxu0 0
    %2459 = vmatprep.mubr.bf16.mxu0 0
    %2460 = vmatmul.mubr.bf16.gmra.mxu0 %v2425
    %v2461 = vpop.f32.mrf.mxu0
    %v2462 = vadd.f32 0.0, %v2461
    %v2463 = vpop.f32.mrf.mxu0
    %v2464 = vpop.f32.mrf.mxu0
    %v2465 = vpop.f32.mrf.mxu0
    %2466 = vdwg.mxu0
    %v2467 = vadd.f32 %v2344, %v2462
    %s2468 = scalar_lea.vmem %s5, 24
    %v2469 = vld [vmem:[%s2468] sm:$0xf]
    %v2471 = vsel %vm545, %v2469, 0
    %2473 = vmatprep.subr.bf16.mxu0 0
    %2474 = vmatpush1.bf16.msra.mxu0 0
    %2475 = vmatprep.subr.bf16.mxu0 0
    %2476 = vmatpush1.bf16.msra.mxu0 0
    %2477 = vmatprep.subr.bf16.mxu0 0
    %2478 = vmatpush1.bf16.msra.mxu0 0
    %2479 = vmatprep.subr.bf16.mxu0 0
    %2480 = vmatpush1.bf16.msra.mxu0 0
    %2481 = vmatprep.subr.bf16.mxu0 0
    %2482 = vmatpush1.bf16.msra.mxu0 0
    %2483 = vmatprep.subr.bf16.mxu0 0
    %2484 = vmatpush1.bf16.msra.mxu0 0
    %2485 = vmatprep.subr.bf16.mxu0 0
    %2486 = vmatpush1.bf16.msra.mxu0 %v1733
    %2487 = vmatprep.subr.bf16.mxu0 0
    %2488 = vmatpush1.bf16.msra.mxu0 %v1732
    %2489 = vmatprep.subr.bf16.mxu0 0
    %2490 = vmatpush2.bf16.msra.mxu0 0
    %2491 = vmatprep.subr.bf16.mxu0 0
    %2492 = vmatpush2.bf16.msra.mxu0 0
    %2493 = vmatprep.subr.bf16.mxu0 0
    %2494 = vmatpush2.bf16.msra.mxu0 0
    %2495 = vmatprep.subr.bf16.mxu0 0
    %2496 = vmatpush2.bf16.msra.mxu0 0
    %2497 = vmatprep.subr.bf16.mxu0 0
    %2498 = vmatpush2.bf16.msra.mxu0 0
    %2499 = vmatprep.subr.bf16.mxu0 0
    %2500 = vmatpush2.bf16.msra.mxu0 0
    %2501 = vmatprep.subr.bf16.mxu0 0
    %2502 = vmatpush2.bf16.msra.mxu0 0
    %2503 = vmatprep.subr.bf16.mxu0 0
    %2504 = vmatpush2.bf16.msra.mxu0 0
    %2505 = vmatprep.mubr.bf16.mxu0 0
    %2506 = vmatmul.mubr.bf16.gmra.mxu0 %v2471
    %v2507 = vpop.f32.mrf.mxu0
    %v2508 = vadd.f32 0.0, %v2507
    %v2509 = vpop.f32.mrf.mxu0
    %v2510 = vpop.f32.mrf.mxu0
    %v2511 = vpop.f32.mrf.mxu0
    %2512 = vdwg.mxu0
    %v2513 = vpack.c.bf16 %v2508, %v2508
    %s2514 = scalar_lea.vmem [#allocation6], 192
    %v2515 = vld [vmem:[%s2514] sm:$0xf]
    %v2516 = vld [vmem:[%s2514 + $0x4] sm:$0xf]
    %v2517 = vld [vmem:[%s2514 + $0x8] sm:$0xf]
    %v2518 = vld [vmem:[%s2514 + $0xc] sm:$0xf]
    %v2519 = vld [vmem:[%s2514 + $0x10] sm:$0xf]
    %v2520 = vld [vmem:[%s2514 + $0x14] sm:$0xf]
    %v2521 = vld [vmem:[%s2514 + $0x18] sm:$0xf]
    %v2522 = vld [vmem:[%s2514 + $0x1c] sm:$0xf]
    %v2531 = vunpack.c.l.b16 %v2515
    %v2532 = vunpack.c.l.b16 %v2516
    %v2533 = vunpack.c.l.b16 %v2517
    %v2534 = vunpack.c.l.b16 %v2518
    %v2535 = vunpack.c.l.b16 %v2519
    %v2536 = vunpack.c.l.b16 %v2520
    %v2537 = vunpack.c.l.b16 %v2521
    %v2538 = vunpack.c.l.b16 %v2522
    %v2539 = vpack.c.b16 %v2532, %v2531
    %v2540 = vpack.c.b16 %v2534, %v2533
    %v2541 = vpack.c.b16 %v2536, %v2535
    %v2542 = vpack.c.b16 %v2538, %v2537
    %v2548 = vsel %vm1676, %v2513, 0
    %2550 = vmatprep.subr.bf16.mxu0 0
    %2551 = vmatpush1.bf16.msra.mxu0 0
    %2552 = vmatprep.subr.bf16.mxu0 0
    %2553 = vmatpush1.bf16.msra.mxu0 0
    %2554 = vmatprep.subr.bf16.mxu0 0
    %2555 = vmatpush1.bf16.msra.mxu0 0
    %2556 = vmatprep.subr.bf16.mxu0 0
    %2557 = vmatpush1.bf16.msra.mxu0 0
    %2558 = vmatprep.subr.bf16.mxu0 0
    %2559 = vmatpush1.bf16.msra.mxu0 %v2542
    %2560 = vmatprep.subr.bf16.mxu0 0
    %2561 = vmatpush1.bf16.msra.mxu0 %v2541
    %2562 = vmatprep.subr.bf16.mxu0 0
    %2563 = vmatpush1.bf16.msra.mxu0 %v2540
    %2564 = vmatprep.subr.bf16.mxu0 0
    %2565 = vmatpush1.bf16.msra.mxu0 %v2539
    %2566 = vmatprep.subr.bf16.mxu0 0
    %2567 = vmatpush2.bf16.msra.mxu0 0
    %2568 = vmatprep.subr.bf16.mxu0 0
    %2569 = vmatpush2.bf16.msra.mxu0 0
    %2570 = vmatprep.subr.bf16.mxu0 0
    %2571 = vmatpush2.bf16.msra.mxu0 0
    %2572 = vmatprep.subr.bf16.mxu0 0
    %2573 = vmatpush2.bf16.msra.mxu0 0
    %2574 = vmatprep.subr.bf16.mxu0 0
    %2575 = vmatpush2.bf16.msra.mxu0 0
    %2576 = vmatprep.subr.bf16.mxu0 0
    %2577 = vmatpush2.bf16.msra.mxu0 0
    %2578 = vmatprep.subr.bf16.mxu0 0
    %2579 = vmatpush2.bf16.msra.mxu0 0
    %2580 = vmatprep.subr.bf16.mxu0 0
    %2581 = vmatpush2.bf16.msra.mxu0 0
    %2582 = vmatprep.mubr.bf16.mxu0 0
    %2583 = vmatmul.mubr.bf16.gmra.mxu0 %v2548
    %v2584 = vpop.f32.mrf.mxu0
    %v2585 = vadd.f32 0.0, %v2584
    %v2586 = vpop.f32.mrf.mxu0
    %v2587 = vpop.f32.mrf.mxu0
    %v2588 = vpop.f32.mrf.mxu0
    %2589 = vdwg.mxu0
    %v2590 = vadd.f32 %v2467, %v2585
    %s2591 = scalar_lea.vmem %s5, 28
    %v2592 = vld [vmem:[%s2591] sm:$0xf]
    %v2594 = vsel %vm545, %v2592, 0
    %2596 = vmatprep.subr.bf16.mxu0 0
    %2597 = vmatpush1.bf16.msra.mxu0 0
    %2598 = vmatprep.subr.bf16.mxu0 0
    %2599 = vmatpush1.bf16.msra.mxu0 0
    %2600 = vmatprep.subr.bf16.mxu0 0
    %2601 = vmatpush1.bf16.msra.mxu0 0
    %2602 = vmatprep.subr.bf16.mxu0 0
    %2603 = vmatpush1.bf16.msra.mxu0 0
    %2604 = vmatprep.subr.bf16.mxu0 0
    %2605 = vmatpush1.bf16.msra.mxu0 0
    %2606 = vmatprep.subr.bf16.mxu0 0
    %2607 = vmatpush1.bf16.msra.mxu0 0
    %2608 = vmatprep.subr.bf16.mxu0 0
    %2609 = vmatpush1.bf16.msra.mxu0 %v1733
    %2610 = vmatprep.subr.bf16.mxu0 0
    %2611 = vmatpush1.bf16.msra.mxu0 %v1732
    %2612 = vmatprep.subr.bf16.mxu0 0
    %2613 = vmatpush2.bf16.msra.mxu0 0
    %2614 = vmatprep.subr.bf16.mxu0 0
    %2615 = vmatpush2.bf16.msra.mxu0 0
    %2616 = vmatprep.subr.bf16.mxu0 0
    %2617 = vmatpush2.bf16.msra.mxu0 0
    %2618 = vmatprep.subr.bf16.mxu0 0
    %2619 = vmatpush2.bf16.msra.mxu0 0
    %2620 = vmatprep.subr.bf16.mxu0 0
    %2621 = vmatpush2.bf16.msra.mxu0 0
    %2622 = vmatprep.subr.bf16.mxu0 0
    %2623 = vmatpush2.bf16.msra.mxu0 0
    %2624 = vmatprep.subr.bf16.mxu0 0
    %2625 = vmatpush2.bf16.msra.mxu0 0
    %2626 = vmatprep.subr.bf16.mxu0 0
    %2627 = vmatpush2.bf16.msra.mxu0 0
    %2628 = vmatprep.mubr.bf16.mxu0 0
    %2629 = vmatmul.mubr.bf16.gmra.mxu0 %v2594
    %v2630 = vpop.f32.mrf.mxu0
    %v2631 = vadd.f32 0.0, %v2630
    %v2632 = vpop.f32.mrf.mxu0
    %v2633 = vpop.f32.mrf.mxu0
    %v2634 = vpop.f32.mrf.mxu0
    %2635 = vdwg.mxu0
    %v2636 = vpack.c.bf16 %v2631, %v2631
    %s2637 = scalar_lea.vmem [#allocation6], 224
    %v2638 = vld [vmem:[%s2637] sm:$0xf]
    %v2639 = vld [vmem:[%s2637 + $0x4] sm:$0xf]
    %v2640 = vld [vmem:[%s2637 + $0x8] sm:$0xf]
    %v2641 = vld [vmem:[%s2637 + $0xc] sm:$0xf]
    %v2642 = vld [vmem:[%s2637 + $0x10] sm:$0xf]
    %v2643 = vld [vmem:[%s2637 + $0x14] sm:$0xf]
    %v2644 = vld [vmem:[%s2637 + $0x18] sm:$0xf]
    %v2645 = vld [vmem:[%s2637 + $0x1c] sm:$0xf]
    %v2654 = vunpack.c.l.b16 %v2638
    %v2655 = vunpack.c.l.b16 %v2639
    %v2656 = vunpack.c.l.b16 %v2640
    %v2657 = vunpack.c.l.b16 %v2641
    %v2658 = vunpack.c.l.b16 %v2642
    %v2659 = vunpack.c.l.b16 %v2643
    %v2660 = vunpack.c.l.b16 %v2644
    %v2661 = vunpack.c.l.b16 %v2645
    %v2662 = vpack.c.b16 %v2655, %v2654
    %v2663 = vpack.c.b16 %v2657, %v2656
    %v2664 = vpack.c.b16 %v2659, %v2658
    %v2665 = vpack.c.b16 %v2661, %v2660
    %v2671 = vsel %vm1676, %v2636, 0
    %2673 = vmatprep.subr.bf16.mxu0 0
    %2674 = vmatpush1.bf16.msra.mxu0 0
    %2675 = vmatprep.subr.bf16.mxu0 0
    %2676 = vmatpush1.bf16.msra.mxu0 0
    %2677 = vmatprep.subr.bf16.mxu0 0
    %2678 = vmatpush1.bf16.msra.mxu0 0
    %2679 = vmatprep.subr.bf16.mxu0 0
    %2680 = vmatpush1.bf16.msra.mxu0 0
    %2681 = vmatprep.subr.bf16.mxu0 0
    %2682 = vmatpush1.bf16.msra.mxu0 %v2665
    %2683 = vmatprep.subr.bf16.mxu0 0
    %2684 = vmatpush1.bf16.msra.mxu0 %v2664
    %2685 = vmatprep.subr.bf16.mxu0 0
    %2686 = vmatpush1.bf16.msra.mxu0 %v2663
    %2687 = vmatprep.subr.bf16.mxu0 0
    %2688 = vmatpush1.bf16.msra.mxu0 %v2662
    %2689 = vmatprep.subr.bf16.mxu0 0
    %2690 = vmatpush2.bf16.msra.mxu0 0
    %2691 = vmatprep.subr.bf16.mxu0 0
    %2692 = vmatpush2.bf16.msra.mxu0 0
    %2693 = vmatprep.subr.bf16.mxu0 0
    %2694 = vmatpush2.bf16.msra.mxu0 0
    %2695 = vmatprep.subr.bf16.mxu0 0
    %2696 = vmatpush2.bf16.msra.mxu0 0
    %2697 = vmatprep.subr.bf16.mxu0 0
    %2698 = vmatpush2.bf16.msra.mxu0 0
    %2699 = vmatprep.subr.bf16.mxu0 0
    %2700 = vmatpush2.bf16.msra.mxu0 0
    %2701 = vmatprep.subr.bf16.mxu0 0
    %2702 = vmatpush2.bf16.msra.mxu0 0
    %2703 = vmatprep.subr.bf16.mxu0 0
    %2704 = vmatpush2.bf16.msra.mxu0 0
    %2705 = vmatprep.mubr.bf16.mxu0 0
    %2706 = vmatmul.mubr.bf16.gmra.mxu0 %v2671
    %v2707 = vpop.f32.mrf.mxu0
    %v2708 = vadd.f32 0.0, %v2707
    %v2709 = vpop.f32.mrf.mxu0
    %v2710 = vpop.f32.mrf.mxu0
    %v2711 = vpop.f32.mrf.mxu0
    %2712 = vdwg.mxu0
    %v2713 = vadd.f32 %v2590, %v2708
    %s2714 = scalar_lea.vmem %s5, 32
    %v2715 = vld [vmem:[%s2714] sm:$0xf]
    %v2717 = vsel %vm545, %v2715, 0
    %2719 = vmatprep.subr.bf16.mxu0 0
    %2720 = vmatpush1.bf16.msra.mxu0 0
    %2721 = vmatprep.subr.bf16.mxu0 0
    %2722 = vmatpush1.bf16.msra.mxu0 0
    %2723 = vmatprep.subr.bf16.mxu0 0
    %2724 = vmatpush1.bf16.msra.mxu0 0
    %2725 = vmatprep.subr.bf16.mxu0 0
    %2726 = vmatpush1.bf16.msra.mxu0 0
    %2727 = vmatprep.subr.bf16.mxu0 0
    %2728 = vmatpush1.bf16.msra.mxu0 0
    %2729 = vmatprep.subr.bf16.mxu0 0
    %2730 = vmatpush1.bf16.msra.mxu0 0
    %2731 = vmatprep.subr.bf16.mxu0 0
    %2732 = vmatpush1.bf16.msra.mxu0 %v1733
    %2733 = vmatprep.subr.bf16.mxu0 0
    %2734 = vmatpush1.bf16.msra.mxu0 %v1732
    %2735 = vmatprep.subr.bf16.mxu0 0
    %2736 = vmatpush2.bf16.msra.mxu0 0
    %2737 = vmatprep.subr.bf16.mxu0 0
    %2738 = vmatpush2.bf16.msra.mxu0 0
    %2739 = vmatprep.subr.bf16.mxu0 0
    %2740 = vmatpush2.bf16.msra.mxu0 0
    %2741 = vmatprep.subr.bf16.mxu0 0
    %2742 = vmatpush2.bf16.msra.mxu0 0
    %2743 = vmatprep.subr.bf16.mxu0 0
    %2744 = vmatpush2.bf16.msra.mxu0 0
    %2745 = vmatprep.subr.bf16.mxu0 0
    %2746 = vmatpush2.bf16.msra.mxu0 0
    %2747 = vmatprep.subr.bf16.mxu0 0
    %2748 = vmatpush2.bf16.msra.mxu0 0
    %2749 = vmatprep.subr.bf16.mxu0 0
    %2750 = vmatpush2.bf16.msra.mxu0 0
    %2751 = vmatprep.mubr.bf16.mxu0 0
    %2752 = vmatmul.mubr.bf16.gmra.mxu0 %v2717
    %v2753 = vpop.f32.mrf.mxu0
    %v2754 = vadd.f32 0.0, %v2753
    %v2755 = vpop.f32.mrf.mxu0
    %v2756 = vpop.f32.mrf.mxu0
    %v2757 = vpop.f32.mrf.mxu0
    %2758 = vdwg.mxu0
    %v2759 = vpack.c.bf16 %v2754, %v2754
    %s2760 = scalar_lea.vmem [#allocation6], 256
    %v2761 = vld [vmem:[%s2760] sm:$0xf]
    %v2762 = vld [vmem:[%s2760 + $0x4] sm:$0xf]
    %v2763 = vld [vmem:[%s2760 + $0x8] sm:$0xf]
    %v2764 = vld [vmem:[%s2760 + $0xc] sm:$0xf]
    %v2765 = vld [vmem:[%s2760 + $0x10] sm:$0xf]
    %v2766 = vld [vmem:[%s2760 + $0x14] sm:$0xf]
    %v2767 = vld [vmem:[%s2760 + $0x18] sm:$0xf]
    %v2768 = vld [vmem:[%s2760 + $0x1c] sm:$0xf]
    %v2777 = vunpack.c.l.b16 %v2761
    %v2778 = vunpack.c.l.b16 %v2762
    %v2779 = vunpack.c.l.b16 %v2763
    %v2780 = vunpack.c.l.b16 %v2764
    %v2781 = vunpack.c.l.b16 %v2765
    %v2782 = vunpack.c.l.b16 %v2766
    %v2783 = vunpack.c.l.b16 %v2767
    %v2784 = vunpack.c.l.b16 %v2768
    %v2785 = vpack.c.b16 %v2778, %v2777
    %v2786 = vpack.c.b16 %v2780, %v2779
    %v2787 = vpack.c.b16 %v2782, %v2781
    %v2788 = vpack.c.b16 %v2784, %v2783
    %v2794 = vsel %vm1676, %v2759, 0
    %2796 = vmatprep.subr.bf16.mxu0 0
    %2797 = vmatpush1.bf16.msra.mxu0 0
    %2798 = vmatprep.subr.bf16.mxu0 0
    %2799 = vmatpush1.bf16.msra.mxu0 0
    %2800 = vmatprep.subr.bf16.mxu0 0
    %2801 = vmatpush1.bf16.msra.mxu0 0
    %2802 = vmatprep.subr.bf16.mxu0 0
    %2803 = vmatpush1.bf16.msra.mxu0 0
    %2804 = vmatprep.subr.bf16.mxu0 0
    %2805 = vmatpush1.bf16.msra.mxu0 %v2788
    %2806 = vmatprep.subr.bf16.mxu0 0
    %2807 = vmatpush1.bf16.msra.mxu0 %v2787
    %2808 = vmatprep.subr.bf16.mxu0 0
    %2809 = vmatpush1.bf16.msra.mxu0 %v2786
    %2810 = vmatprep.subr.bf16.mxu0 0
    %2811 = vmatpush1.bf16.msra.mxu0 %v2785
    %2812 = vmatprep.subr.bf16.mxu0 0
    %2813 = vmatpush2.bf16.msra.mxu0 0
    %2814 = vmatprep.subr.bf16.mxu0 0
    %2815 = vmatpush2.bf16.msra.mxu0 0
    %2816 = vmatprep.subr.bf16.mxu0 0
    %2817 = vmatpush2.bf16.msra.mxu0 0
    %2818 = vmatprep.subr.bf16.mxu0 0
    %2819 = vmatpush2.bf16.msra.mxu0 0
    %2820 = vmatprep.subr.bf16.mxu0 0
    %2821 = vmatpush2.bf16.msra.mxu0 0
    %2822 = vmatprep.subr.bf16.mxu0 0
    %2823 = vmatpush2.bf16.msra.mxu0 0
    %2824 = vmatprep.subr.bf16.mxu0 0
    %2825 = vmatpush2.bf16.msra.mxu0 0
    %2826 = vmatprep.subr.bf16.mxu0 0
    %2827 = vmatpush2.bf16.msra.mxu0 0
    %2828 = vmatprep.mubr.bf16.mxu0 0
    %2829 = vmatmul.mubr.bf16.gmra.mxu0 %v2794
    %v2830 = vpop.f32.mrf.mxu0
    %v2831 = vadd.f32 0.0, %v2830
    %v2832 = vpop.f32.mrf.mxu0
    %v2833 = vpop.f32.mrf.mxu0
    %v2834 = vpop.f32.mrf.mxu0
    %2835 = vdwg.mxu0
    %v2836 = vadd.f32 %v2713, %v2831
    %v2837 = vrot.slane %v2836, 4
    %v2838 = vadd.f32 %v2836, %v2837
    %v2839 = vrot.slane %v2838, 2
    %v2840 = vadd.f32 %v2838, %v2839
    %v2841 = vrot.slane %v2840, 1
    %v2842 = vadd.f32 %v2840, %v2841
    %v2843 = vrcp.pop 8.0
    %v2844 = vmul.f32 %v2842, %v2843
    %v2845 = vsub.f32 %v2836, %v2844
    %v2846 = vmul.f32 %v2845, %v2845
    %v2847 = vrot.slane %v2846, 4
    %v2848 = vadd.f32 %v2846, %v2847
    %v2849 = vrot.slane %v2848, 2
    %v2850 = vadd.f32 %v2848, %v2849
    %v2851 = vrot.slane %v2850, 1
    %v2852 = vadd.f32 %v2850, %v2851
    %v2853 = vmul.f32 %v2852, %v2843
    %v2854 = vadd.f32 %v2853, 1e-05
    %v2855 = vrsqrt.pop %v2854
    %v2856 = vmul.f32 %v2845, %v2855
    %vm2857 = vcmp.gt.f32.partialorder %v2856, 0.0
    %v2858 = vmul.f32 %v2856, 0.2
    %v2859 = vsel %vm2857, %v2856, %v2858
    %v2860 = vpack.c.bf16 %v2859, %v2859
    %v2861 = vld [vmem:[%s7] sm:$0x1]
    %vm2862 = vcmask 64512
    %v2864 = vsel %vm2862, %v2861, 0
    %vm2866 = vcmask 1043456
    %v2868 = vsel %vm2866, %v2860, 0
    %2870 = vmatprep.subr.bf16.mxu0 0
    %2871 = vmatpush1.bf16.msra.mxu0 0
    %2872 = vmatprep.subr.bf16.mxu0 0
    %2873 = vmatpush1.bf16.msra.mxu0 0
    %2874 = vmatprep.subr.bf16.mxu0 0
    %2875 = vmatpush1.bf16.msra.mxu0 0
    %2876 = vmatprep.subr.bf16.mxu0 0
    %2877 = vmatpush1.bf16.msra.mxu0 0
    %2878 = vmatprep.subr.bf16.mxu0 0
    %2879 = vmatpush1.bf16.msra.mxu0 0
    %2880 = vmatprep.subr.bf16.mxu0 0
    %2881 = vmatpush1.bf16.msra.mxu0 0
    %2882 = vmatprep.subr.bf16.mxu0 0
    %2883 = vmatpush1.bf16.msra.mxu0 0
    %2884 = vmatprep.subr.bf16.mxu0 0
    %2885 = vmatpush1.bf16.msra.mxu0 %v2868
    %2886 = vmatprep.subr.bf16.mxu0 0
    %2887 = vmatpush2.bf16.msra.mxu0 0
    %2888 = vmatprep.subr.bf16.mxu0 0
    %2889 = vmatpush2.bf16.msra.mxu0 0
    %2890 = vmatprep.subr.bf16.mxu0 0
    %2891 = vmatpush2.bf16.msra.mxu0 0
    %2892 = vmatprep.subr.bf16.mxu0 0
    %2893 = vmatpush2.bf16.msra.mxu0 0
    %2894 = vmatprep.subr.bf16.mxu0 0
    %2895 = vmatpush2.bf16.msra.mxu0 0
    %2896 = vmatprep.subr.bf16.mxu0 0
    %2897 = vmatpush2.bf16.msra.mxu0 0
    %2898 = vmatprep.subr.bf16.mxu0 0
    %2899 = vmatpush2.bf16.msra.mxu0 0
    %2900 = vmatprep.subr.bf16.mxu0 0
    %2901 = vmatpush2.bf16.msra.mxu0 0
    %2902 = vmatprep.mubr.bf16.mxu0 0
    %2903 = vmatmul.mubr.bf16.gmra.mxu0 %v2864
    %v2904 = vpop.f32.mrf.mxu0
    %v2905 = vadd.f32 0.0, %v2904
    %v2906 = vpop.f32.mrf.mxu0
    %v2907 = vpop.f32.mrf.mxu0
    %v2908 = vpop.f32.mrf.mxu0
    %2909 = vdwg.mxu0
    %v2910 = vpack.c.bf16 %v2905, %v2905
    %v2911 = vld [vmem:[%s8] sm:$0xff]
    %v2912 = vld [vmem:[%s8 + $0x8] sm:$0xff]
    %v2913 = vld [vmem:[%s8 + $0x10] sm:$0xff]
    %v2914 = vld [vmem:[%s8 + $0x18] sm:$0xff]
    %v2915 = vld [vmem:[%s8 + $0x20] sm:$0xff]
    %v2916 = vld [vmem:[%s8 + $0x28] sm:$0xff]
    %v2917 = vld [vmem:[%s8 + $0x30] sm:$0xff]
    %v2918 = vld [vmem:[%s8 + $0x38] sm:$0xff]
    %v2919 = vld [vmem:[%s8 + $0x40] sm:$0xff]
    %v2920 = vld [vmem:[%s8 + $0x48] sm:$0xff]
    %v2921 = vld [vmem:[%s8 + $0x50] sm:$0xff]
    %v2922 = vld [vmem:[%s8 + $0x58] sm:$0xff]
    %v2923 = vld [vmem:[%s8 + $0x60] sm:$0xff]
    %v2924 = vld [vmem:[%s8 + $0x68] sm:$0xff]
    %v2925 = vld [vmem:[%s8 + $0x70] sm:$0xff]
    %v2926 = vld [vmem:[%s8 + $0x78] sm:$0xff]
    %s2927 = scalar_lea.vmem %s7, 1
    %v2928 = vld [vmem:[%s2927] sm:$0x1]
    %v2930 = vsel %vm2862, %v2928, 0
    %2932 = vmatprep.subr.bf16.mxu0 0
    %2933 = vmatpush1.bf16.msra.mxu0 0
    %2934 = vmatprep.subr.bf16.mxu0 0
    %2935 = vmatpush1.bf16.msra.mxu0 0
    %2936 = vmatprep.subr.bf16.mxu0 0
    %2937 = vmatpush1.bf16.msra.mxu0 0
    %2938 = vmatprep.subr.bf16.mxu0 0
    %2939 = vmatpush1.bf16.msra.mxu0 0
    %2940 = vmatprep.subr.bf16.mxu0 0
    %2941 = vmatpush1.bf16.msra.mxu0 0
    %2942 = vmatprep.subr.bf16.mxu0 0
    %2943 = vmatpush1.bf16.msra.mxu0 0
    %2944 = vmatprep.subr.bf16.mxu0 0
    %2945 = vmatpush1.bf16.msra.mxu0 0
    %2946 = vmatprep.subr.bf16.mxu0 0
    %2947 = vmatpush1.bf16.msra.mxu0 %v2868
    %2948 = vmatprep.subr.bf16.mxu0 0
    %2949 = vmatpush2.bf16.msra.mxu0 0
    %2950 = vmatprep.subr.bf16.mxu0 0
    %2951 = vmatpush2.bf16.msra.mxu0 0
    %2952 = vmatprep.subr.bf16.mxu0 0
    %2953 = vmatpush2.bf16.msra.mxu0 0
    %2954 = vmatprep.subr.bf16.mxu0 0
    %2955 = vmatpush2.bf16.msra.mxu0 0
    %2956 = vmatprep.subr.bf16.mxu0 0
    %2957 = vmatpush2.bf16.msra.mxu0 0
    %2958 = vmatprep.subr.bf16.mxu0 0
    %2959 = vmatpush2.bf16.msra.mxu0 0
    %2960 = vmatprep.subr.bf16.mxu0 0
    %2961 = vmatpush2.bf16.msra.mxu0 0
    %2962 = vmatprep.subr.bf16.mxu0 0
    %2963 = vmatpush2.bf16.msra.mxu0 0
    %2964 = vmatprep.mubr.bf16.mxu0 0
    %2965 = vmatmul.mubr.bf16.gmra.mxu0 %v2930
    %v2966 = vpop.f32.mrf.mxu0
    %v2967 = vadd.f32 0.0, %v2966
    %v2968 = vpop.f32.mrf.mxu0
    %v2969 = vpop.f32.mrf.mxu0
    %v2970 = vpop.f32.mrf.mxu0
    %2971 = vdwg.mxu0
    %v2972 = vpack.c.bf16 %v2967, %v2967
    %s2973 = scalar_lea.vmem %s8, 128
    %v2974 = vld [vmem:[%s2973] sm:$0xff]
    %v2975 = vld [vmem:[%s2973 + $0x8] sm:$0xff]
    %v2976 = vld [vmem:[%s2973 + $0x10] sm:$0xff]
    %v2977 = vld [vmem:[%s2973 + $0x18] sm:$0xff]
    %v2978 = vld [vmem:[%s2973 + $0x20] sm:$0xff]
    %v2979 = vld [vmem:[%s2973 + $0x28] sm:$0xff]
    %v2980 = vld [vmem:[%s2973 + $0x30] sm:$0xff]
    %v2981 = vld [vmem:[%s2973 + $0x38] sm:$0xff]
    %v2982 = vld [vmem:[%s2973 + $0x40] sm:$0xff]
    %v2983 = vld [vmem:[%s2973 + $0x48] sm:$0xff]
    %v2984 = vld [vmem:[%s2973 + $0x50] sm:$0xff]
    %v2985 = vld [vmem:[%s2973 + $0x58] sm:$0xff]
    %v2986 = vld [vmem:[%s2973 + $0x60] sm:$0xff]
    %v2987 = vld [vmem:[%s2973 + $0x68] sm:$0xff]
    %v2988 = vld [vmem:[%s2973 + $0x70] sm:$0xff]
    %v2989 = vld [vmem:[%s2973 + $0x78] sm:$0xff]
    %v3006 = vunpack.c.l.b16 %v2974
    %v3007 = vunpack.c.h.b16 %v2974
    %v3008 = vunpack.c.l.b16 %v2975
    %v3009 = vunpack.c.h.b16 %v2975
    %v3010 = vunpack.c.l.b16 %v2976
    %v3011 = vunpack.c.h.b16 %v2976
    %v3012 = vunpack.c.l.b16 %v2977
    %v3013 = vunpack.c.h.b16 %v2977
    %v3014 = vunpack.c.l.b16 %v2978
    %v3015 = vunpack.c.h.b16 %v2978
    %v3016 = vunpack.c.l.b16 %v2979
    %v3017 = vunpack.c.h.b16 %v2979
    %v3018 = vunpack.c.l.b16 %v2980
    %v3019 = vunpack.c.h.b16 %v2980
    %v3020 = vunpack.c.l.b16 %v2981
    %v3021 = vunpack.c.h.b16 %v2981
    %v3022 = vunpack.c.l.b16 %v2982
    %v3023 = vunpack.c.h.b16 %v2982
    %v3024 = vunpack.c.l.b16 %v2983
    %v3025 = vunpack.c.h.b16 %v2983
    %v3026 = vunpack.c.l.b16 %v2984
    %v3027 = vunpack.c.h.b16 %v2984
    %v3028 = vunpack.c.l.b16 %v2985
    %v3029 = vunpack.c.h.b16 %v2985
    %v3030 = vunpack.c.l.b16 %v2986
    %v3031 = vunpack.c.h.b16 %v2986
    %v3032 = vunpack.c.l.b16 %v2987
    %v3033 = vunpack.c.h.b16 %v2987
    %v3034 = vunpack.c.l.b16 %v2988
    %v3035 = vunpack.c.h.b16 %v2988
    %v3036 = vunpack.c.l.b16 %v2989
    %v3037 = vunpack.c.h.b16 %v2989
    %v3038 = vpack.c.b16 %v3008, %v3006
    %v3039 = vpack.c.b16 %v3009, %v3007
    %v3040 = vpack.c.b16 %v3012, %v3010
    %v3041 = vpack.c.b16 %v3013, %v3011
    %v3042 = vpack.c.b16 %v3016, %v3014
    %v3043 = vpack.c.b16 %v3017, %v3015
    %v3044 = vpack.c.b16 %v3020, %v3018
    %v3045 = vpack.c.b16 %v3021, %v3019
    %v3046 = vpack.c.b16 %v3024, %v3022
    %v3047 = vpack.c.b16 %v3025, %v3023
    %v3048 = vpack.c.b16 %v3028, %v3026
    %v3049 = vpack.c.b16 %v3029, %v3027
    %v3050 = vpack.c.b16 %v3032, %v3030
    %v3051 = vpack.c.b16 %v3033, %v3031
    %v3052 = vpack.c.b16 %v3036, %v3034
    %v3053 = vpack.c.b16 %v3037, %v3035
    %3070 = vmatprep.subr.bf16.mxu0 %v3053
    %3071 = vmatpush1.bf16.msra.mxu0 %v3052
    %3072 = vmatprep.subr.bf16.mxu0 %v3051
    %3073 = vmatpush1.bf16.msra.mxu0 %v3050
    %3074 = vmatprep.subr.bf16.mxu0 %v3049
    %3075 = vmatpush1.bf16.msra.mxu0 %v3048
    %3076 = vmatprep.subr.bf16.mxu0 %v3047
    %3077 = vmatpush1.bf16.msra.mxu0 %v3046
    %3078 = vmatprep.subr.bf16.mxu0 %v3045
    %3079 = vmatpush1.bf16.msra.mxu0 %v3044
    %3080 = vmatprep.subr.bf16.mxu0 %v3043
    %3081 = vmatpush1.bf16.msra.mxu0 %v3042
    %3082 = vmatprep.subr.bf16.mxu0 %v3041
    %3083 = vmatpush1.bf16.msra.mxu0 %v3040
    %3084 = vmatprep.subr.bf16.mxu0 %v3039
    %3085 = vmatpush1.bf16.msra.mxu0 %v3038
    %3086 = vmatprep.subr.bf16.mxu0 0
    %3087 = vmatpush2.bf16.msra.mxu0 0
    %3088 = vmatprep.subr.bf16.mxu0 0
    %3089 = vmatpush2.bf16.msra.mxu0 0
    %3090 = vmatprep.subr.bf16.mxu0 0
    %3091 = vmatpush2.bf16.msra.mxu0 0
    %3092 = vmatprep.subr.bf16.mxu0 0
    %3093 = vmatpush2.bf16.msra.mxu0 0
    %3094 = vmatprep.subr.bf16.mxu0 0
    %3095 = vmatpush2.bf16.msra.mxu0 0
    %3096 = vmatprep.subr.bf16.mxu0 0
    %3097 = vmatpush2.bf16.msra.mxu0 0
    %3098 = vmatprep.subr.bf16.mxu0 0
    %3099 = vmatpush2.bf16.msra.mxu0 0
    %3100 = vmatprep.subr.bf16.mxu0 0
    %3101 = vmatpush2.bf16.msra.mxu0 0
    %3102 = vmatprep.mubr.bf16.mxu0 0
    %3103 = vmatmul.mubr.bf16.gmra.mxu0 %v2972
    %v3104 = vpop.f32.mrf.mxu0
    %v3105 = vadd.f32 0.0, %v3104
    %v3106 = vpop.f32.mrf.mxu0
    %v3107 = vadd.f32 0.0, %v3106
    %v3108 = vpop.f32.mrf.mxu0
    %v3109 = vpop.f32.mrf.mxu0
    %3110 = vdwg.mxu0
    %v3127 = vunpack.c.l.b16 %v2911
    %v3128 = vunpack.c.h.b16 %v2911
    %v3129 = vunpack.c.l.b16 %v2912
    %v3130 = vunpack.c.h.b16 %v2912
    %v3131 = vunpack.c.l.b16 %v2913
    %v3132 = vunpack.c.h.b16 %v2913
    %v3133 = vunpack.c.l.b16 %v2914
    %v3134 = vunpack.c.h.b16 %v2914
    %v3135 = vunpack.c.l.b16 %v2915
    %v3136 = vunpack.c.h.b16 %v2915
    %v3137 = vunpack.c.l.b16 %v2916
    %v3138 = vunpack.c.h.b16 %v2916
    %v3139 = vunpack.c.l.b16 %v2917
    %v3140 = vunpack.c.h.b16 %v2917
    %v3141 = vunpack.c.l.b16 %v2918
    %v3142 = vunpack.c.h.b16 %v2918
    %v3143 = vunpack.c.l.b16 %v2919
    %v3144 = vunpack.c.h.b16 %v2919
    %v3145 = vunpack.c.l.b16 %v2920
    %v3146 = vunpack.c.h.b16 %v2920
    %v3147 = vunpack.c.l.b16 %v2921
    %v3148 = vunpack.c.h.b16 %v2921
    %v3149 = vunpack.c.l.b16 %v2922
    %v3150 = vunpack.c.h.b16 %v2922
    %v3151 = vunpack.c.l.b16 %v2923
    %v3152 = vunpack.c.h.b16 %v2923
    %v3153 = vunpack.c.l.b16 %v2924
    %v3154 = vunpack.c.h.b16 %v2924
    %v3155 = vunpack.c.l.b16 %v2925
    %v3156 = vunpack.c.h.b16 %v2925
    %v3157 = vunpack.c.l.b16 %v2926
    %v3158 = vunpack.c.h.b16 %v2926
    %v3159 = vpack.c.b16 %v3129, %v3127
    %v3160 = vpack.c.b16 %v3130, %v3128
    %v3161 = vpack.c.b16 %v3133, %v3131
    %v3162 = vpack.c.b16 %v3134, %v3132
    %v3163 = vpack.c.b16 %v3137, %v3135
    %v3164 = vpack.c.b16 %v3138, %v3136
    %v3165 = vpack.c.b16 %v3141, %v3139
    %v3166 = vpack.c.b16 %v3142, %v3140
    %v3167 = vpack.c.b16 %v3145, %v3143
    %v3168 = vpack.c.b16 %v3146, %v3144
    %v3169 = vpack.c.b16 %v3149, %v3147
    %v3170 = vpack.c.b16 %v3150, %v3148
    %v3171 = vpack.c.b16 %v3153, %v3151
    %v3172 = vpack.c.b16 %v3154, %v3152
    %v3173 = vpack.c.b16 %v3157, %v3155
    %v3174 = vpack.c.b16 %v3158, %v3156
    %3191 = vmatprep.subr.bf16.mxu0 %v3174
    %3192 = vmatpush1.bf16.msra.mxu0 %v3173
    %3193 = vmatprep.subr.bf16.mxu0 %v3172
    %3194 = vmatpush1.bf16.msra.mxu0 %v3171
    %3195 = vmatprep.subr.bf16.mxu0 %v3170
    %3196 = vmatpush1.bf16.msra.mxu0 %v3169
    %3197 = vmatprep.subr.bf16.mxu0 %v3168
    %3198 = vmatpush1.bf16.msra.mxu0 %v3167
    %3199 = vmatprep.subr.bf16.mxu0 %v3166
    %3200 = vmatpush1.bf16.msra.mxu0 %v3165
    %3201 = vmatprep.subr.bf16.mxu0 %v3164
    %3202 = vmatpush1.bf16.msra.mxu0 %v3163
    %3203 = vmatprep.subr.bf16.mxu0 %v3162
    %3204 = vmatpush1.bf16.msra.mxu0 %v3161
    %3205 = vmatprep.subr.bf16.mxu0 %v3160
    %3206 = vmatpush1.bf16.msra.mxu0 %v3159
    %3207 = vmatprep.subr.bf16.mxu0 0
    %3208 = vmatpush2.bf16.msra.mxu0 0
    %3209 = vmatprep.subr.bf16.mxu0 0
    %3210 = vmatpush2.bf16.msra.mxu0 0
    %3211 = vmatprep.subr.bf16.mxu0 0
    %3212 = vmatpush2.bf16.msra.mxu0 0
    %3213 = vmatprep.subr.bf16.mxu0 0
    %3214 = vmatpush2.bf16.msra.mxu0 0
    %3215 = vmatprep.subr.bf16.mxu0 0
    %3216 = vmatpush2.bf16.msra.mxu0 0
    %3217 = vmatprep.subr.bf16.mxu0 0
    %3218 = vmatpush2.bf16.msra.mxu0 0
    %3219 = vmatprep.subr.bf16.mxu0 0
    %3220 = vmatpush2.bf16.msra.mxu0 0
    %3221 = vmatprep.subr.bf16.mxu0 0
    %3222 = vmatpush2.bf16.msra.mxu0 0
    %3223 = vmatprep.mubr.bf16.mxu0 0
    %3224 = vmatmul.mubr.bf16.gmra.mxu0 %v2910
    %v3225 = vpop.f32.mrf.mxu0
    %v3226 = vadd.f32 %v3105, %v3225
    %v3227 = vpop.f32.mrf.mxu0
    %v3228 = vadd.f32 %v3107, %v3227
    %v3229 = vpop.f32.mrf.mxu0
    %v3230 = vpop.f32.mrf.mxu0
    %3231 = vdwg.mxu0
    %s3232 = scalar_lea.vmem %s7, 2
    %v3233 = vld [vmem:[%s3232] sm:$0x1]
    %v3235 = vsel %vm2862, %v3233, 0
    %3237 = vmatprep.subr.bf16.mxu0 0
    %3238 = vmatpush1.bf16.msra.mxu0 0
    %3239 = vmatprep.subr.bf16.mxu0 0
    %3240 = vmatpush1.bf16.msra.mxu0 0
    %3241 = vmatprep.subr.bf16.mxu0 0
    %3242 = vmatpush1.bf16.msra.mxu0 0
    %3243 = vmatprep.subr.bf16.mxu0 0
    %3244 = vmatpush1.bf16.msra.mxu0 0
    %3245 = vmatprep.subr.bf16.mxu0 0
    %3246 = vmatpush1.bf16.msra.mxu0 0
    %3247 = vmatprep.subr.bf16.mxu0 0
    %3248 = vmatpush1.bf16.msra.mxu0 0
    %3249 = vmatprep.subr.bf16.mxu0 0
    %3250 = vmatpush1.bf16.msra.mxu0 0
    %3251 = vmatprep.subr.bf16.mxu0 0
    %3252 = vmatpush1.bf16.msra.mxu0 %v2868
    %3253 = vmatprep.subr.bf16.mxu0 0
    %3254 = vmatpush2.bf16.msra.mxu0 0
    %3255 = vmatprep.subr.bf16.mxu0 0
    %3256 = vmatpush2.bf16.msra.mxu0 0
    %3257 = vmatprep.subr.bf16.mxu0 0
    %3258 = vmatpush2.bf16.msra.mxu0 0
    %3259 = vmatprep.subr.bf16.mxu0 0
    %3260 = vmatpush2.bf16.msra.mxu0 0
    %3261 = vmatprep.subr.bf16.mxu0 0
    %3262 = vmatpush2.bf16.msra.mxu0 0
    %3263 = vmatprep.subr.bf16.mxu0 0
    %3264 = vmatpush2.bf16.msra.mxu0 0
    %3265 = vmatprep.subr.bf16.mxu0 0
    %3266 = vmatpush2.bf16.msra.mxu0 0
    %3267 = vmatprep.subr.bf16.mxu0 0
    %3268 = vmatpush2.bf16.msra.mxu0 0
    %3269 = vmatprep.mubr.bf16.mxu0 0
    %3270 = vmatmul.mubr.bf16.gmra.mxu0 %v3235
    %v3271 = vpop.f32.mrf.mxu0
    %v3272 = vadd.f32 0.0, %v3271
    %v3273 = vpop.f32.mrf.mxu0
    %v3274 = vpop.f32.mrf.mxu0
    %v3275 = vpop.f32.mrf.mxu0
    %3276 = vdwg.mxu0
    %v3277 = vpack.c.bf16 %v3272, %v3272
    %s3278 = scalar_lea.vmem %s8, 256
    %v3279 = vld [vmem:[%s3278] sm:$0xff]
    %v3280 = vld [vmem:[%s3278 + $0x8] sm:$0xff]
    %v3281 = vld [vmem:[%s3278 + $0x10] sm:$0xff]
    %v3282 = vld [vmem:[%s3278 + $0x18] sm:$0xff]
    %v3283 = vld [vmem:[%s3278 + $0x20] sm:$0xff]
    %v3284 = vld [vmem:[%s3278 + $0x28] sm:$0xff]
    %v3285 = vld [vmem:[%s3278 + $0x30] sm:$0xff]
    %v3286 = vld [vmem:[%s3278 + $0x38] sm:$0xff]
    %v3287 = vld [vmem:[%s3278 + $0x40] sm:$0xff]
    %v3288 = vld [vmem:[%s3278 + $0x48] sm:$0xff]
    %v3289 = vld [vmem:[%s3278 + $0x50] sm:$0xff]
    %v3290 = vld [vmem:[%s3278 + $0x58] sm:$0xff]
    %v3291 = vld [vmem:[%s3278 + $0x60] sm:$0xff]
    %v3292 = vld [vmem:[%s3278 + $0x68] sm:$0xff]
    %v3293 = vld [vmem:[%s3278 + $0x70] sm:$0xff]
    %v3294 = vld [vmem:[%s3278 + $0x78] sm:$0xff]
    %v3311 = vunpack.c.l.b16 %v3279
    %v3312 = vunpack.c.h.b16 %v3279
    %v3313 = vunpack.c.l.b16 %v3280
    %v3314 = vunpack.c.h.b16 %v3280
    %v3315 = vunpack.c.l.b16 %v3281
    %v3316 = vunpack.c.h.b16 %v3281
    %v3317 = vunpack.c.l.b16 %v3282
    %v3318 = vunpack.c.h.b16 %v3282
    %v3319 = vunpack.c.l.b16 %v3283
    %v3320 = vunpack.c.h.b16 %v3283
    %v3321 = vunpack.c.l.b16 %v3284
    %v3322 = vunpack.c.h.b16 %v3284
    %v3323 = vunpack.c.l.b16 %v3285
    %v3324 = vunpack.c.h.b16 %v3285
    %v3325 = vunpack.c.l.b16 %v3286
    %v3326 = vunpack.c.h.b16 %v3286
    %v3327 = vunpack.c.l.b16 %v3287
    %v3328 = vunpack.c.h.b16 %v3287
    %v3329 = vunpack.c.l.b16 %v3288
    %v3330 = vunpack.c.h.b16 %v3288
    %v3331 = vunpack.c.l.b16 %v3289
    %v3332 = vunpack.c.h.b16 %v3289
    %v3333 = vunpack.c.l.b16 %v3290
    %v3334 = vunpack.c.h.b16 %v3290
    %v3335 = vunpack.c.l.b16 %v3291
    %v3336 = vunpack.c.h.b16 %v3291
    %v3337 = vunpack.c.l.b16 %v3292
    %v3338 = vunpack.c.h.b16 %v3292
    %v3339 = vunpack.c.l.b16 %v3293
    %v3340 = vunpack.c.h.b16 %v3293
    %v3341 = vunpack.c.l.b16 %v3294
    %v3342 = vunpack.c.h.b16 %v3294
    %v3343 = vpack.c.b16 %v3313, %v3311
    %v3344 = vpack.c.b16 %v3314, %v3312
    %v3345 = vpack.c.b16 %v3317, %v3315
    %v3346 = vpack.c.b16 %v3318, %v3316
    %v3347 = vpack.c.b16 %v3321, %v3319
    %v3348 = vpack.c.b16 %v3322, %v3320
    %v3349 = vpack.c.b16 %v3325, %v3323
    %v3350 = vpack.c.b16 %v3326, %v3324
    %v3351 = vpack.c.b16 %v3329, %v3327
    %v3352 = vpack.c.b16 %v3330, %v3328
    %v3353 = vpack.c.b16 %v3333, %v3331
    %v3354 = vpack.c.b16 %v3334, %v3332
    %v3355 = vpack.c.b16 %v3337, %v3335
    %v3356 = vpack.c.b16 %v3338, %v3336
    %v3357 = vpack.c.b16 %v3341, %v3339
    %v3358 = vpack.c.b16 %v3342, %v3340
    %3375 = vmatprep.subr.bf16.mxu0 %v3358
    %3376 = vmatpush1.bf16.msra.mxu0 %v3357
    %3377 = vmatprep.subr.bf16.mxu0 %v3356
    %3378 = vmatpush1.bf16.msra.mxu0 %v3355
    %3379 = vmatprep.subr.bf16.mxu0 %v3354
    %3380 = vmatpush1.bf16.msra.mxu0 %v3353
    %3381 = vmatprep.subr.bf16.mxu0 %v3352
    %3382 = vmatpush1.bf16.msra.mxu0 %v3351
    %3383 = vmatprep.subr.bf16.mxu0 %v3350
    %3384 = vmatpush1.bf16.msra.mxu0 %v3349
    %3385 = vmatprep.subr.bf16.mxu0 %v3348
    %3386 = vmatpush1.bf16.msra.mxu0 %v3347
    %3387 = vmatprep.subr.bf16.mxu0 %v3346
    %3388 = vmatpush1.bf16.msra.mxu0 %v3345
    %3389 = vmatprep.subr.bf16.mxu0 %v3344
    %3390 = vmatpush1.bf16.msra.mxu0 %v3343
    %3391 = vmatprep.subr.bf16.mxu0 0
    %3392 = vmatpush2.bf16.msra.mxu0 0
    %3393 = vmatprep.subr.bf16.mxu0 0
    %3394 = vmatpush2.bf16.msra.mxu0 0
    %3395 = vmatprep.subr.bf16.mxu0 0
    %3396 = vmatpush2.bf16.msra.mxu0 0
    %3397 = vmatprep.subr.bf16.mxu0 0
    %3398 = vmatpush2.bf16.msra.mxu0 0
    %3399 = vmatprep.subr.bf16.mxu0 0
    %3400 = vmatpush2.bf16.msra.mxu0 0
    %3401 = vmatprep.subr.bf16.mxu0 0
    %3402 = vmatpush2.bf16.msra.mxu0 0
    %3403 = vmatprep.subr.bf16.mxu0 0
    %3404 = vmatpush2.bf16.msra.mxu0 0
    %3405 = vmatprep.subr.bf16.mxu0 0
    %3406 = vmatpush2.bf16.msra.mxu0 0
    %3407 = vmatprep.mubr.bf16.mxu0 0
    %3408 = vmatmul.mubr.bf16.gmra.mxu0 %v3277
    %v3409 = vpop.f32.mrf.mxu0
    %v3410 = vadd.f32 0.0, %v3409
    %v3411 = vpop.f32.mrf.mxu0
    %v3412 = vadd.f32 0.0, %v3411
    %v3413 = vpop.f32.mrf.mxu0
    %v3414 = vpop.f32.mrf.mxu0
    %3415 = vdwg.mxu0
    %v3416 = vadd.f32 %v3226, %v3410
    %v3417 = vadd.f32 %v3228, %v3412
    %s3418 = scalar_lea.vmem %s7, 3
    %v3419 = vld [vmem:[%s3418] sm:$0x1]
    %v3421 = vsel %vm2862, %v3419, 0
    %3423 = vmatprep.subr.bf16.mxu0 0
    %3424 = vmatpush1.bf16.msra.mxu0 0
    %3425 = vmatprep.subr.bf16.mxu0 0
    %3426 = vmatpush1.bf16.msra.mxu0 0
    %3427 = vmatprep.subr.bf16.mxu0 0
    %3428 = vmatpush1.bf16.msra.mxu0 0
    %3429 = vmatprep.subr.bf16.mxu0 0
    %3430 = vmatpush1.bf16.msra.mxu0 0
    %3431 = vmatprep.subr.bf16.mxu0 0
    %3432 = vmatpush1.bf16.msra.mxu0 0
    %3433 = vmatprep.subr.bf16.mxu0 0
    %3434 = vmatpush1.bf16.msra.mxu0 0
    %3435 = vmatprep.subr.bf16.mxu0 0
    %3436 = vmatpush1.bf16.msra.mxu0 0
    %3437 = vmatprep.subr.bf16.mxu0 0
    %3438 = vmatpush1.bf16.msra.mxu0 %v2868
    %3439 = vmatprep.subr.bf16.mxu0 0
    %3440 = vmatpush2.bf16.msra.mxu0 0
    %3441 = vmatprep.subr.bf16.mxu0 0
    %3442 = vmatpush2.bf16.msra.mxu0 0
    %3443 = vmatprep.subr.bf16.mxu0 0
    %3444 = vmatpush2.bf16.msra.mxu0 0
    %3445 = vmatprep.subr.bf16.mxu0 0
    %3446 = vmatpush2.bf16.msra.mxu0 0
    %3447 = vmatprep.subr.bf16.mxu0 0
    %3448 = vmatpush2.bf16.msra.mxu0 0
    %3449 = vmatprep.subr.bf16.mxu0 0
    %3450 = vmatpush2.bf16.msra.mxu0 0
    %3451 = vmatprep.subr.bf16.mxu0 0
    %3452 = vmatpush2.bf16.msra.mxu0 0
    %3453 = vmatprep.subr.bf16.mxu0 0
    %3454 = vmatpush2.bf16.msra.mxu0 0
    %3455 = vmatprep.mubr.bf16.mxu0 0
    %3456 = vmatmul.mubr.bf16.gmra.mxu0 %v3421
    %v3457 = vpop.f32.mrf.mxu0
    %v3458 = vadd.f32 0.0, %v3457
    %v3459 = vpop.f32.mrf.mxu0
    %v3460 = vpop.f32.mrf.mxu0
    %v3461 = vpop.f32.mrf.mxu0
    %3462 = vdwg.mxu0
    %v3463 = vpack.c.bf16 %v3458, %v3458
    %s3464 = scalar_lea.vmem %s8, 384
    %v3465 = vld [vmem:[%s3464] sm:$0xff]
    %v3466 = vld [vmem:[%s3464 + $0x8] sm:$0xff]
    %v3467 = vld [vmem:[%s3464 + $0x10] sm:$0xff]
    %v3468 = vld [vmem:[%s3464 + $0x18] sm:$0xff]
    %v3469 = vld [vmem:[%s3464 + $0x20] sm:$0xff]
    %v3470 = vld [vmem:[%s3464 + $0x28] sm:$0xff]
    %v3471 = vld [vmem:[%s3464 + $0x30] sm:$0xff]
    %v3472 = vld [vmem:[%s3464 + $0x38] sm:$0xff]
    %v3473 = vld [vmem:[%s3464 + $0x40] sm:$0xff]
    %v3474 = vld [vmem:[%s3464 + $0x48] sm:$0xff]
    %v3475 = vld [vmem:[%s3464 + $0x50] sm:$0xff]
    %v3476 = vld [vmem:[%s3464 + $0x58] sm:$0xff]
    %v3477 = vld [vmem:[%s3464 + $0x60] sm:$0xff]
    %v3478 = vld [vmem:[%s3464 + $0x68] sm:$0xff]
    %v3479 = vld [vmem:[%s3464 + $0x70] sm:$0xff]
    %v3480 = vld [vmem:[%s3464 + $0x78] sm:$0xff]
    %v3497 = vunpack.c.l.b16 %v3465
    %v3498 = vunpack.c.h.b16 %v3465
    %v3499 = vunpack.c.l.b16 %v3466
    %v3500 = vunpack.c.h.b16 %v3466
    %v3501 = vunpack.c.l.b16 %v3467
    %v3502 = vunpack.c.h.b16 %v3467
    %v3503 = vunpack.c.l.b16 %v3468
    %v3504 = vunpack.c.h.b16 %v3468
    %v3505 = vunpack.c.l.b16 %v3469
    %v3506 = vunpack.c.h.b16 %v3469
    %v3507 = vunpack.c.l.b16 %v3470
    %v3508 = vunpack.c.h.b16 %v3470
    %v3509 = vunpack.c.l.b16 %v3471
    %v3510 = vunpack.c.h.b16 %v3471
    %v3511 = vunpack.c.l.b16 %v3472
    %v3512 = vunpack.c.h.b16 %v3472
    %v3513 = vunpack.c.l.b16 %v3473
    %v3514 = vunpack.c.h.b16 %v3473
    %v3515 = vunpack.c.l.b16 %v3474
    %v3516 = vunpack.c.h.b16 %v3474
    %v3517 = vunpack.c.l.b16 %v3475
    %v3518 = vunpack.c.h.b16 %v3475
    %v3519 = vunpack.c.l.b16 %v3476
    %v3520 = vunpack.c.h.b16 %v3476
    %v3521 = vunpack.c.l.b16 %v3477
    %v3522 = vunpack.c.h.b16 %v3477
    %v3523 = vunpack.c.l.b16 %v3478
    %v3524 = vunpack.c.h.b16 %v3478
    %v3525 = vunpack.c.l.b16 %v3479
    %v3526 = vunpack.c.h.b16 %v3479
    %v3527 = vunpack.c.l.b16 %v3480
    %v3528 = vunpack.c.h.b16 %v3480
    %v3529 = vpack.c.b16 %v3499, %v3497
    %v3530 = vpack.c.b16 %v3500, %v3498
    %v3531 = vpack.c.b16 %v3503, %v3501
    %v3532 = vpack.c.b16 %v3504, %v3502
    %v3533 = vpack.c.b16 %v3507, %v3505
    %v3534 = vpack.c.b16 %v3508, %v3506
    %v3535 = vpack.c.b16 %v3511, %v3509
    %v3536 = vpack.c.b16 %v3512, %v3510
    %v3537 = vpack.c.b16 %v3515, %v3513
    %v3538 = vpack.c.b16 %v3516, %v3514
    %v3539 = vpack.c.b16 %v3519, %v3517
    %v3540 = vpack.c.b16 %v3520, %v3518
    %v3541 = vpack.c.b16 %v3523, %v3521
    %v3542 = vpack.c.b16 %v3524, %v3522
    %v3543 = vpack.c.b16 %v3527, %v3525
    %v3544 = vpack.c.b16 %v3528, %v3526
    %3561 = vmatprep.subr.bf16.mxu0 %v3544
    %3562 = vmatpush1.bf16.msra.mxu0 %v3543
    %3563 = vmatprep.subr.bf16.mxu0 %v3542
    %3564 = vmatpush1.bf16.msra.mxu0 %v3541
    %3565 = vmatprep.subr.bf16.mxu0 %v3540
    %3566 = vmatpush1.bf16.msra.mxu0 %v3539
    %3567 = vmatprep.subr.bf16.mxu0 %v3538
    %3568 = vmatpush1.bf16.msra.mxu0 %v3537
    %3569 = vmatprep.subr.bf16.mxu0 %v3536
    %3570 = vmatpush1.bf16.msra.mxu0 %v3535
    %3571 = vmatprep.subr.bf16.mxu0 %v3534
    %3572 = vmatpush1.bf16.msra.mxu0 %v3533
    %3573 = vmatprep.subr.bf16.mxu0 %v3532
    %3574 = vmatpush1.bf16.msra.mxu0 %v3531
    %3575 = vmatprep.subr.bf16.mxu0 %v3530
    %3576 = vmatpush1.bf16.msra.mxu0 %v3529
    %3577 = vmatprep.subr.bf16.mxu0 0
    %3578 = vmatpush2.bf16.msra.mxu0 0
    %3579 = vmatprep.subr.bf16.mxu0 0
    %3580 = vmatpush2.bf16.msra.mxu0 0
    %3581 = vmatprep.subr.bf16.mxu0 0
    %3582 = vmatpush2.bf16.msra.mxu0 0
    %3583 = vmatprep.subr.bf16.mxu0 0
    %3584 = vmatpush2.bf16.msra.mxu0 0
    %3585 = vmatprep.subr.bf16.mxu0 0
    %3586 = vmatpush2.bf16.msra.mxu0 0
    %3587 = vmatprep.subr.bf16.mxu0 0
    %3588 = vmatpush2.bf16.msra.mxu0 0
    %3589 = vmatprep.subr.bf16.mxu0 0
    %3590 = vmatpush2.bf16.msra.mxu0 0
    %3591 = vmatprep.subr.bf16.mxu0 0
    %3592 = vmatpush2.bf16.msra.mxu0 0
    %3593 = vmatprep.mubr.bf16.mxu0 0
    %3594 = vmatmul.mubr.bf16.gmra.mxu0 %v3463
    %v3595 = vpop.f32.mrf.mxu0
    %v3596 = vadd.f32 0.0, %v3595
    %v3597 = vpop.f32.mrf.mxu0
    %v3598 = vadd.f32 0.0, %v3597
    %v3599 = vpop.f32.mrf.mxu0
    %v3600 = vpop.f32.mrf.mxu0
    %3601 = vdwg.mxu0
    %v3602 = vadd.f32 %v3416, %v3596
    %v3603 = vadd.f32 %v3417, %v3598
    %vm3604 = vcmask 1041408
    %v3605 = vsel %vm3604, %v3602, 0.0
    %v3606 = vrot.slane %v3605, 4
    %v3607 = vadd.f32 %v3605, %v3606
    %v3608 = vrot.slane %v3607, 2
    %v3609 = vadd.f32 %v3607, %v3608
    %v3610 = vrot.slane %v3609, 1
    %v3611 = vadd.f32 %v3609, %v3610
    %v3612 = vsel %vm3604, %v3603, 0.0
    %v3613 = vrot.slane %v3612, 4
    %v3614 = vadd.f32 %v3612, %v3613
    %v3615 = vrot.slane %v3614, 2
    %v3616 = vadd.f32 %v3614, %v3615
    %v3617 = vrot.slane %v3616, 1
    %v3618 = vadd.f32 %v3616, %v3617
    %v3619 = vrcp.pop 2.0
    %v3620 = vmul.f32 %v3611, %v3619
    %v3621 = vmul.f32 %v3618, %v3619
    %v3622 = vsub.f32 %v3602, %v3620
    %v3623 = vsub.f32 %v3603, %v3621
    %v3624 = vmul.f32 %v3622, %v3622
    %v3625 = vmul.f32 %v3623, %v3623
    %v3626 = vsel %vm3604, %v3624, 0.0
    %v3627 = vrot.slane %v3626, 4
    %v3628 = vadd.f32 %v3626, %v3627
    %v3629 = vrot.slane %v3628, 2
    %v3630 = vadd.f32 %v3628, %v3629
    %v3631 = vrot.slane %v3630, 1
    %v3632 = vadd.f32 %v3630, %v3631
    %v3633 = vsel %vm3604, %v3625, 0.0
    %v3634 = vrot.slane %v3633, 4
    %v3635 = vadd.f32 %v3633, %v3634
    %v3636 = vrot.slane %v3635, 2
    %v3637 = vadd.f32 %v3635, %v3636
    %v3638 = vrot.slane %v3637, 1
    %v3639 = vadd.f32 %v3637, %v3638
    %v3640 = vmul.f32 %v3632, %v3619
    %v3641 = vmul.f32 %v3639, %v3619
    %v3642 = vadd.f32 %v3640, 1e-05
    %v3643 = vadd.f32 %v3641, 1e-05
    %v3644 = vrsqrt.pop %v3642
    %v3645 = vrsqrt.pop %v3643
    %v3646 = vmul.f32 %v3622, %v3644
    %v3647 = vmul.f32 %v3623, %v3645
    %vm3648 = vcmp.gt.f32.partialorder %v3646, 0.0
    %vm3649 = vcmp.gt.f32.partialorder %v3647, 0.0
    %v3650 = vmul.f32 %v3646, 0.2
    %v3651 = vmul.f32 %v3647, 0.2
    %v3652 = vsel %vm3648, %v3646, %v3650
    %v3653 = vsel %vm3649, %v3647, %v3651
    %v3654 = vpack.c.bf16 %v3652, %v3652
    %v3655 = vpack.c.bf16 %v3653, %v3653
    %v3656 = vld [vmem:[#allocation7] sm:$0xff]
    %v3657 = vld [vmem:[#allocation7 + $0x8] sm:$0xff]
    %v3658 = vld [vmem:[#allocation7 + $0x10] sm:$0xff]
    %v3659 = vld [vmem:[#allocation7 + $0x18] sm:$0xff]
    %v3660 = vld [vmem:[#allocation7 + $0x20] sm:$0xff]
    %v3661 = vld [vmem:[#allocation7 + $0x28] sm:$0xff]
    %v3662 = vld [vmem:[#allocation7 + $0x30] sm:$0xff]
    %v3663 = vld [vmem:[#allocation7 + $0x38] sm:$0xff]
    %v3664 = vld [vmem:[#allocation7 + $0x40] sm:$0xff]
    %v3665 = vld [vmem:[#allocation7 + $0x48] sm:$0xff]
    %v3666 = vld [vmem:[#allocation7 + $0x50] sm:$0xff]
    %v3667 = vld [vmem:[#allocation7 + $0x58] sm:$0xff]
    %v3668 = vld [vmem:[#allocation7 + $0x60] sm:$0xff]
    %v3669 = vld [vmem:[#allocation7 + $0x68] sm:$0xff]
    %v3670 = vld [vmem:[#allocation7 + $0x70] sm:$0xff]
    %v3671 = vld [vmem:[#allocation7 + $0x78] sm:$0xff]
    %v3672 = vld [vmem:[#allocation7 + $0x80] sm:$0xff]
    %v3673 = vld [vmem:[#allocation7 + $0x88] sm:$0xff]
    %v3674 = vld [vmem:[#allocation7 + $0x90] sm:$0xff]
    %v3675 = vld [vmem:[#allocation7 + $0x98] sm:$0xff]
    %v3676 = vld [vmem:[#allocation7 + $0xa0] sm:$0xff]
    %v3677 = vld [vmem:[#allocation7 + $0xa8] sm:$0xff]
    %v3678 = vld [vmem:[#allocation7 + $0xb0] sm:$0xff]
    %v3679 = vld [vmem:[#allocation7 + $0xb8] sm:$0xff]
    %v3680 = vld [vmem:[#allocation7 + $0xc0] sm:$0xff]
    %v3681 = vld [vmem:[#allocation7 + $0xc8] sm:$0xff]
    %v3682 = vld [vmem:[#allocation7 + $0xd0] sm:$0xff]
    %v3683 = vld [vmem:[#allocation7 + $0xd8] sm:$0xff]
    %v3684 = vld [vmem:[#allocation7 + $0xe0] sm:$0xff]
    %v3685 = vld [vmem:[#allocation7 + $0xe8] sm:$0xff]
    %v3686 = vld [vmem:[#allocation7 + $0xf0] sm:$0xff]
    %v3687 = vld [vmem:[#allocation7 + $0xf8] sm:$0xff]
    %v3688 = vld [vmem:[#allocation7 + $0x100] sm:$0xff]
    %v3689 = vld [vmem:[#allocation7 + $0x108] sm:$0xff]
    %v3690 = vld [vmem:[#allocation7 + $0x110] sm:$0xff]
    %v3691 = vld [vmem:[#allocation7 + $0x118] sm:$0xff]
    %v3692 = vld [vmem:[#allocation7 + $0x120] sm:$0xff]
    %v3693 = vld [vmem:[#allocation7 + $0x128] sm:$0xff]
    %v3694 = vld [vmem:[#allocation7 + $0x130] sm:$0xff]
    %v3695 = vld [vmem:[#allocation7 + $0x138] sm:$0xff]
    %v3696 = vld [vmem:[#allocation7 + $0x140] sm:$0xff]
    %v3697 = vld [vmem:[#allocation7 + $0x148] sm:$0xff]
    %v3698 = vld [vmem:[#allocation7 + $0x150] sm:$0xff]
    %v3699 = vld [vmem:[#allocation7 + $0x158] sm:$0xff]
    %v3700 = vld [vmem:[#allocation7 + $0x160] sm:$0xff]
    %v3701 = vld [vmem:[#allocation7 + $0x168] sm:$0xff]
    %v3702 = vld [vmem:[#allocation7 + $0x170] sm:$0xff]
    %v3703 = vld [vmem:[#allocation7 + $0x178] sm:$0xff]
    %v3704 = vld [vmem:[#allocation7 + $0x180] sm:$0xff]
    %v3705 = vld [vmem:[#allocation7 + $0x188] sm:$0xff]
    %v3706 = vld [vmem:[#allocation7 + $0x190] sm:$0xff]
    %v3707 = vld [vmem:[#allocation7 + $0x198] sm:$0xff]
    %v3708 = vld [vmem:[#allocation7 + $0x1a0] sm:$0xff]
    %v3709 = vld [vmem:[#allocation7 + $0x1a8] sm:$0xff]
    %v3710 = vld [vmem:[#allocation7 + $0x1b0] sm:$0xff]
    %v3711 = vld [vmem:[#allocation7 + $0x1b8] sm:$0xff]
    %v3712 = vld [vmem:[#allocation7 + $0x1c0] sm:$0xff]
    %v3713 = vld [vmem:[#allocation7 + $0x1c8] sm:$0xff]
    %v3714 = vld [vmem:[#allocation7 + $0x1d0] sm:$0xff]
    %v3715 = vld [vmem:[#allocation7 + $0x1d8] sm:$0xff]
    %v3716 = vld [vmem:[#allocation7 + $0x1e0] sm:$0xff]
    %v3717 = vld [vmem:[#allocation7 + $0x1e8] sm:$0xff]
    %v3718 = vld [vmem:[#allocation7 + $0x1f0] sm:$0xff]
    %v3719 = vld [vmem:[#allocation7 + $0x1f8] sm:$0xff]
    %v3784 = vunpack.c.l.b16 %v3656
    %v3785 = vunpack.c.h.b16 %v3656
    %v3786 = vunpack.c.l.b16 %v3657
    %v3787 = vunpack.c.h.b16 %v3657
    %v3788 = vunpack.c.l.b16 %v3658
    %v3789 = vunpack.c.h.b16 %v3658
    %v3790 = vunpack.c.l.b16 %v3659
    %v3791 = vunpack.c.h.b16 %v3659
    %v3792 = vunpack.c.l.b16 %v3660
    %v3793 = vunpack.c.h.b16 %v3660
    %v3794 = vunpack.c.l.b16 %v3661
    %v3795 = vunpack.c.h.b16 %v3661
    %v3796 = vunpack.c.l.b16 %v3662
    %v3797 = vunpack.c.h.b16 %v3662
    %v3798 = vunpack.c.l.b16 %v3663
    %v3799 = vunpack.c.h.b16 %v3663
    %v3800 = vunpack.c.l.b16 %v3664
    %v3801 = vunpack.c.h.b16 %v3664
    %v3802 = vunpack.c.l.b16 %v3665
    %v3803 = vunpack.c.h.b16 %v3665
    %v3804 = vunpack.c.l.b16 %v3666
    %v3805 = vunpack.c.h.b16 %v3666
    %v3806 = vunpack.c.l.b16 %v3667
    %v3807 = vunpack.c.h.b16 %v3667
    %v3808 = vunpack.c.l.b16 %v3668
    %v3809 = vunpack.c.h.b16 %v3668
    %v3810 = vunpack.c.l.b16 %v3669
    %v3811 = vunpack.c.h.b16 %v3669
    %v3812 = vunpack.c.l.b16 %v3670
    %v3813 = vunpack.c.h.b16 %v3670
    %v3814 = vunpack.c.l.b16 %v3671
    %v3815 = vunpack.c.h.b16 %v3671
    %v3816 = vunpack.c.l.b16 %v3672
    %v3817 = vunpack.c.h.b16 %v3672
    %v3818 = vunpack.c.l.b16 %v3673
    %v3819 = vunpack.c.h.b16 %v3673
    %v3820 = vunpack.c.l.b16 %v3674
    %v3821 = vunpack.c.h.b16 %v3674
    %v3822 = vunpack.c.l.b16 %v3675
    %v3823 = vunpack.c.h.b16 %v3675
    %v3824 = vunpack.c.l.b16 %v3676
    %v3825 = vunpack.c.h.b16 %v3676
    %v3826 = vunpack.c.l.b16 %v3677
    %v3827 = vunpack.c.h.b16 %v3677
    %v3828 = vunpack.c.l.b16 %v3678
    %v3829 = vunpack.c.h.b16 %v3678
    %v3830 = vunpack.c.l.b16 %v3679
    %v3831 = vunpack.c.h.b16 %v3679
    %v3832 = vunpack.c.l.b16 %v3680
    %v3833 = vunpack.c.h.b16 %v3680
    %v3834 = vunpack.c.l.b16 %v3681
    %v3835 = vunpack.c.h.b16 %v3681
    %v3836 = vunpack.c.l.b16 %v3682
    %v3837 = vunpack.c.h.b16 %v3682
    %v3838 = vunpack.c.l.b16 %v3683
    %v3839 = vunpack.c.h.b16 %v3683
    %v3840 = vunpack.c.l.b16 %v3684
    %v3841 = vunpack.c.h.b16 %v3684
    %v3842 = vunpack.c.l.b16 %v3685
    %v3843 = vunpack.c.h.b16 %v3685
    %v3844 = vunpack.c.l.b16 %v3686
    %v3845 = vunpack.c.h.b16 %v3686
    %v3846 = vunpack.c.l.b16 %v3687
    %v3847 = vunpack.c.h.b16 %v3687
    %v3848 = vunpack.c.l.b16 %v3688
    %v3849 = vunpack.c.h.b16 %v3688
    %v3850 = vunpack.c.l.b16 %v3689
    %v3851 = vunpack.c.h.b16 %v3689
    %v3852 = vunpack.c.l.b16 %v3690
    %v3853 = vunpack.c.h.b16 %v3690
    %v3854 = vunpack.c.l.b16 %v3691
    %v3855 = vunpack.c.h.b16 %v3691
    %v3856 = vunpack.c.l.b16 %v3692
    %v3857 = vunpack.c.h.b16 %v3692
    %v3858 = vunpack.c.l.b16 %v3693
    %v3859 = vunpack.c.h.b16 %v3693
    %v3860 = vunpack.c.l.b16 %v3694
    %v3861 = vunpack.c.h.b16 %v3694
    %v3862 = vunpack.c.l.b16 %v3695
    %v3863 = vunpack.c.h.b16 %v3695
    %v3864 = vunpack.c.l.b16 %v3696
    %v3865 = vunpack.c.h.b16 %v3696
    %v3866 = vunpack.c.l.b16 %v3697
    %v3867 = vunpack.c.h.b16 %v3697
    %v3868 = vunpack.c.l.b16 %v3698
    %v3869 = vunpack.c.h.b16 %v3698
    %v3870 = vunpack.c.l.b16 %v3699
    %v3871 = vunpack.c.h.b16 %v3699
    %v3872 = vunpack.c.l.b16 %v3700
    %v3873 = vunpack.c.h.b16 %v3700
    %v3874 = vunpack.c.l.b16 %v3701
    %v3875 = vunpack.c.h.b16 %v3701
    %v3876 = vunpack.c.l.b16 %v3702
    %v3877 = vunpack.c.h.b16 %v3702
    %v3878 = vunpack.c.l.b16 %v3703
    %v3879 = vunpack.c.h.b16 %v3703
    %v3880 = vunpack.c.l.b16 %v3704
    %v3881 = vunpack.c.h.b16 %v3704
    %v3882 = vunpack.c.l.b16 %v3705
    %v3883 = vunpack.c.h.b16 %v3705
    %v3884 = vunpack.c.l.b16 %v3706
    %v3885 = vunpack.c.h.b16 %v3706
    %v3886 = vunpack.c.l.b16 %v3707
    %v3887 = vunpack.c.h.b16 %v3707
    %v3888 = vunpack.c.l.b16 %v3708
    %v3889 = vunpack.c.h.b16 %v3708
    %v3890 = vunpack.c.l.b16 %v3709
    %v3891 = vunpack.c.h.b16 %v3709
    %v3892 = vunpack.c.l.b16 %v3710
    %v3893 = vunpack.c.h.b16 %v3710
    %v3894 = vunpack.c.l.b16 %v3711
    %v3895 = vunpack.c.h.b16 %v3711
    %v3896 = vunpack.c.l.b16 %v3712
    %v3897 = vunpack.c.h.b16 %v3712
    %v3898 = vunpack.c.l.b16 %v3713
    %v3899 = vunpack.c.h.b16 %v3713
    %v3900 = vunpack.c.l.b16 %v3714
    %v3901 = vunpack.c.h.b16 %v3714
    %v3902 = vunpack.c.l.b16 %v3715
    %v3903 = vunpack.c.h.b16 %v3715
    %v3904 = vunpack.c.l.b16 %v3716
    %v3905 = vunpack.c.h.b16 %v3716
    %v3906 = vunpack.c.l.b16 %v3717
    %v3907 = vunpack.c.h.b16 %v3717
    %v3908 = vunpack.c.l.b16 %v3718
    %v3909 = vunpack.c.h.b16 %v3718
    %v3910 = vunpack.c.l.b16 %v3719
    %v3911 = vunpack.c.h.b16 %v3719
    %v3912 = vpack.c.b16 %v3788, %v3784
    %v3913 = vpack.c.b16 %v3789, %v3785
    %v3914 = vpack.c.b16 %v3790, %v3786
    %v3915 = vpack.c.b16 %v3791, %v3787
    %v3916 = vpack.c.b16 %v3796, %v3792
    %v3917 = vpack.c.b16 %v3797, %v3793
    %v3918 = vpack.c.b16 %v3798, %v3794
    %v3919 = vpack.c.b16 %v3799, %v3795
    %v3920 = vpack.c.b16 %v3804, %v3800
    %v3921 = vpack.c.b16 %v3805, %v3801
    %v3922 = vpack.c.b16 %v3806, %v3802
    %v3923 = vpack.c.b16 %v3807, %v3803
    %v3924 = vpack.c.b16 %v3812, %v3808
    %v3925 = vpack.c.b16 %v3813, %v3809
    %v3926 = vpack.c.b16 %v3814, %v3810
    %v3927 = vpack.c.b16 %v3815, %v3811
    %v3928 = vpack.c.b16 %v3820, %v3816
    %v3929 = vpack.c.b16 %v3821, %v3817
    %v3930 = vpack.c.b16 %v3822, %v3818
    %v3931 = vpack.c.b16 %v3823, %v3819
    %v3932 = vpack.c.b16 %v3828, %v3824
    %v3933 = vpack.c.b16 %v3829, %v3825
    %v3934 = vpack.c.b16 %v3830, %v3826
    %v3935 = vpack.c.b16 %v3831, %v3827
    %v3936 = vpack.c.b16 %v3836, %v3832
    %v3937 = vpack.c.b16 %v3837, %v3833
    %v3938 = vpack.c.b16 %v3838, %v3834
    %v3939 = vpack.c.b16 %v3839, %v3835
    %v3940 = vpack.c.b16 %v3844, %v3840
    %v3941 = vpack.c.b16 %v3845, %v3841
    %v3942 = vpack.c.b16 %v3846, %v3842
    %v3943 = vpack.c.b16 %v3847, %v3843
    %v3944 = vpack.c.b16 %v3852, %v3848
    %v3945 = vpack.c.b16 %v3853, %v3849
    %v3946 = vpack.c.b16 %v3854, %v3850
    %v3947 = vpack.c.b16 %v3855, %v3851
    %v3948 = vpack.c.b16 %v3860, %v3856
    %v3949 = vpack.c.b16 %v3861, %v3857
    %v3950 = vpack.c.b16 %v3862, %v3858
    %v3951 = vpack.c.b16 %v3863, %v3859
    %v3952 = vpack.c.b16 %v3868, %v3864
    %v3953 = vpack.c.b16 %v3869, %v3865
    %v3954 = vpack.c.b16 %v3870, %v3866
    %v3955 = vpack.c.b16 %v3871, %v3867
    %v3956 = vpack.c.b16 %v3876, %v3872
    %v3957 = vpack.c.b16 %v3877, %v3873
    %v3958 = vpack.c.b16 %v3878, %v3874
    %v3959 = vpack.c.b16 %v3879, %v3875
    %v3960 = vpack.c.b16 %v3884, %v3880
    %v3961 = vpack.c.b16 %v3885, %v3881
    %v3962 = vpack.c.b16 %v3886, %v3882
    %v3963 = vpack.c.b16 %v3887, %v3883
    %v3964 = vpack.c.b16 %v3892, %v3888
    %v3965 = vpack.c.b16 %v3893, %v3889
    %v3966 = vpack.c.b16 %v3894, %v3890
    %v3967 = vpack.c.b16 %v3895, %v3891
    %v3968 = vpack.c.b16 %v3900, %v3896
    %v3969 = vpack.c.b16 %v3901, %v3897
    %v3970 = vpack.c.b16 %v3902, %v3898
    %v3971 = vpack.c.b16 %v3903, %v3899
    %v3972 = vpack.c.b16 %v3908, %v3904
    %v3973 = vpack.c.b16 %v3909, %v3905
    %v3974 = vpack.c.b16 %v3910, %v3906
    %v3975 = vpack.c.b16 %v3911, %v3907
    %4040 = vmatprep.subr.bf16.mxu0 %v3941
    %4041 = vmatpush1.bf16.msra.mxu0 %v3940
    %4042 = vmatprep.subr.bf16.mxu0 %v3937
    %4043 = vmatpush1.bf16.msra.mxu0 %v3936
    %4044 = vmatprep.subr.bf16.mxu0 %v3933
    %4045 = vmatpush1.bf16.msra.mxu0 %v3932
    %4046 = vmatprep.subr.bf16.mxu0 %v3929
    %4047 = vmatpush1.bf16.msra.mxu0 %v3928
    %4048 = vmatprep.subr.bf16.mxu0 %v3925
    %4049 = vmatpush1.bf16.msra.mxu0 %v3924
    %4050 = vmatprep.subr.bf16.mxu0 %v3921
    %4051 = vmatpush1.bf16.msra.mxu0 %v3920
    %4052 = vmatprep.subr.bf16.mxu0 %v3917
    %4053 = vmatpush1.bf16.msra.mxu0 %v3916
    %4054 = vmatprep.subr.bf16.mxu0 %v3913
    %4055 = vmatpush1.bf16.msra.mxu0 %v3912
    %4056 = vmatprep.subr.bf16.mxu0 %v3973
    %4057 = vmatpush2.bf16.msra.mxu0 %v3972
    %4058 = vmatprep.subr.bf16.mxu0 %v3969
    %4059 = vmatpush2.bf16.msra.mxu0 %v3968
    %4060 = vmatprep.subr.bf16.mxu0 %v3965
    %4061 = vmatpush2.bf16.msra.mxu0 %v3964
    %4062 = vmatprep.subr.bf16.mxu0 %v3961
    %4063 = vmatpush2.bf16.msra.mxu0 %v3960
    %4064 = vmatprep.subr.bf16.mxu0 %v3957
    %4065 = vmatpush2.bf16.msra.mxu0 %v3956
    %4066 = vmatprep.subr.bf16.mxu0 %v3953
    %4067 = vmatpush2.bf16.msra.mxu0 %v3952
    %4068 = vmatprep.subr.bf16.mxu0 %v3949
    %4069 = vmatpush2.bf16.msra.mxu0 %v3948
    %4070 = vmatprep.subr.bf16.mxu0 %v3945
    %4071 = vmatpush2.bf16.msra.mxu0 %v3944
    %4072 = vmatprep.mubr.bf16.mxu0 %v3655
    %4073 = vmatmul.mubr.bf16.gmra.mxu0 %v3654
    %v4074 = vpop.f32.mrf.mxu0
    %v4075 = vadd.f32 0.0, %v4074
    %v4076 = vpop.f32.mrf.mxu0
    %v4077 = vadd.f32 0.0, %v4076
    %v4078 = vpop.f32.mrf.mxu0
    %v4079 = vpop.f32.mrf.mxu0
    %4080 = vdwg.mxu0
    %4081 = vmatprep.subr.bf16.mxu0 %v3943
    %4082 = vmatpush1.bf16.msra.mxu0 %v3942
    %4083 = vmatprep.subr.bf16.mxu0 %v3939
    %4084 = vmatpush1.bf16.msra.mxu0 %v3938
    %4085 = vmatprep.subr.bf16.mxu0 %v3935
    %4086 = vmatpush1.bf16.msra.mxu0 %v3934
    %4087 = vmatprep.subr.bf16.mxu0 %v3931
    %4088 = vmatpush1.bf16.msra.mxu0 %v3930
    %4089 = vmatprep.subr.bf16.mxu0 %v3927
    %4090 = vmatpush1.bf16.msra.mxu0 %v3926
    %4091 = vmatprep.subr.bf16.mxu0 %v3923
    %4092 = vmatpush1.bf16.msra.mxu0 %v3922
    %4093 = vmatprep.subr.bf16.mxu0 %v3919
    %4094 = vmatpush1.bf16.msra.mxu0 %v3918
    %4095 = vmatprep.subr.bf16.mxu0 %v3915
    %4096 = vmatpush1.bf16.msra.mxu0 %v3914
    %4097 = vmatprep.subr.bf16.mxu0 %v3975
    %4098 = vmatpush2.bf16.msra.mxu0 %v3974
    %4099 = vmatprep.subr.bf16.mxu0 %v3971
    %4100 = vmatpush2.bf16.msra.mxu0 %v3970
    %4101 = vmatprep.subr.bf16.mxu0 %v3967
    %4102 = vmatpush2.bf16.msra.mxu0 %v3966
    %4103 = vmatprep.subr.bf16.mxu0 %v3963
    %4104 = vmatpush2.bf16.msra.mxu0 %v3962
    %4105 = vmatprep.subr.bf16.mxu0 %v3959
    %4106 = vmatpush2.bf16.msra.mxu0 %v3958
    %4107 = vmatprep.subr.bf16.mxu0 %v3955
    %4108 = vmatpush2.bf16.msra.mxu0 %v3954
    %4109 = vmatprep.subr.bf16.mxu0 %v3951
    %4110 = vmatpush2.bf16.msra.mxu0 %v3950
    %4111 = vmatprep.subr.bf16.mxu0 %v3947
    %4112 = vmatpush2.bf16.msra.mxu0 %v3946
    %4113 = vmatprep.mubr.bf16.mxu0 %v3655
    %4114 = vmatmul.mubr.bf16.gmra.mxu0 %v3654
    %v4115 = vpop.f32.mrf.mxu0
    %v4116 = vadd.f32 0.0, %v4115
    %v4117 = vpop.f32.mrf.mxu0
    %v4118 = vadd.f32 0.0, %v4117
    %v4119 = vpop.f32.mrf.mxu0
    %v4120 = vpop.f32.mrf.mxu0
    %4121 = vdwg.mxu0
    %v4122 = vsel %vm3604, %v4075, 0.0
    %v4123 = vrot.slane %v4122, 4
    %v4124 = vadd.f32 %v4122, %v4123
    %v4125 = vrot.slane %v4124, 2
    %v4126 = vadd.f32 %v4124, %v4125
    %v4127 = vrot.slane %v4126, 1
    %v4128 = vadd.f32 %v4126, %v4127
    %v4129 = vsel %vm3604, %v4077, 0.0
    %v4130 = vrot.slane %v4129, 4
    %v4131 = vadd.f32 %v4129, %v4130
    %v4132 = vrot.slane %v4131, 2
    %v4133 = vadd.f32 %v4131, %v4132
    %v4134 = vrot.slane %v4133, 1
    %v4135 = vadd.f32 %v4133, %v4134
    %v4136 = vsel %vm3604, %v4116, 0.0
    %v4137 = vrot.slane %v4136, 4
    %v4138 = vadd.f32 %v4136, %v4137
    %v4139 = vrot.slane %v4138, 2
    %v4140 = vadd.f32 %v4138, %v4139
    %v4141 = vrot.slane %v4140, 1
    %v4142 = vadd.f32 %v4140, %v4141
    %v4143 = vsel %vm3604, %v4118, 0.0
    %v4144 = vrot.slane %v4143, 4
    %v4145 = vadd.f32 %v4143, %v4144
    %v4146 = vrot.slane %v4145, 2
    %v4147 = vadd.f32 %v4145, %v4146
    %v4148 = vrot.slane %v4147, 1
    %v4149 = vadd.f32 %v4147, %v4148
    %v4150 = vmul.f32 %v4128, %v3619
    %v4151 = vmul.f32 %v4135, %v3619
    %v4152 = vmul.f32 %v4142, %v3619
    %v4153 = vmul.f32 %v4149, %v3619
    %v4154 = vsub.f32 %v4075, %v4150
    %v4155 = vsub.f32 %v4077, %v4151
    %v4156 = vsub.f32 %v4116, %v4152
    %v4157 = vsub.f32 %v4118, %v4153
    %v4158 = vmul.f32 %v4154, %v4154
    %v4159 = vmul.f32 %v4155, %v4155
    %v4160 = vmul.f32 %v4156, %v4156
    %v4161 = vmul.f32 %v4157, %v4157
    %v4162 = vsel %vm3604, %v4158, 0.0
    %v4163 = vrot.slane %v4162, 4
    %v4164 = vadd.f32 %v4162, %v4163
    %v4165 = vrot.slane %v4164, 2
    %v4166 = vadd.f32 %v4164, %v4165
    %v4167 = vrot.slane %v4166, 1
    %v4168 = vadd.f32 %v4166, %v4167
    %v4169 = vsel %vm3604, %v4159, 0.0
    %v4170 = vrot.slane %v4169, 4
    %v4171 = vadd.f32 %v4169, %v4170
    %v4172 = vrot.slane %v4171, 2
    %v4173 = vadd.f32 %v4171, %v4172
    %v4174 = vrot.slane %v4173, 1
    %v4175 = vadd.f32 %v4173, %v4174
    %v4176 = vsel %vm3604, %v4160, 0.0
    %v4177 = vrot.slane %v4176, 4
    %v4178 = vadd.f32 %v4176, %v4177
    %v4179 = vrot.slane %v4178, 2
    %v4180 = vadd.f32 %v4178, %v4179
    %v4181 = vrot.slane %v4180, 1
    %v4182 = vadd.f32 %v4180, %v4181
    %v4183 = vsel %vm3604, %v4161, 0.0
    %v4184 = vrot.slane %v4183, 4
    %v4185 = vadd.f32 %v4183, %v4184
    %v4186 = vrot.slane %v4185, 2
    %v4187 = vadd.f32 %v4185, %v4186
    %v4188 = vrot.slane %v4187, 1
    %v4189 = vadd.f32 %v4187, %v4188
    %v4190 = vmul.f32 %v4168, %v3619
    %v4191 = vmul.f32 %v4175, %v3619
    %v4192 = vmul.f32 %v4182, %v3619
    %v4193 = vmul.f32 %v4189, %v3619
    %v4194 = vadd.f32 %v4190, 1e-05
    %v4195 = vadd.f32 %v4191, 1e-05
    %v4196 = vadd.f32 %v4192, 1e-05
    %v4197 = vadd.f32 %v4193, 1e-05
    %v4198 = vrsqrt.pop %v4194
    %v4199 = vrsqrt.pop %v4195
    %v4200 = vrsqrt.pop %v4196
    %v4201 = vrsqrt.pop %v4197
    %v4202 = vmul.f32 %v4154, %v4198
    %v4203 = vmul.f32 %v4155, %v4199
    %v4204 = vmul.f32 %v4156, %v4200
    %v4205 = vmul.f32 %v4157, %v4201
    %vm4206 = vcmp.gt.f32.partialorder %v4202, 0.0
    %vm4207 = vcmp.gt.f32.partialorder %v4203, 0.0
    %vm4208 = vcmp.gt.f32.partialorder %v4204, 0.0
    %vm4209 = vcmp.gt.f32.partialorder %v4205, 0.0
    %v4210 = vmul.f32 %v4202, 0.2
    %v4211 = vmul.f32 %v4203, 0.2
    %v4212 = vmul.f32 %v4204, 0.2
    %v4213 = vmul.f32 %v4205, 0.2
    %v4214 = vsel %vm4206, %v4202, %v4210
    %v4215 = vsel %vm4207, %v4203, %v4211
    %v4216 = vsel %vm4208, %v4204, %v4212
    %v4217 = vsel %vm4209, %v4205, %v4213
    %v4218 = vld [vmem:[#allocation9] sm:$0xf]
    %v4219 = vld [vmem:[#allocation9 + $0x4] sm:$0xf]
    %v4220 = vld [vmem:[#allocation9 + $0x8] sm:$0xf]
    %v4221 = vld [vmem:[#allocation9 + $0xc] sm:$0xf]
    %v4222 = vld [vmem:[#allocation9 + $0x10] sm:$0xf]
    %v4223 = vld [vmem:[#allocation9 + $0x14] sm:$0xf]
    %v4224 = vld [vmem:[#allocation9 + $0x18] sm:$0xf]
    %v4225 = vld [vmem:[#allocation9 + $0x1c] sm:$0xf]
    %v4226 = vld [vmem:[#allocation9 + $0x20] sm:$0xf]
    %v4227 = vld [vmem:[#allocation9 + $0x24] sm:$0xf]
    %v4228 = vld [vmem:[#allocation9 + $0x28] sm:$0xf]
    %v4229 = vld [vmem:[#allocation9 + $0x2c] sm:$0xf]
    %v4230 = vld [vmem:[#allocation9 + $0x30] sm:$0xf]
    %v4231 = vld [vmem:[#allocation9 + $0x34] sm:$0xf]
    %v4232 = vld [vmem:[#allocation9 + $0x38] sm:$0xf]
    %v4233 = vld [vmem:[#allocation9 + $0x3c] sm:$0xf]
    %v4234 = vld [vmem:[#allocation9 + $0x40] sm:$0xf]
    %v4235 = vld [vmem:[#allocation9 + $0x44] sm:$0xf]
    %v4236 = vld [vmem:[#allocation9 + $0x48] sm:$0xf]
    %v4237 = vld [vmem:[#allocation9 + $0x4c] sm:$0xf]
    %v4238 = vld [vmem:[#allocation9 + $0x50] sm:$0xf]
    %v4239 = vld [vmem:[#allocation9 + $0x54] sm:$0xf]
    %v4240 = vld [vmem:[#allocation9 + $0x58] sm:$0xf]
    %v4241 = vld [vmem:[#allocation9 + $0x5c] sm:$0xf]
    %v4242 = vld [vmem:[#allocation9 + $0x60] sm:$0xf]
    %v4243 = vld [vmem:[#allocation9 + $0x64] sm:$0xf]
    %v4244 = vld [vmem:[#allocation9 + $0x68] sm:$0xf]
    %v4245 = vld [vmem:[#allocation9 + $0x6c] sm:$0xf]
    %v4246 = vld [vmem:[#allocation9 + $0x70] sm:$0xf]
    %v4247 = vld [vmem:[#allocation9 + $0x74] sm:$0xf]
    %v4248 = vld [vmem:[#allocation9 + $0x78] sm:$0xf]
    %v4249 = vld [vmem:[#allocation9 + $0x7c] sm:$0xf]
    %v4250 = vld [vmem:[#allocation9 + $0x80] sm:$0xf]
    %v4251 = vld [vmem:[#allocation9 + $0x84] sm:$0xf]
    %v4252 = vld [vmem:[#allocation9 + $0x88] sm:$0xf]
    %v4253 = vld [vmem:[#allocation9 + $0x8c] sm:$0xf]
    %v4254 = vld [vmem:[#allocation9 + $0x90] sm:$0xf]
    %v4255 = vld [vmem:[#allocation9 + $0x94] sm:$0xf]
    %v4256 = vld [vmem:[#allocation9 + $0x98] sm:$0xf]
    %v4257 = vld [vmem:[#allocation9 + $0x9c] sm:$0xf]
    %v4258 = vld [vmem:[#allocation9 + $0xa0] sm:$0xf]
    %v4259 = vld [vmem:[#allocation9 + $0xa4] sm:$0xf]
    %v4260 = vld [vmem:[#allocation9 + $0xa8] sm:$0xf]
    %v4261 = vld [vmem:[#allocation9 + $0xac] sm:$0xf]
    %v4262 = vld [vmem:[#allocation9 + $0xb0] sm:$0xf]
    %v4263 = vld [vmem:[#allocation9 + $0xb4] sm:$0xf]
    %v4264 = vld [vmem:[#allocation9 + $0xb8] sm:$0xf]
    %v4265 = vld [vmem:[#allocation9 + $0xbc] sm:$0xf]
    %v4266 = vld [vmem:[#allocation9 + $0xc0] sm:$0xf]
    %v4267 = vld [vmem:[#allocation9 + $0xc4] sm:$0xf]
    %v4268 = vld [vmem:[#allocation9 + $0xc8] sm:$0xf]
    %v4269 = vld [vmem:[#allocation9 + $0xcc] sm:$0xf]
    %v4270 = vld [vmem:[#allocation9 + $0xd0] sm:$0xf]
    %v4271 = vld [vmem:[#allocation9 + $0xd4] sm:$0xf]
    %v4272 = vld [vmem:[#allocation9 + $0xd8] sm:$0xf]
    %v4273 = vld [vmem:[#allocation9 + $0xdc] sm:$0xf]
    %v4274 = vld [vmem:[#allocation9 + $0xe0] sm:$0xf]
    %v4275 = vld [vmem:[#allocation9 + $0xe4] sm:$0xf]
    %v4276 = vld [vmem:[#allocation9 + $0xe8] sm:$0xf]
    %v4277 = vld [vmem:[#allocation9 + $0xec] sm:$0xf]
    %v4278 = vld [vmem:[#allocation9 + $0xf0] sm:$0xf]
    %v4279 = vld [vmem:[#allocation9 + $0xf4] sm:$0xf]
    %v4280 = vld [vmem:[#allocation9 + $0xf8] sm:$0xf]
    %v4281 = vld [vmem:[#allocation9 + $0xfc] sm:$0xf]
    %v4282 = vld [vmem:[%s11] sm:$0x1]
    %v4283 = vpack.c.bf16 %v4214, %v4214
    %v4284 = vpack.c.bf16 %v4215, %v4215
    %v4285 = vpack.c.bf16 %v4216, %v4216
    %v4286 = vpack.c.bf16 %v4217, %v4217
    %v4288 = vlaneseq
    %v4289 = vshrl.u32 %v4288, 7
    %v4290 = vsub.s32 0, %v4289
    %v4291 = vrot.slane %v4282, %v4290
    %v4357 = vunpack.c.l.b16 %v4218
    %v4358 = vunpack.c.l.b16 %v4219
    %v4359 = vunpack.c.l.b16 %v4220
    %v4360 = vunpack.c.l.b16 %v4221
    %v4361 = vunpack.c.l.b16 %v4222
    %v4362 = vunpack.c.l.b16 %v4223
    %v4363 = vunpack.c.l.b16 %v4224
    %v4364 = vunpack.c.l.b16 %v4225
    %v4365 = vunpack.c.l.b16 %v4226
    %v4366 = vunpack.c.l.b16 %v4227
    %v4367 = vunpack.c.l.b16 %v4228
    %v4368 = vunpack.c.l.b16 %v4229
    %v4369 = vunpack.c.l.b16 %v4230
    %v4370 = vunpack.c.l.b16 %v4231
    %v4371 = vunpack.c.l.b16 %v4232
    %v4372 = vunpack.c.l.b16 %v4233
    %v4373 = vunpack.c.l.b16 %v4234
    %v4374 = vunpack.c.l.b16 %v4235
    %v4375 = vunpack.c.l.b16 %v4236
    %v4376 = vunpack.c.l.b16 %v4237
    %v4377 = vunpack.c.l.b16 %v4238
    %v4378 = vunpack.c.l.b16 %v4239
    %v4379 = vunpack.c.l.b16 %v4240
    %v4380 = vunpack.c.l.b16 %v4241
    %v4381 = vunpack.c.l.b16 %v4242
    %v4382 = vunpack.c.l.b16 %v4243
    %v4383 = vunpack.c.l.b16 %v4244
    %v4384 = vunpack.c.l.b16 %v4245
    %v4385 = vunpack.c.l.b16 %v4246
    %v4386 = vunpack.c.l.b16 %v4247
    %v4387 = vunpack.c.l.b16 %v4248
    %v4388 = vunpack.c.l.b16 %v4249
    %v4389 = vunpack.c.l.b16 %v4250
    %v4390 = vunpack.c.l.b16 %v4251
    %v4391 = vunpack.c.l.b16 %v4252
    %v4392 = vunpack.c.l.b16 %v4253
    %v4393 = vunpack.c.l.b16 %v4254
    %v4394 = vunpack.c.l.b16 %v4255
    %v4395 = vunpack.c.l.b16 %v4256
    %v4396 = vunpack.c.l.b16 %v4257
    %v4397 = vunpack.c.l.b16 %v4258
    %v4398 = vunpack.c.l.b16 %v4259
    %v4399 = vunpack.c.l.b16 %v4260
    %v4400 = vunpack.c.l.b16 %v4261
    %v4401 = vunpack.c.l.b16 %v4262
    %v4402 = vunpack.c.l.b16 %v4263
    %v4403 = vunpack.c.l.b16 %v4264
    %v4404 = vunpack.c.l.b16 %v4265
    %v4405 = vunpack.c.l.b16 %v4266
    %v4406 = vunpack.c.l.b16 %v4267
    %v4407 = vunpack.c.l.b16 %v4268
    %v4408 = vunpack.c.l.b16 %v4269
    %v4409 = vunpack.c.l.b16 %v4270
    %v4410 = vunpack.c.l.b16 %v4271
    %v4411 = vunpack.c.l.b16 %v4272
    %v4412 = vunpack.c.l.b16 %v4273
    %v4413 = vunpack.c.l.b16 %v4274
    %v4414 = vunpack.c.l.b16 %v4275
    %v4415 = vunpack.c.l.b16 %v4276
    %v4416 = vunpack.c.l.b16 %v4277
    %v4417 = vunpack.c.l.b16 %v4278
    %v4418 = vunpack.c.l.b16 %v4279
    %v4419 = vunpack.c.l.b16 %v4280
    %v4420 = vunpack.c.l.b16 %v4281
    %v4421 = vpack.c.b16 %v4358, %v4357
    %v4422 = vpack.c.b16 %v4360, %v4359
    %v4423 = vpack.c.b16 %v4362, %v4361
    %v4424 = vpack.c.b16 %v4364, %v4363
    %v4425 = vpack.c.b16 %v4366, %v4365
    %v4426 = vpack.c.b16 %v4368, %v4367
    %v4427 = vpack.c.b16 %v4370, %v4369
    %v4428 = vpack.c.b16 %v4372, %v4371
    %v4429 = vpack.c.b16 %v4374, %v4373
    %v4430 = vpack.c.b16 %v4376, %v4375
    %v4431 = vpack.c.b16 %v4378, %v4377
    %v4432 = vpack.c.b16 %v4380, %v4379
    %v4433 = vpack.c.b16 %v4382, %v4381
    %v4434 = vpack.c.b16 %v4384, %v4383
    %v4435 = vpack.c.b16 %v4386, %v4385
    %v4436 = vpack.c.b16 %v4388, %v4387
    %v4437 = vpack.c.b16 %v4390, %v4389
    %v4438 = vpack.c.b16 %v4392, %v4391
    %v4439 = vpack.c.b16 %v4394, %v4393
    %v4440 = vpack.c.b16 %v4396, %v4395
    %v4441 = vpack.c.b16 %v4398, %v4397
    %v4442 = vpack.c.b16 %v4400, %v4399
    %v4443 = vpack.c.b16 %v4402, %v4401
    %v4444 = vpack.c.b16 %v4404, %v4403
    %v4445 = vpack.c.b16 %v4406, %v4405
    %v4446 = vpack.c.b16 %v4408, %v4407
    %v4447 = vpack.c.b16 %v4410, %v4409
    %v4448 = vpack.c.b16 %v4412, %v4411
    %v4449 = vpack.c.b16 %v4414, %v4413
    %v4450 = vpack.c.b16 %v4416, %v4415
    %v4451 = vpack.c.b16 %v4418, %v4417
    %v4452 = vpack.c.b16 %v4420, %v4419
    %4485 = vmatprep.subr.bf16.mxu0 0
    %4486 = vmatpush1.bf16.msra.mxu0 %v4428
    %4487 = vmatprep.subr.bf16.mxu0 0
    %4488 = vmatpush1.bf16.msra.mxu0 %v4427
    %4489 = vmatprep.subr.bf16.mxu0 0
    %4490 = vmatpush1.bf16.msra.mxu0 %v4426
    %4491 = vmatprep.subr.bf16.mxu0 0
    %4492 = vmatpush1.bf16.msra.mxu0 %v4425
    %4493 = vmatprep.subr.bf16.mxu0 0
    %4494 = vmatpush1.bf16.msra.mxu0 %v4424
    %4495 = vmatprep.subr.bf16.mxu0 0
    %4496 = vmatpush1.bf16.msra.mxu0 %v4423
    %4497 = vmatprep.subr.bf16.mxu0 0
    %4498 = vmatpush1.bf16.msra.mxu0 %v4422
    %4499 = vmatprep.subr.bf16.mxu0 0
    %4500 = vmatpush1.bf16.msra.mxu0 %v4421
    %4501 = vmatprep.subr.bf16.mxu0 0
    %4502 = vmatpush2.bf16.msra.mxu0 %v4436
    %4503 = vmatprep.subr.bf16.mxu0 0
    %4504 = vmatpush2.bf16.msra.mxu0 %v4435
    %4505 = vmatprep.subr.bf16.mxu0 0
    %4506 = vmatpush2.bf16.msra.mxu0 %v4434
    %4507 = vmatprep.subr.bf16.mxu0 0
    %4508 = vmatpush2.bf16.msra.mxu0 %v4433
    %4509 = vmatprep.subr.bf16.mxu0 0
    %4510 = vmatpush2.bf16.msra.mxu0 %v4432
    %4511 = vmatprep.subr.bf16.mxu0 0
    %4512 = vmatpush2.bf16.msra.mxu0 %v4431
    %4513 = vmatprep.subr.bf16.mxu0 0
    %4514 = vmatpush2.bf16.msra.mxu0 %v4430
    %4515 = vmatprep.subr.bf16.mxu0 0
    %4516 = vmatpush2.bf16.msra.mxu0 %v4429
    %4517 = vmatprep.mubr.bf16.mxu0 %v4284
    %4518 = vmatmul.mubr.bf16.gmra.mxu0 %v4283
    %v4519 = vpop.f32.mrf.mxu0
    %v4520 = vadd.f32 %v4291, %v4519
    %v4521 = vpop.f32.mrf.mxu0
    %v4522 = vpop.f32.mrf.mxu0
    %v4523 = vpop.f32.mrf.mxu0
    %4524 = vdwg.mxu0
    %4525 = vmatprep.subr.bf16.mxu0 0
    %4526 = vmatpush1.bf16.msra.mxu0 %v4444
    %4527 = vmatprep.subr.bf16.mxu0 0
    %4528 = vmatpush1.bf16.msra.mxu0 %v4443
    %4529 = vmatprep.subr.bf16.mxu0 0
    %4530 = vmatpush1.bf16.msra.mxu0 %v4442
    %4531 = vmatprep.subr.bf16.mxu0 0
    %4532 = vmatpush1.bf16.msra.mxu0 %v4441
    %4533 = vmatprep.subr.bf16.mxu0 0
    %4534 = vmatpush1.bf16.msra.mxu0 %v4440
    %4535 = vmatprep.subr.bf16.mxu0 0
    %4536 = vmatpush1.bf16.msra.mxu0 %v4439
    %4537 = vmatprep.subr.bf16.mxu0 0
    %4538 = vmatpush1.bf16.msra.mxu0 %v4438
    %4539 = vmatprep.subr.bf16.mxu0 0
    %4540 = vmatpush1.bf16.msra.mxu0 %v4437
    %4541 = vmatprep.subr.bf16.mxu0 0
    %4542 = vmatpush2.bf16.msra.mxu0 %v4452
    %4543 = vmatprep.subr.bf16.mxu0 0
    %4544 = vmatpush2.bf16.msra.mxu0 %v4451
    %4545 = vmatprep.subr.bf16.mxu0 0
    %4546 = vmatpush2.bf16.msra.mxu0 %v4450
    %4547 = vmatprep.subr.bf16.mxu0 0
    %4548 = vmatpush2.bf16.msra.mxu0 %v4449
    %4549 = vmatprep.subr.bf16.mxu0 0
    %4550 = vmatpush2.bf16.msra.mxu0 %v4448
    %4551 = vmatprep.subr.bf16.mxu0 0
    %4552 = vmatpush2.bf16.msra.mxu0 %v4447
    %4553 = vmatprep.subr.bf16.mxu0 0
    %4554 = vmatpush2.bf16.msra.mxu0 %v4446
    %4555 = vmatprep.subr.bf16.mxu0 0
    %4556 = vmatpush2.bf16.msra.mxu0 %v4445
    %4557 = vmatprep.mubr.bf16.mxu0 %v4286
    %4558 = vmatmul.mubr.bf16.gmra.mxu0 %v4285
    %v4559 = vpop.f32.mrf.mxu0
    %v4560 = vadd.f32 %v4520, %v4559
    %v4561 = vpop.f32.mrf.mxu0
    %v4562 = vpop.f32.mrf.mxu0
    %v4563 = vpop.f32.mrf.mxu0
    %4564 = vdwg.mxu0
    %4565 = vst [vmem:[%s12] sm:$0x3] %v4560
    // Predicated region
    $region70: #{_forward.1} parent=1 // pred_check
      _
    $region71: #{_forward.1} parent=1 // pred_check_branch
      %4567 = sbr.rel (0) target = $region73
    $region72: #{_forward.1} parent=1 // pred_region
      _
    $region73: #{_forward.1} parent=1 // pred_fallthru
      _
    // Predicated region
    $region74: #{_forward.1} parent=1 // pred_check
      _
    $region75: #{_forward.1} parent=1 // pred_check_branch
      %4569 = sbr.rel (0) target = $region77
    $region76: #{_forward.1} parent=1 // pred_region
      _
    $region77: #{_forward.1} parent=1 // pred_fallthru
      _
    %4570 = vsyncpa [#allocation3], 1
    %4571 = vsyncpa [#allocation5], 1
    %4572 = vsyncpa [#allocation8], 1

</llo_original>
